<compile_context>
chip_gen: v7x
topology: tpu7x:2x2x1
jax: 0.10.0
libtpu: 0.0.40
codegen_flags: <defaults>
</compile_context>

<pallas_src>
import jax
import jax.numpy as jnp
from jax.experimental import pallas as pl
from jax.experimental.pallas import tpu as pltpu

LANE = 128
TILE_B = 128  # multiple of 128 -> full MXU M tiles, well under v7x 32 MiB scoped VMEM


def _round_up(n, m):
    return (n + m - 1) // m * m


# -----------------------------------------------------------------------------
# Kernel
# -----------------------------------------------------------------------------
def _mlp4(h_bf16, params):
    """4x (Linear [+ReLU]) on the MXU: bf16 operands, fp32 accumulate/bias/ReLU."""
    acc = None
    n = len(params)
    for i, (w_ref, b_ref) in enumerate(params):
        acc = jnp.dot(h_bf16, w_ref[...],
                      preferred_element_type=jnp.float32) + b_ref[...]
        if i < n - 1:
            h_bf16 = jnp.maximum(acc, 0.0).astype(jnp.bfloat16)
    return acc  # fp32


def _autoencoder_kernel(x_ref, *refs):
    # 24 weight/bias refs followed by 3 output refs.
    w_refs = refs[:24]
    z_ref, s_ref, a_ref = refs[24], refs[25], refs[26]

    enc = [(w_refs[2 * i], w_refs[2 * i + 1]) for i in range(4)]
    sdec = [(w_refs[8 + 2 * i], w_refs[8 + 2 * i + 1]) for i in range(4)]
    adec = [(w_refs[16 + 2 * i], w_refs[16 + 2 * i + 1]) for i in range(4)]

    x = x_ref[...].astype(jnp.bfloat16)

    z = _mlp4(x, enc)                         # fp32 [TILE_B, z_pad]; pad cols are 0
    z_ref[...] = z.astype(z_ref.dtype)

    # z stays resident; decoder first-layer weights are zero-row-padded so the
    # z_state / z_act slicing is implicit in the matmul.
    z_bf = z.astype(jnp.bfloat16)
    s_ref[...] = _mlp4(z_bf, sdec).astype(s_ref.dtype)
    a_ref[...] = _mlp4(z_bf, adec).astype(a_ref.dtype)


# -----------------------------------------------------------------------------
# Parameter init (PyTorch nn.Linear-like), stored (in_dim, out_dim) so y = x@W+b
# -----------------------------------------------------------------------------
def _init_linear(key, d_in, d_out):
    kw, kb = jax.random.split(key)
    bound = 1.0 / jnp.sqrt(jnp.float32(d_in))
    w = jax.random.uniform(kw, (d_in, d_out), jnp.float32, -bound, bound)
    b = jax.random.uniform(kb, (1, d_out), jnp.float32, -bound, bound)
    return w, b


def _init_mlp4(key, dims):
    keys = jax.random.split(key, 4)
    return [_init_linear(keys[i], dims[i], dims[i + 1]) for i in range(4)]


# -----------------------------------------------------------------------------
# Model wrapper
# -----------------------------------------------------------------------------
class AutoEncoderPallas:
    def __init__(self, input_dim, out_dim, act_dim, state_dim,
                 z_stat_dim, z_act_dim, key):
        assert z_stat_dim + z_act_dim == out_dim
        self.input_dim = input_dim
        self.out_dim = out_dim
        self.state_dim = state_dim
        self.act_dim = act_dim
        self.z_stat_dim = z_stat_dim
        self.z_act_dim = z_act_dim

        k_enc, k_sdec, k_adec = jax.random.split(key, 3)
        # fp32 master weights at the true (unpadded) shapes.
        self.encoder_params = _init_mlp4(k_enc, [input_dim, 512, 256, 128, out_dim])
        self.s_decoder_params = _init_mlp4(k_sdec, [z_stat_dim, 128, 256, 512, state_dim])
        self.a_decoder_params = _init_mlp4(k_adec, [z_act_dim, 128, 256, 512, act_dim])

        # Lane-padded bf16 weights / fp32 biases for the kernel (padded once).
        self._in_p = _round_up(input_dim, LANE)
        self._z_p = _round_up(out_dim, LANE)
        self._s_p = _round_up(state_dim, LANE)
        self._a_p = _round_up(act_dim, LANE)
        self._kernel_params = self._build_kernel_params()

    def _build_kernel_params(self):
        def pad_w(w, rows, cols):
            return jnp.pad(w, ((0, rows - w.shape[0]),
                               (0, cols - w.shape[1]))).astype(jnp.bfloat16)

        def pad_b(b, cols):
            return jnp.pad(b, ((0, 0), (0, cols - b.shape[1]))).astype(jnp.float32)

        def embed_w(w, rows, cols, row_off):
            # place w at rows [row_off : row_off + w.shape[0]], zeros elsewhere
            full = jnp.zeros((rows, cols), jnp.float32)
            full = full.at[row_off:row_off + w.shape[0], :w.shape[1]].set(w)
            return full.astype(jnp.bfloat16)

        flat = []
        # encoder: (in_p -> 512 -> 256 -> 128 -> z_p)
        (w1, b1), (w2, b2), (w3, b3), (w4, b4) = self.encoder_params
        flat += [pad_w(w1, self._in_p, 512), pad_b(b1, 512),
                 pad_w(w2, 512, 256), pad_b(b2, 256),
                 pad_w(w3, 256, 128), pad_b(b3, 128),
                 pad_w(w4, 128, self._z_p), pad_b(b4, self._z_p)]
        # s_decoder: consumes full padded z, active rows [0 : z_stat_dim]
        (w1, b1), (w2, b2), (w3, b3), (w4, b4) = self.s_decoder_params
        flat += [embed_w(w1, self._z_p, 128, 0), pad_b(b1, 128),
                 pad_w(w2, 128, 256), pad_b(b2, 256),
                 pad_w(w3, 256, 512), pad_b(b3, 512),
                 pad_w(w4, 512, self._s_p), pad_b(b4, self._s_p)]
        # a_decoder: consumes full padded z, active rows [z_stat_dim : out_dim]
        (w1, b1), (w2, b2), (w3, b3), (w4, b4) = self.a_decoder_params
        flat += [embed_w(w1, self._z_p, 128, self.z_stat_dim), pad_b(b1, 128),
                 pad_w(w2, 128, 256), pad_b(b2, 256),
                 pad_w(w3, 256, 512), pad_b(b3, 512),
                 pad_w(w4, 512, self._a_p), pad_b(b4, self._a_p)]
        return flat

    def __call__(self, x):
        B = x.shape[0]
        B_pad = _round_up(B, TILE_B)
        x_p = jnp.pad(x.astype(jnp.float32),
                      ((0, B_pad - B), (0, self._in_p - self.input_dim)))
        n_tiles = B_pad // TILE_B

        w_specs = [pl.BlockSpec(p.shape, lambda i: (0, 0))
                   for p in self._kernel_params]
        in_specs = [pl.BlockSpec((TILE_B, self._in_p), lambda i: (i, 0))] + w_specs
        out_specs = [
            pl.BlockSpec((TILE_B, self._z_p), lambda i: (i, 0)),
            pl.BlockSpec((TILE_B, self._s_p), lambda i: (i, 0)),
            pl.BlockSpec((TILE_B, self._a_p), lambda i: (i, 0)),
        ]
        out_shapes = (
            jax.ShapeDtypeStruct((B_pad, self._z_p), jnp.float32),
            jax.ShapeDtypeStruct((B_pad, self._s_p), jnp.float32),
            jax.ShapeDtypeStruct((B_pad, self._a_p), jnp.float32),
        )

        z_full, s_full, a_full = pl.pallas_call(
            _autoencoder_kernel,
            out_shape=out_shapes,
            grid_spec=pl.GridSpec(
                grid=(n_tiles,),
                in_specs=in_specs,
                out_specs=out_specs,
            ),
            compiler_params=pltpu.CompilerParams(
                dimension_semantics=("parallel",)),
        )(x_p, *self._kernel_params)

        z = z_full[:B, :self.out_dim]
        s_decoded = s_full[:B, :self.state_dim]
        a_decoded = a_full[:B, :self.act_dim]
        return z, s_decoded, a_decoded


# -----------------------------------------------------------------------------
# Pure-JAX reference (same bf16-operand / fp32-accumulate precision)
# -----------------------------------------------------------------------------
def _reference_forward(x, model):
    def ref_mlp(h, params):
        for i, (w, b) in enumerate(params):
            h = jnp.dot(h.astype(jnp.bfloat16), w.astype(jnp.bfloat16),
                        preferred_element_type=jnp.float32) + b
            if i < 3:
                h = jnp.maximum(h, 0.0)
        return h

    z = ref_mlp(x.astype(jnp.float32), model.encoder_params)
    zs = z[:, :model.z_stat_dim]
    za = z[:, model.z_stat_dim:]
    return z, ref_mlp(zs, model.s_decoder_params), ref_mlp(za, model.a_decoder_params)


if __name__ == "__main__":
    batch = 8
    input_dim = 32
    z_stat_dim = 16
    z_act_dim = 8
    out_dim = z_stat_dim + z_act_dim   # 24
    state_dim = 20
    act_dim = 6

    key = jax.random.PRNGKey(0)
    k_model, k_x = jax.random.split(key)

    model = AutoEncoderPallas(input_dim, out_dim, act_dim, state_dim,
                              z_stat_dim, z_act_dim, k_model)
    x = jax.random.normal(k_x, (batch, input_dim), jnp.float32)

    z, s_dec, a_dec = model(x)
    jax.block_until_ready((z, s_dec, a_dec))

    # Sanity check against pure-JAX reference (same bf16 matmul precision).
    z_r, s_r, a_r = _reference_forward(x, model)
    assert z.shape == (batch, out_dim)
    assert s_dec.shape == (batch, state_dim)
    assert a_dec.shape == (batch, act_dim)
    assert jnp.allclose(z, z_r, atol=1e-2, rtol=1e-2)
    assert jnp.allclose(s_dec, s_r, atol=1e-2, rtol=1e-2)
    assert jnp.allclose(a_dec, a_r, atol=1e-2, rtol=1e-2)

    print("KERNEL_OK")
</pallas_src>

<mosaic_0001>
module attributes {stable_mosaic.version = 11 : i64} {
  func.func @_autoencoder_kernel(%arg0: i32, %arg1: memref<128x128xf32, #tpu.memory_space<vmem>>, %arg2: memref<128x512xbf16, #tpu.memory_space<vmem>>, %arg3: memref<1x512xf32, #tpu.memory_space<vmem>>, %arg4: memref<512x256xbf16, #tpu.memory_space<vmem>>, %arg5: memref<1x256xf32, #tpu.memory_space<vmem>>, %arg6: memref<256x128xbf16, #tpu.memory_space<vmem>>, %arg7: memref<1x128xf32, #tpu.memory_space<vmem>>, %arg8: memref<128x128xbf16, #tpu.memory_space<vmem>>, %arg9: memref<1x128xf32, #tpu.memory_space<vmem>>, %arg10: memref<128x128xbf16, #tpu.memory_space<vmem>>, %arg11: memref<1x128xf32, #tpu.memory_space<vmem>>, %arg12: memref<128x256xbf16, #tpu.memory_space<vmem>>, %arg13: memref<1x256xf32, #tpu.memory_space<vmem>>, %arg14: memref<256x512xbf16, #tpu.memory_space<vmem>>, %arg15: memref<1x512xf32, #tpu.memory_space<vmem>>, %arg16: memref<512x128xbf16, #tpu.memory_space<vmem>>, %arg17: memref<1x128xf32, #tpu.memory_space<vmem>>, %arg18: memref<128x128xbf16, #tpu.memory_space<vmem>>, %arg19: memref<1x128xf32, #tpu.memory_space<vmem>>, %arg20: memref<128x256xbf16, #tpu.memory_space<vmem>>, %arg21: memref<1x256xf32, #tpu.memory_space<vmem>>, %arg22: memref<256x512xbf16, #tpu.memory_space<vmem>>, %arg23: memref<1x512xf32, #tpu.memory_space<vmem>>, %arg24: memref<512x128xbf16, #tpu.memory_space<vmem>>, %arg25: memref<1x128xf32, #tpu.memory_space<vmem>>, %arg26: memref<128x128xf32, #tpu.memory_space<vmem>>, %arg27: memref<128x128xf32, #tpu.memory_space<vmem>>, %arg28: memref<128x128xf32, #tpu.memory_space<vmem>>) attributes {dimension_semantics = [#tpu.dimension_semantics<parallel>], iteration_bounds = array<i64: 1>, scalar_prefetch = 0 : i64, scratch_operands = 0 : i64, tpu.core_type = #tpu.core_type<tc>, window_params = [{transform_indices = @transform_0, window_bounds = array<i64: 128, 128>}, {pipeline_mode = #tpu.pipeline_mode<synchronous>, transform_indices = @transform_1, window_bounds = array<i64: 128, 512>}, {pipeline_mode = #tpu.pipeline_mode<synchronous>, transform_indices = @transform_2, window_bounds = array<i64: 1, 512>}, {pipeline_mode = #tpu.pipeline_mode<synchronous>, transform_indices = @transform_3, window_bounds = array<i64: 512, 256>}, {pipeline_mode = #tpu.pipeline_mode<synchronous>, transform_indices = @transform_4, window_bounds = array<i64: 1, 256>}, {pipeline_mode = #tpu.pipeline_mode<synchronous>, transform_indices = @transform_5, window_bounds = array<i64: 256, 128>}, {pipeline_mode = #tpu.pipeline_mode<synchronous>, transform_indices = @transform_6, window_bounds = array<i64: 1, 128>}, {pipeline_mode = #tpu.pipeline_mode<synchronous>, transform_indices = @transform_7, window_bounds = array<i64: 128, 128>}, {pipeline_mode = #tpu.pipeline_mode<synchronous>, transform_indices = @transform_8, window_bounds = array<i64: 1, 128>}, {pipeline_mode = #tpu.pipeline_mode<synchronous>, transform_indices = @transform_9, window_bounds = array<i64: 128, 128>}, {pipeline_mode = #tpu.pipeline_mode<synchronous>, transform_indices = @transform_10, window_bounds = array<i64: 1, 128>}, {pipeline_mode = #tpu.pipeline_mode<synchronous>, transform_indices = @transform_11, window_bounds = array<i64: 128, 256>}, {pipeline_mode = #tpu.pipeline_mode<synchronous>, transform_indices = @transform_12, window_bounds = array<i64: 1, 256>}, {pipeline_mode = #tpu.pipeline_mode<synchronous>, transform_indices = @transform_13, window_bounds = array<i64: 256, 512>}, {pipeline_mode = #tpu.pipeline_mode<synchronous>, transform_indices = @transform_14, window_bounds = array<i64: 1, 512>}, {pipeline_mode = #tpu.pipeline_mode<synchronous>, transform_indices = @transform_15, window_bounds = array<i64: 512, 128>}, {pipeline_mode = #tpu.pipeline_mode<synchronous>, transform_indices = @transform_16, window_bounds = array<i64: 1, 128>}, {pipeline_mode = #tpu.pipeline_mode<synchronous>, transform_indices = @transform_17, window_bounds = array<i64: 128, 128>}, {pipeline_mode = #tpu.pipeline_mode<synchronous>, transform_indices = @transform_18, window_bounds = array<i64: 1, 128>}, {pipeline_mode = #tpu.pipeline_mode<synchronous>, transform_indices = @transform_19, window_bounds = array<i64: 128, 256>}, {pipeline_mode = #tpu.pipeline_mode<synchronous>, transform_indices = @transform_20, window_bounds = array<i64: 1, 256>}, {pipeline_mode = #tpu.pipeline_mode<synchronous>, transform_indices = @transform_21, window_bounds = array<i64: 256, 512>}, {pipeline_mode = #tpu.pipeline_mode<synchronous>, transform_indices = @transform_22, window_bounds = array<i64: 1, 512>}, {pipeline_mode = #tpu.pipeline_mode<synchronous>, transform_indices = @transform_23, window_bounds = array<i64: 512, 128>}, {pipeline_mode = #tpu.pipeline_mode<synchronous>, transform_indices = @transform_24, window_bounds = array<i64: 1, 128>}, {transform_indices = @transform_25, window_bounds = array<i64: 128, 128>}, {transform_indices = @transform_26, window_bounds = array<i64: 128, 128>}, {transform_indices = @transform_27, window_bounds = array<i64: 128, 128>}]} {
    %c0 = arith.constant 0 : index
    %c0_0 = arith.constant 0 : index
    %0 = vector.load %arg1[%c0, %c0_0] : memref<128x128xf32, #tpu.memory_space<vmem>>, vector<128x128xf32>
    %1 = arith.truncf %0 : vector<128x128xf32> to vector<128x128xbf16>
    %c0_1 = arith.constant 0 : index
    %c0_2 = arith.constant 0 : index
    %2 = vector.load %arg2[%c0_1, %c0_2] : memref<128x512xbf16, #tpu.memory_space<vmem>>, vector<128x512xbf16>
    %cst = arith.constant dense<0.000000e+00> : vector<128x512xf32>
    %3 = tpu.matmul %1, %2, %cst {dimension_numbers = #tpu.dot_dimension_numbers<[1], [0], [0], [1], [0, 0, 1, 1], [], []>} : vector<128x128xbf16>, vector<128x512xbf16>, vector<128x512xf32> -> vector<128x512xf32>
    %c0_3 = arith.constant 0 : index
    %c0_4 = arith.constant 0 : index
    %4 = vector.load %arg3[%c0_3, %c0_4] : memref<1x512xf32, #tpu.memory_space<vmem>>, vector<1x512xf32>
    %5 = vector.broadcast %4 : vector<1x512xf32> to vector<128x512xf32>
    %6 = arith.addf %3, %5 : vector<128x512xf32>
    %cst_5 = arith.constant 0.000000e+00 : f32
    %7 = vector.broadcast %cst_5 : f32 to vector<128x512xf32>
    %8 = arith.maximumf %6, %7 : vector<128x512xf32>
    %9 = arith.truncf %8 : vector<128x512xf32> to vector<128x512xbf16>
    %c0_6 = arith.constant 0 : index
    %c0_7 = arith.constant 0 : index
    %10 = vector.load %arg4[%c0_6, %c0_7] : memref<512x256xbf16, #tpu.memory_space<vmem>>, vector<512x256xbf16>
    %cst_8 = arith.constant dense<0.000000e+00> : vector<128x256xf32>
    %11 = tpu.matmul %9, %10, %cst_8 {dimension_numbers = #tpu.dot_dimension_numbers<[1], [0], [0], [1], [0, 0, 1, 1], [], []>} : vector<128x512xbf16>, vector<512x256xbf16>, vector<128x256xf32> -> vector<128x256xf32>
    %c0_9 = arith.constant 0 : index
    %c0_10 = arith.constant 0 : index
    %12 = vector.load %arg5[%c0_9, %c0_10] : memref<1x256xf32, #tpu.memory_space<vmem>>, vector<1x256xf32>
    %13 = vector.broadcast %12 : vector<1x256xf32> to vector<128x256xf32>
    %14 = arith.addf %11, %13 : vector<128x256xf32>
    %cst_11 = arith.constant 0.000000e+00 : f32
    %15 = vector.broadcast %cst_11 : f32 to vector<128x256xf32>
    %16 = arith.maximumf %14, %15 : vector<128x256xf32>
    %17 = arith.truncf %16 : vector<128x256xf32> to vector<128x256xbf16>
    %c0_12 = arith.constant 0 : index
    %c0_13 = arith.constant 0 : index
    %18 = vector.load %arg6[%c0_12, %c0_13] : memref<256x128xbf16, #tpu.memory_space<vmem>>, vector<256x128xbf16>
    %cst_14 = arith.constant dense<0.000000e+00> : vector<128x128xf32>
    %19 = tpu.matmul %17, %18, %cst_14 {dimension_numbers = #tpu.dot_dimension_numbers<[1], [0], [0], [1], [0, 0, 1, 1], [], []>} : vector<128x256xbf16>, vector<256x128xbf16>, vector<128x128xf32> -> vector<128x128xf32>
    %c0_15 = arith.constant 0 : index
    %c0_16 = arith.constant 0 : index
    %20 = vector.load %arg7[%c0_15, %c0_16] : memref<1x128xf32, #tpu.memory_space<vmem>>, vector<1x128xf32>
    %21 = vector.broadcast %20 : vector<1x128xf32> to vector<128x128xf32>
    %22 = arith.addf %19, %21 : vector<128x128xf32>
    %cst_17 = arith.constant 0.000000e+00 : f32
    %23 = vector.broadcast %cst_17 : f32 to vector<128x128xf32>
    %24 = arith.maximumf %22, %23 : vector<128x128xf32>
    %25 = arith.truncf %24 : vector<128x128xf32> to vector<128x128xbf16>
    %c0_18 = arith.constant 0 : index
    %c0_19 = arith.constant 0 : index
    %26 = vector.load %arg8[%c0_18, %c0_19] : memref<128x128xbf16, #tpu.memory_space<vmem>>, vector<128x128xbf16>
    %cst_20 = arith.constant dense<0.000000e+00> : vector<128x128xf32>
    %27 = tpu.matmul %25, %26, %cst_20 {dimension_numbers = #tpu.dot_dimension_numbers<[1], [0], [0], [1], [0, 0, 1, 1], [], []>} : vector<128x128xbf16>, vector<128x128xbf16>, vector<128x128xf32> -> vector<128x128xf32>
    %c0_21 = arith.constant 0 : index
    %c0_22 = arith.constant 0 : index
    %28 = vector.load %arg9[%c0_21, %c0_22] : memref<1x128xf32, #tpu.memory_space<vmem>>, vector<1x128xf32>
    %29 = vector.broadcast %28 : vector<1x128xf32> to vector<128x128xf32>
    %30 = arith.addf %27, %29 : vector<128x128xf32>
    %c0_23 = arith.constant 0 : index
    %c0_24 = arith.constant 0 : index
    %31 = vector.load %arg26[%c0_23, %c0_24] : memref<128x128xf32, #tpu.memory_space<vmem>>, vector<128x128xf32>
    tpu.vector_store %arg26[%c0_23, %c0_24], %30 {strides = array<i32>} : memref<128x128xf32, #tpu.memory_space<vmem>>, vector<128x128xf32>,
    %32 = arith.truncf %30 : vector<128x128xf32> to vector<128x128xbf16>
    %c0_25 = arith.constant 0 : index
    %c0_26 = arith.constant 0 : index
    %33 = vector.load %arg10[%c0_25, %c0_26] : memref<128x128xbf16, #tpu.memory_space<vmem>>, vector<128x128xbf16>
    %cst_27 = arith.constant dense<0.000000e+00> : vector<128x128xf32>
    %34 = tpu.matmul %32, %33, %cst_27 {dimension_numbers = #tpu.dot_dimension_numbers<[1], [0], [0], [1], [0, 0, 1, 1], [], []>} : vector<128x128xbf16>, vector<128x128xbf16>, vector<128x128xf32> -> vector<128x128xf32>
    %c0_28 = arith.constant 0 : index
    %c0_29 = arith.constant 0 : index
    %35 = vector.load %arg11[%c0_28, %c0_29] : memref<1x128xf32, #tpu.memory_space<vmem>>, vector<1x128xf32>
    %36 = vector.broadcast %35 : vector<1x128xf32> to vector<128x128xf32>
    %37 = arith.addf %34, %36 : vector<128x128xf32>
    %cst_30 = arith.constant 0.000000e+00 : f32
    %38 = vector.broadcast %cst_30 : f32 to vector<128x128xf32>
    %39 = arith.maximumf %37, %38 : vector<128x128xf32>
    %40 = arith.truncf %39 : vector<128x128xf32> to vector<128x128xbf16>
    %c0_31 = arith.constant 0 : index
    %c0_32 = arith.constant 0 : index
    %41 = vector.load %arg12[%c0_31, %c0_32] : memref<128x256xbf16, #tpu.memory_space<vmem>>, vector<128x256xbf16>
    %cst_33 = arith.constant dense<0.000000e+00> : vector<128x256xf32>
    %42 = tpu.matmul %40, %41, %cst_33 {dimension_numbers = #tpu.dot_dimension_numbers<[1], [0], [0], [1], [0, 0, 1, 1], [], []>} : vector<128x128xbf16>, vector<128x256xbf16>, vector<128x256xf32> -> vector<128x256xf32>
    %c0_34 = arith.constant 0 : index
    %c0_35 = arith.constant 0 : index
    %43 = vector.load %arg13[%c0_34, %c0_35] : memref<1x256xf32, #tpu.memory_space<vmem>>, vector<1x256xf32>
    %44 = vector.broadcast %43 : vector<1x256xf32> to vector<128x256xf32>
    %45 = arith.addf %42, %44 : vector<128x256xf32>
    %cst_36 = arith.constant 0.000000e+00 : f32
    %46 = vector.broadcast %cst_36 : f32 to vector<128x256xf32>
    %47 = arith.maximumf %45, %46 : vector<128x256xf32>
    %48 = arith.truncf %47 : vector<128x256xf32> to vector<128x256xbf16>
    %c0_37 = arith.constant 0 : index
    %c0_38 = arith.constant 0 : index
    %49 = vector.load %arg14[%c0_37, %c0_38] : memref<256x512xbf16, #tpu.memory_space<vmem>>, vector<256x512xbf16>
    %cst_39 = arith.constant dense<0.000000e+00> : vector<128x512xf32>
    %50 = tpu.matmul %48, %49, %cst_39 {dimension_numbers = #tpu.dot_dimension_numbers<[1], [0], [0], [1], [0, 0, 1, 1], [], []>} : vector<128x256xbf16>, vector<256x512xbf16>, vector<128x512xf32> -> vector<128x512xf32>
    %c0_40 = arith.constant 0 : index
    %c0_41 = arith.constant 0 : index
    %51 = vector.load %arg15[%c0_40, %c0_41] : memref<1x512xf32, #tpu.memory_space<vmem>>, vector<1x512xf32>
    %52 = vector.broadcast %51 : vector<1x512xf32> to vector<128x512xf32>
    %53 = arith.addf %50, %52 : vector<128x512xf32>
    %cst_42 = arith.constant 0.000000e+00 : f32
    %54 = vector.broadcast %cst_42 : f32 to vector<128x512xf32>
    %55 = arith.maximumf %53, %54 : vector<128x512xf32>
    %56 = arith.truncf %55 : vector<128x512xf32> to vector<128x512xbf16>
    %c0_43 = arith.constant 0 : index
    %c0_44 = arith.constant 0 : index
    %57 = vector.load %arg16[%c0_43, %c0_44] : memref<512x128xbf16, #tpu.memory_space<vmem>>, vector<512x128xbf16>
    %cst_45 = arith.constant dense<0.000000e+00> : vector<128x128xf32>
    %58 = tpu.matmul %56, %57, %cst_45 {dimension_numbers = #tpu.dot_dimension_numbers<[1], [0], [0], [1], [0, 0, 1, 1], [], []>} : vector<128x512xbf16>, vector<512x128xbf16>, vector<128x128xf32> -> vector<128x128xf32>
    %c0_46 = arith.constant 0 : index
    %c0_47 = arith.constant 0 : index
    %59 = vector.load %arg17[%c0_46, %c0_47] : memref<1x128xf32, #tpu.memory_space<vmem>>, vector<1x128xf32>
    %60 = vector.broadcast %59 : vector<1x128xf32> to vector<128x128xf32>
    %61 = arith.addf %58, %60 : vector<128x128xf32>
    %c0_48 = arith.constant 0 : index
    %c0_49 = arith.constant 0 : index
    %62 = vector.load %arg27[%c0_48, %c0_49] : memref<128x128xf32, #tpu.memory_space<vmem>>, vector<128x128xf32>
    tpu.vector_store %arg27[%c0_48, %c0_49], %61 {strides = array<i32>} : memref<128x128xf32, #tpu.memory_space<vmem>>, vector<128x128xf32>,
    %c0_50 = arith.constant 0 : index
    %c0_51 = arith.constant 0 : index
    %63 = vector.load %arg18[%c0_50, %c0_51] : memref<128x128xbf16, #tpu.memory_space<vmem>>, vector<128x128xbf16>
    %cst_52 = arith.constant dense<0.000000e+00> : vector<128x128xf32>
    %64 = tpu.matmul %32, %63, %cst_52 {dimension_numbers = #tpu.dot_dimension_numbers<[1], [0], [0], [1], [0, 0, 1, 1], [], []>} : vector<128x128xbf16>, vector<128x128xbf16>, vector<128x128xf32> -> vector<128x128xf32>
    %c0_53 = arith.constant 0 : index
    %c0_54 = arith.constant 0 : index
    %65 = vector.load %arg19[%c0_53, %c0_54] : memref<1x128xf32, #tpu.memory_space<vmem>>, vector<1x128xf32>
    %66 = vector.broadcast %65 : vector<1x128xf32> to vector<128x128xf32>
    %67 = arith.addf %64, %66 : vector<128x128xf32>
    %cst_55 = arith.constant 0.000000e+00 : f32
    %68 = vector.broadcast %cst_55 : f32 to vector<128x128xf32>
    %69 = arith.maximumf %67, %68 : vector<128x128xf32>
    %70 = arith.truncf %69 : vector<128x128xf32> to vector<128x128xbf16>
    %c0_56 = arith.constant 0 : index
    %c0_57 = arith.constant 0 : index
    %71 = vector.load %arg20[%c0_56, %c0_57] : memref<128x256xbf16, #tpu.memory_space<vmem>>, vector<128x256xbf16>
    %cst_58 = arith.constant dense<0.000000e+00> : vector<128x256xf32>
    %72 = tpu.matmul %70, %71, %cst_58 {dimension_numbers = #tpu.dot_dimension_numbers<[1], [0], [0], [1], [0, 0, 1, 1], [], []>} : vector<128x128xbf16>, vector<128x256xbf16>, vector<128x256xf32> -> vector<128x256xf32>
    %c0_59 = arith.constant 0 : index
    %c0_60 = arith.constant 0 : index
    %73 = vector.load %arg21[%c0_59, %c0_60] : memref<1x256xf32, #tpu.memory_space<vmem>>, vector<1x256xf32>
    %74 = vector.broadcast %73 : vector<1x256xf32> to vector<128x256xf32>
    %75 = arith.addf %72, %74 : vector<128x256xf32>
    %cst_61 = arith.constant 0.000000e+00 : f32
    %76 = vector.broadcast %cst_61 : f32 to vector<128x256xf32>
    %77 = arith.maximumf %75, %76 : vector<128x256xf32>
    %78 = arith.truncf %77 : vector<128x256xf32> to vector<128x256xbf16>
    %c0_62 = arith.constant 0 : index
    %c0_63 = arith.constant 0 : index
    %79 = vector.load %arg22[%c0_62, %c0_63] : memref<256x512xbf16, #tpu.memory_space<vmem>>, vector<256x512xbf16>
    %cst_64 = arith.constant dense<0.000000e+00> : vector<128x512xf32>
    %80 = tpu.matmul %78, %79, %cst_64 {dimension_numbers = #tpu.dot_dimension_numbers<[1], [0], [0], [1], [0, 0, 1, 1], [], []>} : vector<128x256xbf16>, vector<256x512xbf16>, vector<128x512xf32> -> vector<128x512xf32>
    %c0_65 = arith.constant 0 : index
    %c0_66 = arith.constant 0 : index
    %81 = vector.load %arg23[%c0_65, %c0_66] : memref<1x512xf32, #tpu.memory_space<vmem>>, vector<1x512xf32>
    %82 = vector.broadcast %81 : vector<1x512xf32> to vector<128x512xf32>
    %83 = arith.addf %80, %82 : vector<128x512xf32>
    %cst_67 = arith.constant 0.000000e+00 : f32
    %84 = vector.broadcast %cst_67 : f32 to vector<128x512xf32>
    %85 = arith.maximumf %83, %84 : vector<128x512xf32>
    %86 = arith.truncf %85 : vector<128x512xf32> to vector<128x512xbf16>
    %c0_68 = arith.constant 0 : index
    %c0_69 = arith.constant 0 : index
    %87 = vector.load %arg24[%c0_68, %c0_69] : memref<512x128xbf16, #tpu.memory_space<vmem>>, vector<512x128xbf16>
    %cst_70 = arith.constant dense<0.000000e+00> : vector<128x128xf32>
    %88 = tpu.matmul %86, %87, %cst_70 {dimension_numbers = #tpu.dot_dimension_numbers<[1], [0], [0], [1], [0, 0, 1, 1], [], []>} : vector<128x512xbf16>, vector<512x128xbf16>, vector<128x128xf32> -> vector<128x128xf32>
    %c0_71 = arith.constant 0 : index
    %c0_72 = arith.constant 0 : index
    %89 = vector.load %arg25[%c0_71, %c0_72] : memref<1x128xf32, #tpu.memory_space<vmem>>, vector<1x128xf32>
    %90 = vector.broadcast %89 : vector<1x128xf32> to vector<128x128xf32>
    %91 = arith.addf %88, %90 : vector<128x128xf32>
    %c0_73 = arith.constant 0 : index
    %c0_74 = arith.constant 0 : index
    %92 = vector.load %arg28[%c0_73, %c0_74] : memref<128x128xf32, #tpu.memory_space<vmem>>, vector<128x128xf32>
    tpu.vector_store %arg28[%c0_73, %c0_74], %91 {strides = array<i32>} : memref<128x128xf32, #tpu.memory_space<vmem>>, vector<128x128xf32>,
    return
  }
  func.func @transform_0(%arg0: i32) -> (i32, i32) {
    %c0_i32 = arith.constant 0 : i32
    %c0_i32_0 = arith.constant 0 : i32
    return %arg0, %c0_i32 : i32, i32
  }
  func.func @transform_1(%arg0: i32) -> (i32, i32) {
    %c0_i32 = arith.constant 0 : i32
    %c0_i32_0 = arith.constant 0 : i32
    %c0_i32_1 = arith.constant 0 : i32
    return %c0_i32, %c0_i32_0 : i32, i32
  }
  func.func @transform_2(%arg0: i32) -> (i32, i32) {
    %c0_i32 = arith.constant 0 : i32
    %c0_i32_0 = arith.constant 0 : i32
    %c0_i32_1 = arith.constant 0 : i32
    return %c0_i32, %c0_i32_0 : i32, i32
  }
  func.func @transform_3(%arg0: i32) -> (i32, i32) {
    %c0_i32 = arith.constant 0 : i32
    %c0_i32_0 = arith.constant 0 : i32
    %c0_i32_1 = arith.constant 0 : i32
    return %c0_i32, %c0_i32_0 : i32, i32
  }
  func.func @transform_4(%arg0: i32) -> (i32, i32) {
    %c0_i32 = arith.constant 0 : i32
    %c0_i32_0 = arith.constant 0 : i32
    %c0_i32_1 = arith.constant 0 : i32
    return %c0_i32, %c0_i32_0 : i32, i32
  }
  func.func @transform_5(%arg0: i32) -> (i32, i32) {
    %c0_i32 = arith.constant 0 : i32
    %c0_i32_0 = arith.constant 0 : i32
    %c0_i32_1 = arith.constant 0 : i32
    return %c0_i32, %c0_i32_0 : i32, i32
  }
  func.func @transform_6(%arg0: i32) -> (i32, i32) {
    %c0_i32 = arith.constant 0 : i32
    %c0_i32_0 = arith.constant 0 : i32
    %c0_i32_1 = arith.constant 0 : i32
    return %c0_i32, %c0_i32_0 : i32, i32
  }
  func.func @transform_7(%arg0: i32) -> (i32, i32) {
    %c0_i32 = arith.constant 0 : i32
    %c0_i32_0 = arith.constant 0 : i32
    %c0_i32_1 = arith.constant 0 : i32
    return %c0_i32, %c0_i32_0 : i32, i32
  }
  func.func @transform_8(%arg0: i32) -> (i32, i32) {
    %c0_i32 = arith.constant 0 : i32
    %c0_i32_0 = arith.constant 0 : i32
    %c0_i32_1 = arith.constant 0 : i32
    return %c0_i32, %c0_i32_0 : i32, i32
  }
  func.func @transform_9(%arg0: i32) -> (i32, i32) {
    %c0_i32 = arith.constant 0 : i32
    %c0_i32_0 = arith.constant 0 : i32
    %c0_i32_1 = arith.constant 0 : i32
    return %c0_i32, %c0_i32_0 : i32, i32
  }
  func.func @transform_10(%arg0: i32) -> (i32, i32) {
    %c0_i32 = arith.constant 0 : i32
    %c0_i32_0 = arith.constant 0 : i32
    %c0_i32_1 = arith.constant 0 : i32
    return %c0_i32, %c0_i32_0 : i32, i32
  }
  func.func @transform_11(%arg0: i32) -> (i32, i32) {
    %c0_i32 = arith.constant 0 : i32
    %c0_i32_0 = arith.constant 0 : i32
    %c0_i32_1 = arith.constant 0 : i32
    return %c0_i32, %c0_i32_0 : i32, i32
  }
  func.func @transform_12(%arg0: i32) -> (i32, i32) {
    %c0_i32 = arith.constant 0 : i32
    %c0_i32_0 = arith.constant 0 : i32
    %c0_i32_1 = arith.constant 0 : i32
    return %c0_i32, %c0_i32_0 : i32, i32
  }
  func.func @transform_13(%arg0: i32) -> (i32, i32) {
    %c0_i32 = arith.constant 0 : i32
    %c0_i32_0 = arith.constant 0 : i32
    %c0_i32_1 = arith.constant 0 : i32
    return %c0_i32, %c0_i32_0 : i32, i32
  }
  func.func @transform_14(%arg0: i32) -> (i32, i32) {
    %c0_i32 = arith.constant 0 : i32
    %c0_i32_0 = arith.constant 0 : i32
    %c0_i32_1 = arith.constant 0 : i32
    return %c0_i32, %c0_i32_0 : i32, i32
  }
  func.func @transform_15(%arg0: i32) -> (i32, i32) {
    %c0_i32 = arith.constant 0 : i32
    %c0_i32_0 = arith.constant 0 : i32
    %c0_i32_1 = arith.constant 0 : i32
    return %c0_i32, %c0_i32_0 : i32, i32
  }
  func.func @transform_16(%arg0: i32) -> (i32, i32) {
    %c0_i32 = arith.constant 0 : i32
    %c0_i32_0 = arith.constant 0 : i32
    %c0_i32_1 = arith.constant 0 : i32
    return %c0_i32, %c0_i32_0 : i32, i32
  }
  func.func @transform_17(%arg0: i32) -> (i32, i32) {
    %c0_i32 = arith.constant 0 : i32
    %c0_i32_0 = arith.constant 0 : i32
    %c0_i32_1 = arith.constant 0 : i32
    return %c0_i32, %c0_i32_0 : i32, i32
  }
  func.func @transform_18(%arg0: i32) -> (i32, i32) {
    %c0_i32 = arith.constant 0 : i32
    %c0_i32_0 = arith.constant 0 : i32
    %c0_i32_1 = arith.constant 0 : i32
    return %c0_i32, %c0_i32_0 : i32, i32
  }
  func.func @transform_19(%arg0: i32) -> (i32, i32) {
    %c0_i32 = arith.constant 0 : i32
    %c0_i32_0 = arith.constant 0 : i32
    %c0_i32_1 = arith.constant 0 : i32
    return %c0_i32, %c0_i32_0 : i32, i32
  }
  func.func @transform_20(%arg0: i32) -> (i32, i32) {
    %c0_i32 = arith.constant 0 : i32
    %c0_i32_0 = arith.constant 0 : i32
    %c0_i32_1 = arith.constant 0 : i32
    return %c0_i32, %c0_i32_0 : i32, i32
  }
  func.func @transform_21(%arg0: i32) -> (i32, i32) {
    %c0_i32 = arith.constant 0 : i32
    %c0_i32_0 = arith.constant 0 : i32
    %c0_i32_1 = arith.constant 0 : i32
    return %c0_i32, %c0_i32_0 : i32, i32
  }
  func.func @transform_22(%arg0: i32) -> (i32, i32) {
    %c0_i32 = arith.constant 0 : i32
    %c0_i32_0 = arith.constant 0 : i32
    %c0_i32_1 = arith.constant 0 : i32
    return %c0_i32, %c0_i32_0 : i32, i32
  }
  func.func @transform_23(%arg0: i32) -> (i32, i32) {
    %c0_i32 = arith.constant 0 : i32
    %c0_i32_0 = arith.constant 0 : i32
    %c0_i32_1 = arith.constant 0 : i32
    return %c0_i32, %c0_i32_0 : i32, i32
  }
  func.func @transform_24(%arg0: i32) -> (i32, i32) {
    %c0_i32 = arith.constant 0 : i32
    %c0_i32_0 = arith.constant 0 : i32
    %c0_i32_1 = arith.constant 0 : i32
    return %c0_i32, %c0_i32_0 : i32, i32
  }
  func.func @transform_25(%arg0: i32) -> (i32, i32) {
    %c0_i32 = arith.constant 0 : i32
    %c0_i32_0 = arith.constant 0 : i32
    return %arg0, %c0_i32 : i32, i32
  }
  func.func @transform_26(%arg0: i32) -> (i32, i32) {
    %c0_i32 = arith.constant 0 : i32
    %c0_i32_0 = arith.constant 0 : i32
    return %arg0, %c0_i32 : i32, i32
  }
  func.func @transform_27(%arg0: i32) -> (i32, i32) {
    %c0_i32 = arith.constant 0 : i32
    %c0_i32_0 = arith.constant 0 : i32
    return %arg0, %c0_i32 : i32, i32
  }
}

</mosaic_0001>

<llo_original>
// kernel: tpu_custom_call.1
$region0: #{tpu_custom_call.1}
  #allocation0 [shape = 'u32[]', space=smem, size = 0x4, offset = 0x4, fixed_abs, tag = 'smem constant byte address 0x4 - core index']
  #allocation1 [shape = 'u32[144,128]{1,0:T(1,128)}', space=vmem, size = 0x12000, scoped, tag = 'internal scratch']
  %s0 = inlined_call_operand.hbm [shape: f32[128,128], index: 0, kind: input, shape index: {}]
  %s1 = inlined_call_operand.hbm [shape: bf16[128,512], index: 1, kind: input, shape index: {}]
  %s2 = inlined_call_operand.hbm [shape: f32[1,512], index: 2, kind: input, shape index: {}]
  %s3 = inlined_call_operand.hbm [shape: bf16[512,256], index: 3, kind: input, shape index: {}]
  %s4 = inlined_call_operand.hbm [shape: f32[1,256], index: 4, kind: input, shape index: {}]
  %s5 = inlined_call_operand.hbm [shape: bf16[256,128], index: 5, kind: input, shape index: {}]
  %s6 = inlined_call_operand.hbm [shape: f32[1,128], index: 6, kind: input, shape index: {}]
  %s7 = inlined_call_operand.hbm [shape: bf16[128,128], index: 7, kind: input, shape index: {}]
  %s8 = inlined_call_operand.hbm [shape: f32[1,128], index: 8, kind: input, shape index: {}]
  %s9 = inlined_call_operand.hbm [shape: bf16[128,128], index: 9, kind: input, shape index: {}]
  %s10 = inlined_call_operand.hbm [shape: f32[1,128], index: 10, kind: input, shape index: {}]
  %s11 = inlined_call_operand.hbm [shape: bf16[128,256], index: 11, kind: input, shape index: {}]
  %s12 = inlined_call_operand.hbm [shape: f32[1,256], index: 12, kind: input, shape index: {}]
  %s13 = inlined_call_operand.hbm [shape: bf16[256,512], index: 13, kind: input, shape index: {}]
  %s14 = inlined_call_operand.hbm [shape: f32[1,512], index: 14, kind: input, shape index: {}]
  %s15 = inlined_call_operand.hbm [shape: bf16[512,128], index: 15, kind: input, shape index: {}]
  %s16 = inlined_call_operand.hbm [shape: f32[1,128], index: 16, kind: input, shape index: {}]
  %s17 = inlined_call_operand.vmem [shape: bf16[128,128], index: 17, kind: input, shape index: {}]
  %s18 = inlined_call_operand.hbm [shape: f32[1,128], index: 18, kind: input, shape index: {}]
  %s19 = inlined_call_operand.hbm [shape: bf16[128,256], index: 19, kind: input, shape index: {}]
  %s20 = inlined_call_operand.vmem [shape: f32[1,256], index: 20, kind: input, shape index: {}]
  %s21 = inlined_call_operand.hbm [shape: bf16[256,512], index: 21, kind: input, shape index: {}]
  %s22 = inlined_call_operand.vmem [shape: f32[1,512], index: 22, kind: input, shape index: {}]
  %s23 = inlined_call_operand.hbm [shape: bf16[512,128], index: 23, kind: input, shape index: {}]
  %s24 = inlined_call_operand.vmem [shape: f32[1,128], index: 24, kind: input, shape index: {}]
  %s25 = inlined_call_operand.hbm [shape: f32[128,128], index: 25, kind: output, shape index: {0}]
  %s26 = inlined_call_operand.hbm [shape: f32[128,128], index: 26, kind: output, shape index: {1}]
  %s27 = inlined_call_operand.hbm [shape: f32[128,128], index: 27, kind: output, shape index: {2}]
  %28 = xla_tuple %s25, %s26, %s27
  %s29 = sld [smem:[#allocation0]]
  $region210: #{tpu_custom_call.1} parent=0
    _
  %s31 = ssub.s32 1, %s29
  %s32 = scalar_select 0, %s31, %s29
  $region1: #{tpu_custom_call.1} parent=0
    #allocation2 [shape = 'u8[65536]{0}', space=vmem, size = 0x10000, scoped, tag = 'input window, operand 0, single buffered']
    #allocation3 [shape = 's32[1]{0}', space=sflag, size = 0x4, scoped, tag = 'scoped memory for tpu_custom_call.1']
    #allocation4 [shape = 's32[1]{0}', space=sflag, size = 0x4, scoped, tag = 'scoped memory for tpu_custom_call.1']
    #allocation5 [shape = 'u8[131072]{0}', space=vmem, size = 0x20000, scoped, tag = 'input window, operand 1, single buffered']
    #allocation6 [shape = 's32[1]{0}', space=sflag, size = 0x4, scoped, tag = 'scoped memory for tpu_custom_call.1']
    #allocation7 [shape = 'u8[2048]{0}', space=vmem, size = 0x800, scoped, tag = 'input window, operand 2, single buffered']
    #allocation8 [shape = 'u8[262144]{0}', space=vmem, size = 0x40000, scoped, tag = 'input window, operand 3, single buffered']
    #allocation9 [shape = 's32[1]{0}', space=sflag, size = 0x4, scoped, tag = 'scoped memory for tpu_custom_call.1']
    #allocation10 [shape = 'u8[1024]{0}', space=vmem, size = 0x400, scoped, tag = 'input window, operand 4, single buffered']
    #allocation11 [shape = 'u8[65536]{0}', space=vmem, size = 0x10000, scoped, tag = 'input window, operand 5, single buffered']
    #allocation12 [shape = 's32[1]{0}', space=sflag, size = 0x4, scoped, tag = 'scoped memory for tpu_custom_call.1']
    #allocation13 [shape = 'u8[512]{0}', space=vmem, size = 0x400, scoped, tag = 'input window, operand 6, single buffered']
    #allocation14 [shape = 'u8[32768]{0}', space=vmem, size = 0x8000, scoped, tag = 'input window, operand 7, single buffered']
    #allocation15 [shape = 's32[1]{0}', space=sflag, size = 0x4, scoped, tag = 'scoped memory for tpu_custom_call.1']
    #allocation16 [shape = 'u8[512]{0}', space=vmem, size = 0x400, scoped, tag = 'input window, operand 8, single buffered']
    #allocation17 [shape = 'u8[32768]{0}', space=vmem, size = 0x8000, scoped, tag = 'input window, operand 9, single buffered']
    #allocation18 [shape = 's32[1]{0}', space=sflag, size = 0x4, scoped, tag = 'scoped memory for tpu_custom_call.1']
    #allocation19 [shape = 'u8[512]{0}', space=vmem, size = 0x400, scoped, tag = 'input window, operand 10, single buffered']
    #allocation20 [shape = 'u8[65536]{0}', space=vmem, size = 0x10000, scoped, tag = 'input window, operand 11, single buffered']
    #allocation21 [shape = 's32[1]{0}', space=sflag, size = 0x4, scoped, tag = 'scoped memory for tpu_custom_call.1']
    #allocation22 [shape = 'u8[1024]{0}', space=vmem, size = 0x400, scoped, tag = 'input window, operand 12, single buffered']
    #allocation23 [shape = 'u8[262144]{0}', space=vmem, size = 0x40000, scoped, tag = 'input window, operand 13, single buffered']
    #allocation24 [shape = 's32[1]{0}', space=sflag, size = 0x4, scoped, tag = 'scoped memory for tpu_custom_call.1']
    #allocation25 [shape = 'u8[2048]{0}', space=vmem, size = 0x800, scoped, tag = 'input window, operand 14, single buffered']
    #allocation26 [shape = 'u8[131072]{0}', space=vmem, size = 0x20000, scoped, tag = 'input window, operand 15, single buffered']
    #allocation27 [shape = 's32[1]{0}', space=sflag, size = 0x4, scoped, tag = 'scoped memory for tpu_custom_call.1']
    #allocation28 [shape = 'u8[512]{0}', space=vmem, size = 0x400, scoped, tag = 'input window, operand 16, single buffered']
    #allocation29 [shape = 'u8[512]{0}', space=vmem, size = 0x400, scoped, tag = 'input window, operand 18, single buffered']
    #allocation30 [shape = 's32[1]{0}', space=sflag, size = 0x4, scoped, tag = 'scoped memory for tpu_custom_call.1']
    #allocation31 [shape = 'u8[65536]{0}', space=vmem, size = 0x10000, scoped, tag = 'input window, operand 19, single buffered']
    #allocation32 [shape = 'u8[262144]{0}', space=vmem, size = 0x40000, scoped, tag = 'input window, operand 21, single buffered']
    #allocation33 [shape = 's32[1]{0}', space=sflag, size = 0x4, scoped, tag = 'scoped memory for tpu_custom_call.1']
    #allocation34 [shape = 'u8[131072]{0}', space=vmem, size = 0x20000, scoped, tag = 'input window, operand 23, single buffered']
    #allocation35 [shape = 'u8[65536]{0}', space=vmem, size = 0x10000, scoped, tag = 'output window, operand 0, single buffered']
    #allocation36 [shape = 'u8[65536]{0}', space=vmem, size = 0x10000, scoped, tag = 'output window, operand 1, single buffered']
    #allocation37 [shape = 's32[1]{0}', space=sflag, size = 0x4, scoped, tag = 'scoped memory for tpu_custom_call.1']
    #allocation38 [shape = 'u8[65536]{0}', space=vmem, size = 0x10000, scoped, tag = 'output window, operand 2, single buffered']
    %33 = vsyncpa [#allocation3], 0
    %34 = vsyncpa [#allocation6], 0
    %35 = vsyncpa [#allocation9], 0
    %36 = vsyncpa [#allocation12], 0
    %37 = vsyncpa [#allocation15], 0
    %38 = vsyncpa [#allocation18], 0
    %39 = vsyncpa [#allocation21], 0
    %40 = vsyncpa [#allocation24], 0
    %41 = vsyncpa [#allocation27], 0
    %42 = vsyncpa [#allocation30], 0
    %43 = vsyncpa [#allocation33], 0
    %44 = vsyncpa [#allocation4], 0
    %45 = vsyncpa [#allocation37], 0
    // Predicated region
    $region2: #{tpu_custom_call.1} parent=1 // pred_check
      _
    $region3: #{tpu_custom_call.1} parent=1 // pred_check_branch
      %47 = sbr.rel (0) target = $region5
    $region4: #{tpu_custom_call.1} parent=1 // pred_region
      %s49 = ssub.s32 2048, 2048
      %50 = vsyncadd [#allocation3], %s49
      %s51 = sshll.u32 [#allocation2], 4
      %s52 = int_to_ptr.vmem [resolvable:$true] %s51
      %57 = dma.hbm_to_vmem [thread:$0]  %s0, 2048, %s52, [#allocation3], 128, 128, 8
    $region5: #{tpu_custom_call.1} parent=1 // pred_fallthru
      _
    // Predicated region
    $region6: #{tpu_custom_call.1} parent=1 // pred_check
      _
    $region7: #{tpu_custom_call.1} parent=1 // pred_check_branch
      %59 = sbr.rel (0) target = $region9
    $region8: #{tpu_custom_call.1} parent=1 // pred_region
      %s61 = ssub.s32 4096, 4096
      %62 = vsyncadd [#allocation6], %s61
      %s63 = sshll.u32 [#allocation5], 4
      %s64 = int_to_ptr.vmem [resolvable:$true] %s63
      %69 = dma.hbm_to_vmem [thread:$0]  %s1, 4096, %s64, [#allocation6], 256, 256, 16
    $region9: #{tpu_custom_call.1} parent=1 // pred_fallthru
      _
    // Predicated region
    $region10: #{tpu_custom_call.1} parent=1 // pred_check
      _
    $region11: #{tpu_custom_call.1} parent=1 // pred_check_branch
      %71 = sbr.rel (0) target = $region13
    $region12: #{tpu_custom_call.1} parent=1 // pred_region
      %s73 = ssub.s32 64, 64
      %74 = vsyncadd [#allocation6], %s73
      %s76 = sshll.u32 [#allocation7], 4
      %s77 = int_to_ptr.vmem [resolvable:$true] %s76
      %79 = dma.hbm_to_vmem [thread:$0]  %s2, 64, %s77, [#allocation6]
    $region13: #{tpu_custom_call.1} parent=1 // pred_fallthru
      _
    // Predicated region
    $region14: #{tpu_custom_call.1} parent=1 // pred_check
      _
    $region15: #{tpu_custom_call.1} parent=1 // pred_check_branch
      %81 = sbr.rel (0) target = $region17
    $region16: #{tpu_custom_call.1} parent=1 // pred_region
      %s83 = ssub.s32 8192, 8192
      %84 = vsyncadd [#allocation9], %s83
      %s85 = sshll.u32 [#allocation8], 4
      %s86 = int_to_ptr.vmem [resolvable:$true] %s85
      %91 = dma.hbm_to_vmem [thread:$0]  %s3, 8192, %s86, [#allocation9], 128, 128, 8
    $region17: #{tpu_custom_call.1} parent=1 // pred_fallthru
      _
    // Predicated region
    $region18: #{tpu_custom_call.1} parent=1 // pred_check
      _
    $region19: #{tpu_custom_call.1} parent=1 // pred_check_branch
      %93 = sbr.rel (0) target = $region21
    $region20: #{tpu_custom_call.1} parent=1 // pred_region
      %s95 = ssub.s32 32, 32
      %96 = vsyncadd [#allocation9], %s95
      %s98 = sshll.u32 [#allocation10], 4
      %s99 = int_to_ptr.vmem [resolvable:$true] %s98
      %101 = dma.hbm_to_vmem [thread:$0]  %s4, 32, %s99, [#allocation9]
    $region21: #{tpu_custom_call.1} parent=1 // pred_fallthru
      _
    // Predicated region
    $region22: #{tpu_custom_call.1} parent=1 // pred_check
      _
    $region23: #{tpu_custom_call.1} parent=1 // pred_check_branch
      %103 = sbr.rel (0) target = $region25
    $region24: #{tpu_custom_call.1} parent=1 // pred_region
      %s105 = ssub.s32 2048, 2048
      %106 = vsyncadd [#allocation12], %s105
      %s107 = sshll.u32 [#allocation11], 4
      %s108 = int_to_ptr.vmem [resolvable:$true] %s107
      %113 = dma.hbm_to_vmem [thread:$0]  %s5, 2048, %s108, [#allocation12], 64, 64, 4
    $region25: #{tpu_custom_call.1} parent=1 // pred_fallthru
      _
    // Predicated region
    $region26: #{tpu_custom_call.1} parent=1 // pred_check
      _
    $region27: #{tpu_custom_call.1} parent=1 // pred_check_branch
      %115 = sbr.rel (0) target = $region29
    $region28: #{tpu_custom_call.1} parent=1 // pred_region
      %s117 = ssub.s32 16, 16
      %118 = vsyncadd [#allocation12], %s117
      %s120 = sshll.u32 [#allocation13], 4
      %s121 = int_to_ptr.vmem [resolvable:$true] %s120
      %123 = dma.hbm_to_vmem [thread:$0]  %s6, 16, %s121, [#allocation12]
    $region29: #{tpu_custom_call.1} parent=1 // pred_fallthru
      _
    // Predicated region
    $region30: #{tpu_custom_call.1} parent=1 // pred_check
      _
    $region31: #{tpu_custom_call.1} parent=1 // pred_check_branch
      %125 = sbr.rel (0) target = $region33
    $region32: #{tpu_custom_call.1} parent=1 // pred_region
      %s127 = ssub.s32 1024, 1024
      %128 = vsyncadd [#allocation15], %s127
      %s129 = sshll.u32 [#allocation14], 4
      %s130 = int_to_ptr.vmem [resolvable:$true] %s129
      %135 = dma.hbm_to_vmem [thread:$0]  %s7, 1024, %s130, [#allocation15], 64, 64, 4
    $region33: #{tpu_custom_call.1} parent=1 // pred_fallthru
      _
    // Predicated region
    $region34: #{tpu_custom_call.1} parent=1 // pred_check
      _
    $region35: #{tpu_custom_call.1} parent=1 // pred_check_branch
      %137 = sbr.rel (0) target = $region37
    $region36: #{tpu_custom_call.1} parent=1 // pred_region
      %s139 = ssub.s32 16, 16
      %140 = vsyncadd [#allocation15], %s139
      %s142 = sshll.u32 [#allocation16], 4
      %s143 = int_to_ptr.vmem [resolvable:$true] %s142
      %145 = dma.hbm_to_vmem [thread:$0]  %s8, 16, %s143, [#allocation15]
    $region37: #{tpu_custom_call.1} parent=1 // pred_fallthru
      _
    // Predicated region
    $region38: #{tpu_custom_call.1} parent=1 // pred_check
      _
    $region39: #{tpu_custom_call.1} parent=1 // pred_check_branch
      %147 = sbr.rel (0) target = $region41
    $region40: #{tpu_custom_call.1} parent=1 // pred_region
      %s149 = ssub.s32 1024, 1024
      %150 = vsyncadd [#allocation18], %s149
      %s151 = sshll.u32 [#allocation17], 4
      %s152 = int_to_ptr.vmem [resolvable:$true] %s151
      %157 = dma.hbm_to_vmem [thread:$0]  %s9, 1024, %s152, [#allocation18], 64, 64, 4
    $region41: #{tpu_custom_call.1} parent=1 // pred_fallthru
      _
    // Predicated region
    $region42: #{tpu_custom_call.1} parent=1 // pred_check
      _
    $region43: #{tpu_custom_call.1} parent=1 // pred_check_branch
      %159 = sbr.rel (0) target = $region45
    $region44: #{tpu_custom_call.1} parent=1 // pred_region
      %s161 = ssub.s32 16, 16
      %162 = vsyncadd [#allocation18], %s161
      %s164 = sshll.u32 [#allocation19], 4
      %s165 = int_to_ptr.vmem [resolvable:$true] %s164
      %167 = dma.hbm_to_vmem [thread:$0]  %s10, 16, %s165, [#allocation18]
    $region45: #{tpu_custom_call.1} parent=1 // pred_fallthru
      _
    // Predicated region
    $region46: #{tpu_custom_call.1} parent=1 // pred_check
      _
    $region47: #{tpu_custom_call.1} parent=1 // pred_check_branch
      %169 = sbr.rel (0) target = $region49
    $region48: #{tpu_custom_call.1} parent=1 // pred_region
      %s171 = ssub.s32 2048, 2048
      %172 = vsyncadd [#allocation21], %s171
      %s173 = sshll.u32 [#allocation20], 4
      %s174 = int_to_ptr.vmem [resolvable:$true] %s173
      %179 = dma.hbm_to_vmem [thread:$0]  %s11, 2048, %s174, [#allocation21], 128, 128, 8
    $region49: #{tpu_custom_call.1} parent=1 // pred_fallthru
      _
    // Predicated region
    $region50: #{tpu_custom_call.1} parent=1 // pred_check
      _
    $region51: #{tpu_custom_call.1} parent=1 // pred_check_branch
      %181 = sbr.rel (0) target = $region53
    $region52: #{tpu_custom_call.1} parent=1 // pred_region
      %s183 = ssub.s32 32, 32
      %184 = vsyncadd [#allocation21], %s183
      %s186 = sshll.u32 [#allocation22], 4
      %s187 = int_to_ptr.vmem [resolvable:$true] %s186
      %189 = dma.hbm_to_vmem [thread:$0]  %s12, 32, %s187, [#allocation21]
    $region53: #{tpu_custom_call.1} parent=1 // pred_fallthru
      _
    // Predicated region
    $region54: #{tpu_custom_call.1} parent=1 // pred_check
      _
    $region55: #{tpu_custom_call.1} parent=1 // pred_check_branch
      %191 = sbr.rel (0) target = $region57
    $region56: #{tpu_custom_call.1} parent=1 // pred_region
      %s193 = ssub.s32 8192, 8192
      %194 = vsyncadd [#allocation24], %s193
      %s195 = sshll.u32 [#allocation23], 4
      %s196 = int_to_ptr.vmem [resolvable:$true] %s195
      %201 = dma.hbm_to_vmem [thread:$0]  %s13, 8192, %s196, [#allocation24], 256, 256, 16
    $region57: #{tpu_custom_call.1} parent=1 // pred_fallthru
      _
    // Predicated region
    $region58: #{tpu_custom_call.1} parent=1 // pred_check
      _
    $region59: #{tpu_custom_call.1} parent=1 // pred_check_branch
      %203 = sbr.rel (0) target = $region61
    $region60: #{tpu_custom_call.1} parent=1 // pred_region
      %s205 = ssub.s32 64, 64
      %206 = vsyncadd [#allocation24], %s205
      %s208 = sshll.u32 [#allocation25], 4
      %s209 = int_to_ptr.vmem [resolvable:$true] %s208
      %211 = dma.hbm_to_vmem [thread:$0]  %s14, 64, %s209, [#allocation24]
    $region61: #{tpu_custom_call.1} parent=1 // pred_fallthru
      _
    // Predicated region
    $region62: #{tpu_custom_call.1} parent=1 // pred_check
      _
    $region63: #{tpu_custom_call.1} parent=1 // pred_check_branch
      %213 = sbr.rel (0) target = $region65
    $region64: #{tpu_custom_call.1} parent=1 // pred_region
      %s215 = ssub.s32 4096, 4096
      %216 = vsyncadd [#allocation27], %s215
      %s217 = sshll.u32 [#allocation26], 4
      %s218 = int_to_ptr.vmem [resolvable:$true] %s217
      %223 = dma.hbm_to_vmem [thread:$0]  %s15, 4096, %s218, [#allocation27], 64, 64, 4
    $region65: #{tpu_custom_call.1} parent=1 // pred_fallthru
      _
    // Predicated region
    $region66: #{tpu_custom_call.1} parent=1 // pred_check
      _
    $region67: #{tpu_custom_call.1} parent=1 // pred_check_branch
      %225 = sbr.rel (0) target = $region69
    $region68: #{tpu_custom_call.1} parent=1 // pred_region
      %s227 = ssub.s32 16, 16
      %228 = vsyncadd [#allocation27], %s227
      %s230 = sshll.u32 [#allocation28], 4
      %s231 = int_to_ptr.vmem [resolvable:$true] %s230
      %233 = dma.hbm_to_vmem [thread:$0]  %s16, 16, %s231, [#allocation27]
    $region69: #{tpu_custom_call.1} parent=1 // pred_fallthru
      _
    // Predicated region
    $region70: #{tpu_custom_call.1} parent=1 // pred_check
      _
    $region71: #{tpu_custom_call.1} parent=1 // pred_check_branch
      %235 = sbr.rel (0) target = $region73
    $region72: #{tpu_custom_call.1} parent=1 // pred_region
      _
    $region73: #{tpu_custom_call.1} parent=1 // pred_fallthru
      _
    // Predicated region
    $region74: #{tpu_custom_call.1} parent=1 // pred_check
      _
    $region75: #{tpu_custom_call.1} parent=1 // pred_check_branch
      %237 = sbr.rel (0) target = $region77
    $region76: #{tpu_custom_call.1} parent=1 // pred_region
      %s239 = ssub.s32 16, 16
      %240 = vsyncadd [#allocation30], %s239
      %s242 = sshll.u32 [#allocation29], 4
      %s243 = int_to_ptr.vmem [resolvable:$true] %s242
      %245 = dma.hbm_to_vmem [thread:$0]  %s18, 16, %s243, [#allocation30]
    $region77: #{tpu_custom_call.1} parent=1 // pred_fallthru
      _
    // Predicated region
    $region78: #{tpu_custom_call.1} parent=1 // pred_check
      _
    $region79: #{tpu_custom_call.1} parent=1 // pred_check_branch
      %247 = sbr.rel (0) target = $region81
    $region80: #{tpu_custom_call.1} parent=1 // pred_region
      %s249 = ssub.s32 2048, 2048
      %250 = vsyncadd [#allocation30], %s249
      %s251 = sshll.u32 [#allocation31], 4
      %s252 = int_to_ptr.vmem [resolvable:$true] %s251
      %257 = dma.hbm_to_vmem [thread:$0]  %s19, 2048, %s252, [#allocation30], 128, 128, 8
    $region81: #{tpu_custom_call.1} parent=1 // pred_fallthru
      _
    // Predicated region
    $region82: #{tpu_custom_call.1} parent=1 // pred_check
      _
    $region83: #{tpu_custom_call.1} parent=1 // pred_check_branch
      %259 = sbr.rel (0) target = $region85
    $region84: #{tpu_custom_call.1} parent=1 // pred_region
      _
    $region85: #{tpu_custom_call.1} parent=1 // pred_fallthru
      _
    // Predicated region
    $region86: #{tpu_custom_call.1} parent=1 // pred_check
      _
    $region87: #{tpu_custom_call.1} parent=1 // pred_check_branch
      %261 = sbr.rel (0) target = $region89
    $region88: #{tpu_custom_call.1} parent=1 // pred_region
      %s263 = ssub.s32 8192, 8192
      %264 = vsyncadd [#allocation33], %s263
      %s265 = sshll.u32 [#allocation32], 4
      %s266 = int_to_ptr.vmem [resolvable:$true] %s265
      %271 = dma.hbm_to_vmem [thread:$0]  %s21, 8192, %s266, [#allocation33], 256, 256, 16
    $region89: #{tpu_custom_call.1} parent=1 // pred_fallthru
      _
    // Predicated region
    $region90: #{tpu_custom_call.1} parent=1 // pred_check
      _
    $region91: #{tpu_custom_call.1} parent=1 // pred_check_branch
      %273 = sbr.rel (0) target = $region93
    $region92: #{tpu_custom_call.1} parent=1 // pred_region
      _
    $region93: #{tpu_custom_call.1} parent=1 // pred_fallthru
      _
    // Predicated region
    $region94: #{tpu_custom_call.1} parent=1 // pred_check
      _
    $region95: #{tpu_custom_call.1} parent=1 // pred_check_branch
      %275 = sbr.rel (0) target = $region97
    $region96: #{tpu_custom_call.1} parent=1 // pred_region
      %s277 = ssub.s32 4096, 4096
      %278 = vsyncadd [#allocation33], %s277
      %s279 = sshll.u32 [#allocation34], 4
      %s280 = int_to_ptr.vmem [resolvable:$true] %s279
      %285 = dma.hbm_to_vmem [thread:$0]  %s23, 4096, %s280, [#allocation33], 64, 64, 4
    $region97: #{tpu_custom_call.1} parent=1 // pred_fallthru
      _
    // Predicated region
    $region98: #{tpu_custom_call.1} parent=1 // pred_check
      _
    $region99: #{tpu_custom_call.1} parent=1 // pred_check_branch
      %287 = sbr.rel (0) target = $region101
    $region100: #{tpu_custom_call.1} parent=1 // pred_region
      _
    $region101: #{tpu_custom_call.1} parent=1 // pred_fallthru
      _
    // Predicated region
    $region102: #{tpu_custom_call.1} parent=1 // pred_check
      _
    $region103: #{tpu_custom_call.1} parent=1 // pred_check_branch
      %289 = sbr.rel (0) target = $region105
    $region104: #{tpu_custom_call.1} parent=1 // pred_region
      %290 = dma.done [#allocation3], 2048
    $region105: #{tpu_custom_call.1} parent=1 // pred_fallthru
      _
    // Predicated region
    $region106: #{tpu_custom_call.1} parent=1 // pred_check
      _
    $region107: #{tpu_custom_call.1} parent=1 // pred_check_branch
      %292 = sbr.rel (0) target = $region109
    $region108: #{tpu_custom_call.1} parent=1 // pred_region
      %293 = dma.done [#allocation6], 4096
    $region109: #{tpu_custom_call.1} parent=1 // pred_fallthru
      _
    // Predicated region
    $region110: #{tpu_custom_call.1} parent=1 // pred_check
      _
    $region111: #{tpu_custom_call.1} parent=1 // pred_check_branch
      %295 = sbr.rel (0) target = $region113
    $region112: #{tpu_custom_call.1} parent=1 // pred_region
      %296 = dma.done [#allocation6], 64
    $region113: #{tpu_custom_call.1} parent=1 // pred_fallthru
      _
    // Predicated region
    $region114: #{tpu_custom_call.1} parent=1 // pred_check
      _
    $region115: #{tpu_custom_call.1} parent=1 // pred_check_branch
      %298 = sbr.rel (0) target = $region117
    $region116: #{tpu_custom_call.1} parent=1 // pred_region
      %299 = dma.done [#allocation9], 8192
    $region117: #{tpu_custom_call.1} parent=1 // pred_fallthru
      _
    // Predicated region
    $region118: #{tpu_custom_call.1} parent=1 // pred_check
      _
    $region119: #{tpu_custom_call.1} parent=1 // pred_check_branch
      %301 = sbr.rel (0) target = $region121
    $region120: #{tpu_custom_call.1} parent=1 // pred_region
      %302 = dma.done [#allocation9], 32
    $region121: #{tpu_custom_call.1} parent=1 // pred_fallthru
      _
    // Predicated region
    $region122: #{tpu_custom_call.1} parent=1 // pred_check
      _
    $region123: #{tpu_custom_call.1} parent=1 // pred_check_branch
      %304 = sbr.rel (0) target = $region125
    $region124: #{tpu_custom_call.1} parent=1 // pred_region
      %305 = dma.done [#allocation12], 2048
    $region125: #{tpu_custom_call.1} parent=1 // pred_fallthru
      _
    // Predicated region
    $region126: #{tpu_custom_call.1} parent=1 // pred_check
      _
    $region127: #{tpu_custom_call.1} parent=1 // pred_check_branch
      %307 = sbr.rel (0) target = $region129
    $region128: #{tpu_custom_call.1} parent=1 // pred_region
      %308 = dma.done [#allocation12], 16
    $region129: #{tpu_custom_call.1} parent=1 // pred_fallthru
      _
    // Predicated region
    $region130: #{tpu_custom_call.1} parent=1 // pred_check
      _
    $region131: #{tpu_custom_call.1} parent=1 // pred_check_branch
      %310 = sbr.rel (0) target = $region133
    $region132: #{tpu_custom_call.1} parent=1 // pred_region
      %311 = dma.done [#allocation15], 1024
    $region133: #{tpu_custom_call.1} parent=1 // pred_fallthru
      _
    // Predicated region
    $region134: #{tpu_custom_call.1} parent=1 // pred_check
      _
    $region135: #{tpu_custom_call.1} parent=1 // pred_check_branch
      %313 = sbr.rel (0) target = $region137
    $region136: #{tpu_custom_call.1} parent=1 // pred_region
      %314 = dma.done [#allocation15], 16
    $region137: #{tpu_custom_call.1} parent=1 // pred_fallthru
      _
    // Predicated region
    $region138: #{tpu_custom_call.1} parent=1 // pred_check
      _
    $region139: #{tpu_custom_call.1} parent=1 // pred_check_branch
      %316 = sbr.rel (0) target = $region141
    $region140: #{tpu_custom_call.1} parent=1 // pred_region
      %317 = dma.done [#allocation18], 1024
    $region141: #{tpu_custom_call.1} parent=1 // pred_fallthru
      _
    // Predicated region
    $region142: #{tpu_custom_call.1} parent=1 // pred_check
      _
    $region143: #{tpu_custom_call.1} parent=1 // pred_check_branch
      %319 = sbr.rel (0) target = $region145
    $region144: #{tpu_custom_call.1} parent=1 // pred_region
      %320 = dma.done [#allocation18], 16
    $region145: #{tpu_custom_call.1} parent=1 // pred_fallthru
      _
    // Predicated region
    $region146: #{tpu_custom_call.1} parent=1 // pred_check
      _
    $region147: #{tpu_custom_call.1} parent=1 // pred_check_branch
      %322 = sbr.rel (0) target = $region149
    $region148: #{tpu_custom_call.1} parent=1 // pred_region
      %323 = dma.done [#allocation21], 2048
    $region149: #{tpu_custom_call.1} parent=1 // pred_fallthru
      _
    // Predicated region
    $region150: #{tpu_custom_call.1} parent=1 // pred_check
      _
    $region151: #{tpu_custom_call.1} parent=1 // pred_check_branch
      %325 = sbr.rel (0) target = $region153
    $region152: #{tpu_custom_call.1} parent=1 // pred_region
      %326 = dma.done [#allocation21], 32
    $region153: #{tpu_custom_call.1} parent=1 // pred_fallthru
      _
    // Predicated region
    $region154: #{tpu_custom_call.1} parent=1 // pred_check
      _
    $region155: #{tpu_custom_call.1} parent=1 // pred_check_branch
      %328 = sbr.rel (0) target = $region157
    $region156: #{tpu_custom_call.1} parent=1 // pred_region
      %329 = dma.done [#allocation24], 8192
    $region157: #{tpu_custom_call.1} parent=1 // pred_fallthru
      _
    // Predicated region
    $region158: #{tpu_custom_call.1} parent=1 // pred_check
      _
    $region159: #{tpu_custom_call.1} parent=1 // pred_check_branch
      %331 = sbr.rel (0) target = $region161
    $region160: #{tpu_custom_call.1} parent=1 // pred_region
      %332 = dma.done [#allocation24], 64
    $region161: #{tpu_custom_call.1} parent=1 // pred_fallthru
      _
    // Predicated region
    $region162: #{tpu_custom_call.1} parent=1 // pred_check
      _
    $region163: #{tpu_custom_call.1} parent=1 // pred_check_branch
      %334 = sbr.rel (0) target = $region165
    $region164: #{tpu_custom_call.1} parent=1 // pred_region
      %335 = dma.done [#allocation27], 4096
    $region165: #{tpu_custom_call.1} parent=1 // pred_fallthru
      _
    // Predicated region
    $region166: #{tpu_custom_call.1} parent=1 // pred_check
      _
    $region167: #{tpu_custom_call.1} parent=1 // pred_check_branch
      %337 = sbr.rel (0) target = $region169
    $region168: #{tpu_custom_call.1} parent=1 // pred_region
      %338 = dma.done [#allocation27], 16
    $region169: #{tpu_custom_call.1} parent=1 // pred_fallthru
      _
    // Predicated region
    $region170: #{tpu_custom_call.1} parent=1 // pred_check
      _
    $region171: #{tpu_custom_call.1} parent=1 // pred_check_branch
      %340 = sbr.rel (0) target = $region173
    $region172: #{tpu_custom_call.1} parent=1 // pred_region
      %341 = dma.done [#allocation30], 16
    $region173: #{tpu_custom_call.1} parent=1 // pred_fallthru
      _
    // Predicated region
    $region174: #{tpu_custom_call.1} parent=1 // pred_check
      _
    $region175: #{tpu_custom_call.1} parent=1 // pred_check_branch
      %343 = sbr.rel (0) target = $region177
    $region176: #{tpu_custom_call.1} parent=1 // pred_region
      %344 = dma.done [#allocation30], 2048
    $region177: #{tpu_custom_call.1} parent=1 // pred_fallthru
      _
    // Predicated region
    $region178: #{tpu_custom_call.1} parent=1 // pred_check
      _
    $region179: #{tpu_custom_call.1} parent=1 // pred_check_branch
      %346 = sbr.rel (0) target = $region181
    $region180: #{tpu_custom_call.1} parent=1 // pred_region
      %347 = dma.done [#allocation33], 8192
    $region181: #{tpu_custom_call.1} parent=1 // pred_fallthru
      _
    // Predicated region
    $region182: #{tpu_custom_call.1} parent=1 // pred_check
      _
    $region183: #{tpu_custom_call.1} parent=1 // pred_check_branch
      %349 = sbr.rel (0) target = $region185
    $region184: #{tpu_custom_call.1} parent=1 // pred_region
      %350 = dma.done [#allocation33], 4096
    $region185: #{tpu_custom_call.1} parent=1 // pred_fallthru
      _
    %v352 = vld [vmem:[#allocation2] sm:$0xff]
    %v353 = vld [vmem:[#allocation2 + $0x8] sm:$0xff]
    %v354 = vld [vmem:[#allocation2 + $0x10] sm:$0xff]
    %v355 = vld [vmem:[#allocation2 + $0x18] sm:$0xff]
    %v356 = vld [vmem:[#allocation2 + $0x20] sm:$0xff]
    %v357 = vld [vmem:[#allocation2 + $0x28] sm:$0xff]
    %v358 = vld [vmem:[#allocation2 + $0x30] sm:$0xff]
    %v359 = vld [vmem:[#allocation2 + $0x38] sm:$0xff]
    %v360 = vld [vmem:[#allocation2 + $0x40] sm:$0xff]
    %v361 = vld [vmem:[#allocation2 + $0x48] sm:$0xff]
    %v362 = vld [vmem:[#allocation2 + $0x50] sm:$0xff]
    %v363 = vld [vmem:[#allocation2 + $0x58] sm:$0xff]
    %v364 = vld [vmem:[#allocation2 + $0x60] sm:$0xff]
    %v365 = vld [vmem:[#allocation2 + $0x68] sm:$0xff]
    %v366 = vld [vmem:[#allocation2 + $0x70] sm:$0xff]
    %v367 = vld [vmem:[#allocation2 + $0x78] sm:$0xff]
    %v368 = vpack.c.bf16 %v353, %v352
    %v369 = vpack.c.bf16 %v355, %v354
    %v370 = vpack.c.bf16 %v357, %v356
    %v371 = vpack.c.bf16 %v359, %v358
    %v372 = vpack.c.bf16 %v361, %v360
    %v373 = vpack.c.bf16 %v363, %v362
    %v374 = vpack.c.bf16 %v365, %v364
    %v375 = vpack.c.bf16 %v367, %v366
    %v376 = vld [vmem:[#allocation5] sm:$0xff]
    %v377 = vld [vmem:[#allocation5 + $0x8] sm:$0xff]
    %v378 = vld [vmem:[#allocation5 + $0x10] sm:$0xff]
    %v379 = vld [vmem:[#allocation5 + $0x18] sm:$0xff]
    %v380 = vld [vmem:[#allocation5 + $0x20] sm:$0xff]
    %v381 = vld [vmem:[#allocation5 + $0x28] sm:$0xff]
    %v382 = vld [vmem:[#allocation5 + $0x30] sm:$0xff]
    %v383 = vld [vmem:[#allocation5 + $0x38] sm:$0xff]
    %v384 = vld [vmem:[#allocation5 + $0x40] sm:$0xff]
    %v385 = vld [vmem:[#allocation5 + $0x48] sm:$0xff]
    %v386 = vld [vmem:[#allocation5 + $0x50] sm:$0xff]
    %v387 = vld [vmem:[#allocation5 + $0x58] sm:$0xff]
    %v388 = vld [vmem:[#allocation5 + $0x60] sm:$0xff]
    %v389 = vld [vmem:[#allocation5 + $0x68] sm:$0xff]
    %v390 = vld [vmem:[#allocation5 + $0x70] sm:$0xff]
    %v391 = vld [vmem:[#allocation5 + $0x78] sm:$0xff]
    %v392 = vld [vmem:[#allocation5 + $0x80] sm:$0xff]
    %v393 = vld [vmem:[#allocation5 + $0x88] sm:$0xff]
    %v394 = vld [vmem:[#allocation5 + $0x90] sm:$0xff]
    %v395 = vld [vmem:[#allocation5 + $0x98] sm:$0xff]
    %v396 = vld [vmem:[#allocation5 + $0xa0] sm:$0xff]
    %v397 = vld [vmem:[#allocation5 + $0xa8] sm:$0xff]
    %v398 = vld [vmem:[#allocation5 + $0xb0] sm:$0xff]
    %v399 = vld [vmem:[#allocation5 + $0xb8] sm:$0xff]
    %v400 = vld [vmem:[#allocation5 + $0xc0] sm:$0xff]
    %v401 = vld [vmem:[#allocation5 + $0xc8] sm:$0xff]
    %v402 = vld [vmem:[#allocation5 + $0xd0] sm:$0xff]
    %v403 = vld [vmem:[#allocation5 + $0xd8] sm:$0xff]
    %v404 = vld [vmem:[#allocation5 + $0xe0] sm:$0xff]
    %v405 = vld [vmem:[#allocation5 + $0xe8] sm:$0xff]
    %v406 = vld [vmem:[#allocation5 + $0xf0] sm:$0xff]
    %v407 = vld [vmem:[#allocation5 + $0xf8] sm:$0xff]
    %v408 = vld [vmem:[#allocation7] sm:$0xf]
    %v410 = vlaneseq
    %v411 = vshrl.u32 %v410, 7
    %v412 = vsub.s32 0, %v411
    %v413 = vrot.slane %v408, %v412
    %v414 = vlaneseq
    %v415 = vshrl.u32 %v414, 7
    %v416 = vsub.s32 1, %v415
    %v417 = vrot.slane %v408, %v416
    %v418 = vlaneseq
    %v419 = vshrl.u32 %v418, 7
    %v420 = vsub.s32 2, %v419
    %v421 = vrot.slane %v408, %v420
    %v422 = vlaneseq
    %v423 = vshrl.u32 %v422, 7
    %v424 = vsub.s32 3, %v423
    %v425 = vrot.slane %v408, %v424
    %v462 = vunpack.c.l.b16 %v376
    %v463 = vunpack.c.h.b16 %v376
    %v464 = vunpack.c.l.b16 %v377
    %v465 = vunpack.c.h.b16 %v377
    %v466 = vunpack.c.l.b16 %v378
    %v467 = vunpack.c.h.b16 %v378
    %v468 = vunpack.c.l.b16 %v379
    %v469 = vunpack.c.h.b16 %v379
    %v470 = vunpack.c.l.b16 %v380
    %v471 = vunpack.c.h.b16 %v380
    %v472 = vunpack.c.l.b16 %v381
    %v473 = vunpack.c.h.b16 %v381
    %v474 = vunpack.c.l.b16 %v382
    %v475 = vunpack.c.h.b16 %v382
    %v476 = vunpack.c.l.b16 %v383
    %v477 = vunpack.c.h.b16 %v383
    %v478 = vunpack.c.l.b16 %v384
    %v479 = vunpack.c.h.b16 %v384
    %v480 = vunpack.c.l.b16 %v385
    %v481 = vunpack.c.h.b16 %v385
    %v482 = vunpack.c.l.b16 %v386
    %v483 = vunpack.c.h.b16 %v386
    %v484 = vunpack.c.l.b16 %v387
    %v485 = vunpack.c.h.b16 %v387
    %v486 = vunpack.c.l.b16 %v388
    %v487 = vunpack.c.h.b16 %v388
    %v488 = vunpack.c.l.b16 %v389
    %v489 = vunpack.c.h.b16 %v389
    %v490 = vunpack.c.l.b16 %v390
    %v491 = vunpack.c.h.b16 %v390
    %v492 = vunpack.c.l.b16 %v391
    %v493 = vunpack.c.h.b16 %v391
    %v494 = vunpack.c.l.b16 %v392
    %v495 = vunpack.c.h.b16 %v392
    %v496 = vunpack.c.l.b16 %v393
    %v497 = vunpack.c.h.b16 %v393
    %v498 = vunpack.c.l.b16 %v394
    %v499 = vunpack.c.h.b16 %v394
    %v500 = vunpack.c.l.b16 %v395
    %v501 = vunpack.c.h.b16 %v395
    %v502 = vunpack.c.l.b16 %v396
    %v503 = vunpack.c.h.b16 %v396
    %v504 = vunpack.c.l.b16 %v397
    %v505 = vunpack.c.h.b16 %v397
    %v506 = vunpack.c.l.b16 %v398
    %v507 = vunpack.c.h.b16 %v398
    %v508 = vunpack.c.l.b16 %v399
    %v509 = vunpack.c.h.b16 %v399
    %v510 = vunpack.c.l.b16 %v400
    %v511 = vunpack.c.h.b16 %v400
    %v512 = vunpack.c.l.b16 %v401
    %v513 = vunpack.c.h.b16 %v401
    %v514 = vunpack.c.l.b16 %v402
    %v515 = vunpack.c.h.b16 %v402
    %v516 = vunpack.c.l.b16 %v403
    %v517 = vunpack.c.h.b16 %v403
    %v518 = vunpack.c.l.b16 %v404
    %v519 = vunpack.c.h.b16 %v404
    %v520 = vunpack.c.l.b16 %v405
    %v521 = vunpack.c.h.b16 %v405
    %v522 = vunpack.c.l.b16 %v406
    %v523 = vunpack.c.h.b16 %v406
    %v524 = vunpack.c.l.b16 %v407
    %v525 = vunpack.c.h.b16 %v407
    %v526 = vpack.c.b16 %v466, %v462
    %v527 = vpack.c.b16 %v467, %v463
    %v528 = vpack.c.b16 %v468, %v464
    %v529 = vpack.c.b16 %v469, %v465
    %v530 = vpack.c.b16 %v474, %v470
    %v531 = vpack.c.b16 %v475, %v471
    %v532 = vpack.c.b16 %v476, %v472
    %v533 = vpack.c.b16 %v477, %v473
    %v534 = vpack.c.b16 %v482, %v478
    %v535 = vpack.c.b16 %v483, %v479
    %v536 = vpack.c.b16 %v484, %v480
    %v537 = vpack.c.b16 %v485, %v481
    %v538 = vpack.c.b16 %v490, %v486
    %v539 = vpack.c.b16 %v491, %v487
    %v540 = vpack.c.b16 %v492, %v488
    %v541 = vpack.c.b16 %v493, %v489
    %v542 = vpack.c.b16 %v498, %v494
    %v543 = vpack.c.b16 %v499, %v495
    %v544 = vpack.c.b16 %v500, %v496
    %v545 = vpack.c.b16 %v501, %v497
    %v546 = vpack.c.b16 %v506, %v502
    %v547 = vpack.c.b16 %v507, %v503
    %v548 = vpack.c.b16 %v508, %v504
    %v549 = vpack.c.b16 %v509, %v505
    %v550 = vpack.c.b16 %v514, %v510
    %v551 = vpack.c.b16 %v515, %v511
    %v552 = vpack.c.b16 %v516, %v512
    %v553 = vpack.c.b16 %v517, %v513
    %v554 = vpack.c.b16 %v522, %v518
    %v555 = vpack.c.b16 %v523, %v519
    %v556 = vpack.c.b16 %v524, %v520
    %v557 = vpack.c.b16 %v525, %v521
    %590 = vmatprep.subr.bf16.mxu0 %v527
    %591 = vmatpush1.bf16.msra.mxu0 %v526
    %592 = vmatprep.subr.bf16.mxu0 %v531
    %593 = vmatpush1.bf16.msra.mxu0 %v530
    %594 = vmatprep.subr.bf16.mxu0 %v535
    %595 = vmatpush1.bf16.msra.mxu0 %v534
    %596 = vmatprep.subr.bf16.mxu0 %v539
    %597 = vmatpush1.bf16.msra.mxu0 %v538
    %598 = vmatprep.subr.bf16.mxu0 %v543
    %599 = vmatpush1.bf16.msra.mxu0 %v542
    %600 = vmatprep.subr.bf16.mxu0 %v547
    %601 = vmatpush1.bf16.msra.mxu0 %v546
    %602 = vmatprep.subr.bf16.mxu0 %v551
    %603 = vmatpush1.bf16.msra.mxu0 %v550
    %604 = vmatprep.subr.bf16.mxu0 %v555
    %605 = vmatpush1.bf16.msra.mxu0 %v554
    %606 = vmatprep.subr.bf16.mxu0 0
    %607 = vmatpush1.bf16.msra.mxu0 0
    %608 = vmatprep.subr.bf16.mxu0 0
    %609 = vmatpush1.bf16.msra.mxu0 0
    %610 = vmatprep.subr.bf16.mxu0 0
    %611 = vmatpush1.bf16.msra.mxu0 0
    %612 = vmatprep.subr.bf16.mxu0 0
    %613 = vmatpush1.bf16.msra.mxu0 0
    %614 = vmatprep.subr.bf16.mxu0 0
    %615 = vmatpush1.bf16.msra.mxu0 0
    %616 = vmatprep.subr.bf16.mxu0 0
    %617 = vmatpush1.bf16.msra.mxu0 0
    %618 = vmatprep.subr.bf16.mxu0 0
    %619 = vmatpush1.bf16.msra.mxu0 0
    %620 = vmatprep.subr.bf16.mxu0 0
    %621 = vmatpush1.bf16.msra.mxu0 0
    %622 = vmatprep.mubr.bf16.mxu0 0
    %623 = vmatmul.mubr.bf16.gmra.mrb[0].mxu0 %v368
    %v624 = vpop.f32.mrb[0].mxu0
    %v625 = vadd.f32 %v413, %v624
    %v626 = vpop.f32.mrb[0].mxu0
    %v627 = vadd.f32 %v417, %v626
    %v628 = vpop.f32.mrb[0].mxu0
    %v629 = vadd.f32 %v413, %v628
    %v630 = vpop.f32.mrb[0].mxu0
    %v631 = vadd.f32 %v417, %v630
    %632 = vmatprep.mubr.bf16.mxu0 0
    %633 = vmatmul.mubr.bf16.gmra.mrb[0].mxu0 %v369
    %v634 = vpop.f32.mrb[0].mxu0
    %v635 = vadd.f32 %v413, %v634
    %v636 = vpop.f32.mrb[0].mxu0
    %v637 = vadd.f32 %v417, %v636
    %v638 = vpop.f32.mrb[0].mxu0
    %v639 = vadd.f32 %v413, %v638
    %v640 = vpop.f32.mrb[0].mxu0
    %v641 = vadd.f32 %v417, %v640
    %642 = vmatprep.mubr.bf16.mxu0 0
    %643 = vmatmul.mubr.bf16.gmra.mrb[0].mxu0 %v370
    %v644 = vpop.f32.mrb[0].mxu0
    %v645 = vadd.f32 %v413, %v644
    %v646 = vpop.f32.mrb[0].mxu0
    %v647 = vadd.f32 %v417, %v646
    %v648 = vpop.f32.mrb[0].mxu0
    %v649 = vadd.f32 %v413, %v648
    %v650 = vpop.f32.mrb[0].mxu0
    %v651 = vadd.f32 %v417, %v650
    %652 = vmatprep.mubr.bf16.mxu0 0
    %653 = vmatmul.mubr.bf16.gmra.mrb[0].mxu0 %v371
    %v654 = vpop.f32.mrb[0].mxu0
    %v655 = vadd.f32 %v413, %v654
    %v656 = vpop.f32.mrb[0].mxu0
    %v657 = vadd.f32 %v417, %v656
    %v658 = vpop.f32.mrb[0].mxu0
    %v659 = vadd.f32 %v413, %v658
    %v660 = vpop.f32.mrb[0].mxu0
    %v661 = vadd.f32 %v417, %v660
    %662 = vmatprep.mubr.bf16.mxu0 0
    %663 = vmatmul.mubr.bf16.gmra.mrb[0].mxu0 %v372
    %v664 = vpop.f32.mrb[0].mxu0
    %v665 = vadd.f32 %v413, %v664
    %v666 = vpop.f32.mrb[0].mxu0
    %v667 = vadd.f32 %v417, %v666
    %v668 = vpop.f32.mrb[0].mxu0
    %v669 = vadd.f32 %v413, %v668
    %v670 = vpop.f32.mrb[0].mxu0
    %v671 = vadd.f32 %v417, %v670
    %672 = vmatprep.mubr.bf16.mxu0 0
    %673 = vmatmul.mubr.bf16.gmra.mrb[0].mxu0 %v373
    %v674 = vpop.f32.mrb[0].mxu0
    %v675 = vadd.f32 %v413, %v674
    %v676 = vpop.f32.mrb[0].mxu0
    %v677 = vadd.f32 %v417, %v676
    %v678 = vpop.f32.mrb[0].mxu0
    %v679 = vadd.f32 %v413, %v678
    %v680 = vpop.f32.mrb[0].mxu0
    %v681 = vadd.f32 %v417, %v680
    %682 = vmatprep.mubr.bf16.mxu0 0
    %683 = vmatmul.mubr.bf16.gmra.mrb[0].mxu0 %v374
    %v684 = vpop.f32.mrb[0].mxu0
    %v685 = vadd.f32 %v413, %v684
    %v686 = vpop.f32.mrb[0].mxu0
    %v687 = vadd.f32 %v417, %v686
    %v688 = vpop.f32.mrb[0].mxu0
    %v689 = vadd.f32 %v413, %v688
    %v690 = vpop.f32.mrb[0].mxu0
    %v691 = vadd.f32 %v417, %v690
    %692 = vmatprep.mubr.bf16.mxu0 0
    %693 = vmatmul.mubr.bf16.gmra.mrb[0].mxu0 %v375
    %v694 = vpop.f32.mrb[0].mxu0
    %v695 = vadd.f32 %v413, %v694
    %v696 = vpop.f32.mrb[0].mxu0
    %v697 = vadd.f32 %v417, %v696
    %v698 = vpop.f32.mrb[0].mxu0
    %v699 = vadd.f32 %v413, %v698
    %v700 = vpop.f32.mrb[0].mxu0
    %v701 = vadd.f32 %v417, %v700
    %702 = vdwg.mxu0
    %703 = vmatprep.subr.bf16.mxu0 %v529
    %704 = vmatpush1.bf16.msra.mxu0 %v528
    %705 = vmatprep.subr.bf16.mxu0 %v533
    %706 = vmatpush1.bf16.msra.mxu0 %v532
    %707 = vmatprep.subr.bf16.mxu0 %v537
    %708 = vmatpush1.bf16.msra.mxu0 %v536
    %709 = vmatprep.subr.bf16.mxu0 %v541
    %710 = vmatpush1.bf16.msra.mxu0 %v540
    %711 = vmatprep.subr.bf16.mxu0 %v545
    %712 = vmatpush1.bf16.msra.mxu0 %v544
    %713 = vmatprep.subr.bf16.mxu0 %v549
    %714 = vmatpush1.bf16.msra.mxu0 %v548
    %715 = vmatprep.subr.bf16.mxu0 %v553
    %716 = vmatpush1.bf16.msra.mxu0 %v552
    %717 = vmatprep.subr.bf16.mxu0 %v557
    %718 = vmatpush1.bf16.msra.mxu0 %v556
    %719 = vmatprep.subr.bf16.mxu0 0
    %720 = vmatpush1.bf16.msra.mxu0 0
    %721 = vmatprep.subr.bf16.mxu0 0
    %722 = vmatpush1.bf16.msra.mxu0 0
    %723 = vmatprep.subr.bf16.mxu0 0
    %724 = vmatpush1.bf16.msra.mxu0 0
    %725 = vmatprep.subr.bf16.mxu0 0
    %726 = vmatpush1.bf16.msra.mxu0 0
    %727 = vmatprep.subr.bf16.mxu0 0
    %728 = vmatpush1.bf16.msra.mxu0 0
    %729 = vmatprep.subr.bf16.mxu0 0
    %730 = vmatpush1.bf16.msra.mxu0 0
    %731 = vmatprep.subr.bf16.mxu0 0
    %732 = vmatpush1.bf16.msra.mxu0 0
    %733 = vmatprep.subr.bf16.mxu0 0
    %734 = vmatpush1.bf16.msra.mxu0 0
    %735 = vmatprep.mubr.bf16.mxu0 0
    %736 = vmatmul.mubr.bf16.gmra.mrb[0].mxu0 %v368
    %v737 = vpop.f32.mrb[0].mxu0
    %v738 = vadd.f32 %v421, %v737
    %v739 = vpop.f32.mrb[0].mxu0
    %v740 = vadd.f32 %v425, %v739
    %v741 = vpop.f32.mrb[0].mxu0
    %v742 = vadd.f32 %v421, %v741
    %v743 = vpop.f32.mrb[0].mxu0
    %v744 = vadd.f32 %v425, %v743
    %745 = vmatprep.mubr.bf16.mxu0 0
    %746 = vmatmul.mubr.bf16.gmra.mrb[0].mxu0 %v369
    %v747 = vpop.f32.mrb[0].mxu0
    %v748 = vadd.f32 %v421, %v747
    %v749 = vpop.f32.mrb[0].mxu0
    %v750 = vadd.f32 %v425, %v749
    %v751 = vpop.f32.mrb[0].mxu0
    %v752 = vadd.f32 %v421, %v751
    %v753 = vpop.f32.mrb[0].mxu0
    %v754 = vadd.f32 %v425, %v753
    %755 = vmatprep.mubr.bf16.mxu0 0
    %756 = vmatmul.mubr.bf16.gmra.mrb[0].mxu0 %v370
    %v757 = vpop.f32.mrb[0].mxu0
    %v758 = vadd.f32 %v421, %v757
    %v759 = vpop.f32.mrb[0].mxu0
    %v760 = vadd.f32 %v425, %v759
    %v761 = vpop.f32.mrb[0].mxu0
    %v762 = vadd.f32 %v421, %v761
    %v763 = vpop.f32.mrb[0].mxu0
    %v764 = vadd.f32 %v425, %v763
    %765 = vmatprep.mubr.bf16.mxu0 0
    %766 = vmatmul.mubr.bf16.gmra.mrb[0].mxu0 %v371
    %v767 = vpop.f32.mrb[0].mxu0
    %v768 = vadd.f32 %v421, %v767
    %v769 = vpop.f32.mrb[0].mxu0
    %v770 = vadd.f32 %v425, %v769
    %v771 = vpop.f32.mrb[0].mxu0
    %v772 = vadd.f32 %v421, %v771
    %v773 = vpop.f32.mrb[0].mxu0
    %v774 = vadd.f32 %v425, %v773
    %775 = vmatprep.mubr.bf16.mxu0 0
    %776 = vmatmul.mubr.bf16.gmra.mrb[0].mxu0 %v372
    %v777 = vpop.f32.mrb[0].mxu0
    %v778 = vadd.f32 %v421, %v777
    %v779 = vpop.f32.mrb[0].mxu0
    %v780 = vadd.f32 %v425, %v779
    %v781 = vpop.f32.mrb[0].mxu0
    %v782 = vadd.f32 %v421, %v781
    %v783 = vpop.f32.mrb[0].mxu0
    %v784 = vadd.f32 %v425, %v783
    %785 = vmatprep.mubr.bf16.mxu0 0
    %786 = vmatmul.mubr.bf16.gmra.mrb[0].mxu0 %v373
    %v787 = vpop.f32.mrb[0].mxu0
    %v788 = vadd.f32 %v421, %v787
    %v789 = vpop.f32.mrb[0].mxu0
    %v790 = vadd.f32 %v425, %v789
    %v791 = vpop.f32.mrb[0].mxu0
    %v792 = vadd.f32 %v421, %v791
    %v793 = vpop.f32.mrb[0].mxu0
    %v794 = vadd.f32 %v425, %v793
    %795 = vmatprep.mubr.bf16.mxu0 0
    %796 = vmatmul.mubr.bf16.gmra.mrb[0].mxu0 %v374
    %v797 = vpop.f32.mrb[0].mxu0
    %v798 = vadd.f32 %v421, %v797
    %v799 = vpop.f32.mrb[0].mxu0
    %v800 = vadd.f32 %v425, %v799
    %v801 = vpop.f32.mrb[0].mxu0
    %v802 = vadd.f32 %v421, %v801
    %v803 = vpop.f32.mrb[0].mxu0
    %v804 = vadd.f32 %v425, %v803
    %805 = vmatprep.mubr.bf16.mxu0 0
    %806 = vmatmul.mubr.bf16.gmra.mrb[0].mxu0 %v375
    %v807 = vpop.f32.mrb[0].mxu0
    %v808 = vadd.f32 %v421, %v807
    %v809 = vpop.f32.mrb[0].mxu0
    %v810 = vadd.f32 %v425, %v809
    %v811 = vpop.f32.mrb[0].mxu0
    %v812 = vadd.f32 %v421, %v811
    %v813 = vpop.f32.mrb[0].mxu0
    %v814 = vadd.f32 %v425, %v813
    %815 = vdwg.mxu0
    %v816 = vmax.f32 %v625, 0.0
    %v817 = vmax.f32 %v627, 0.0
    %v818 = vmax.f32 %v738, 0.0
    %v819 = vmax.f32 %v740, 0.0
    %v820 = vmax.f32 %v629, 0.0
    %v821 = vmax.f32 %v631, 0.0
    %v822 = vmax.f32 %v742, 0.0
    %v823 = vmax.f32 %v744, 0.0
    %v824 = vmax.f32 %v635, 0.0
    %v825 = vmax.f32 %v637, 0.0
    %v826 = vmax.f32 %v748, 0.0
    %v827 = vmax.f32 %v750, 0.0
    %v828 = vmax.f32 %v639, 0.0
    %v829 = vmax.f32 %v641, 0.0
    %v830 = vmax.f32 %v752, 0.0
    %v831 = vmax.f32 %v754, 0.0
    %v832 = vmax.f32 %v645, 0.0
    %v833 = vmax.f32 %v647, 0.0
    %v834 = vmax.f32 %v758, 0.0
    %v835 = vmax.f32 %v760, 0.0
    %v836 = vmax.f32 %v649, 0.0
    %v837 = vmax.f32 %v651, 0.0
    %v838 = vmax.f32 %v762, 0.0
    %v839 = vmax.f32 %v764, 0.0
    %v840 = vmax.f32 %v655, 0.0
    %v841 = vmax.f32 %v657, 0.0
    %v842 = vmax.f32 %v768, 0.0
    %v843 = vmax.f32 %v770, 0.0
    %v844 = vmax.f32 %v659, 0.0
    %v845 = vmax.f32 %v661, 0.0
    %v846 = vmax.f32 %v772, 0.0
    %v847 = vmax.f32 %v774, 0.0
    %v848 = vmax.f32 %v665, 0.0
    %v849 = vmax.f32 %v667, 0.0
    %v850 = vmax.f32 %v778, 0.0
    %v851 = vmax.f32 %v780, 0.0
    %v852 = vmax.f32 %v669, 0.0
    %v853 = vmax.f32 %v671, 0.0
    %v854 = vmax.f32 %v782, 0.0
    %v855 = vmax.f32 %v784, 0.0
    %v856 = vmax.f32 %v675, 0.0
    %v857 = vmax.f32 %v677, 0.0
    %v858 = vmax.f32 %v788, 0.0
    %v859 = vmax.f32 %v790, 0.0
    %v860 = vmax.f32 %v679, 0.0
    %v861 = vmax.f32 %v681, 0.0
    %v862 = vmax.f32 %v792, 0.0
    %v863 = vmax.f32 %v794, 0.0
    %v864 = vmax.f32 %v685, 0.0
    %v865 = vmax.f32 %v687, 0.0
    %v866 = vmax.f32 %v798, 0.0
    %v867 = vmax.f32 %v800, 0.0
    %v868 = vmax.f32 %v689, 0.0
    %v869 = vmax.f32 %v691, 0.0
    %v870 = vmax.f32 %v802, 0.0
    %v871 = vmax.f32 %v804, 0.0
    %v872 = vmax.f32 %v695, 0.0
    %v873 = vmax.f32 %v697, 0.0
    %v874 = vmax.f32 %v808, 0.0
    %v875 = vmax.f32 %v810, 0.0
    %v876 = vmax.f32 %v699, 0.0
    %v877 = vmax.f32 %v701, 0.0
    %v878 = vmax.f32 %v812, 0.0
    %v879 = vmax.f32 %v814, 0.0
    %v880 = vpack.c.bf16 %v820, %v816
    %v881 = vpack.c.bf16 %v821, %v817
    %v882 = vpack.c.bf16 %v822, %v818
    %v883 = vpack.c.bf16 %v823, %v819
    %v884 = vpack.c.bf16 %v828, %v824
    %v885 = vpack.c.bf16 %v829, %v825
    %v886 = vpack.c.bf16 %v830, %v826
    %v887 = vpack.c.bf16 %v831, %v827
    %v888 = vpack.c.bf16 %v836, %v832
    %v889 = vpack.c.bf16 %v837, %v833
    %v890 = vpack.c.bf16 %v838, %v834
    %v891 = vpack.c.bf16 %v839, %v835
    %v892 = vpack.c.bf16 %v844, %v840
    %v893 = vpack.c.bf16 %v845, %v841
    %v894 = vpack.c.bf16 %v846, %v842
    %v895 = vpack.c.bf16 %v847, %v843
    %v896 = vpack.c.bf16 %v852, %v848
    %v897 = vpack.c.bf16 %v853, %v849
    %v898 = vpack.c.bf16 %v854, %v850
    %v899 = vpack.c.bf16 %v855, %v851
    %v900 = vpack.c.bf16 %v860, %v856
    %v901 = vpack.c.bf16 %v861, %v857
    %v902 = vpack.c.bf16 %v862, %v858
    %v903 = vpack.c.bf16 %v863, %v859
    %v904 = vpack.c.bf16 %v868, %v864
    %v905 = vpack.c.bf16 %v869, %v865
    %v906 = vpack.c.bf16 %v870, %v866
    %v907 = vpack.c.bf16 %v871, %v867
    %v908 = vpack.c.bf16 %v876, %v872
    %v909 = vpack.c.bf16 %v877, %v873
    %v910 = vpack.c.bf16 %v878, %v874
    %v911 = vpack.c.bf16 %v879, %v875
    %v912 = vld [vmem:[#allocation8] sm:$0xff]
    %v913 = vld [vmem:[#allocation8 + $0x8] sm:$0xff]
    %v914 = vld [vmem:[#allocation8 + $0x10] sm:$0xff]
    %v915 = vld [vmem:[#allocation8 + $0x18] sm:$0xff]
    %v916 = vld [vmem:[#allocation8 + $0x20] sm:$0xff]
    %v917 = vld [vmem:[#allocation8 + $0x28] sm:$0xff]
    %v918 = vld [vmem:[#allocation8 + $0x30] sm:$0xff]
    %v919 = vld [vmem:[#allocation8 + $0x38] sm:$0xff]
    %v920 = vld [vmem:[#allocation8 + $0x40] sm:$0xff]
    %v921 = vld [vmem:[#allocation8 + $0x48] sm:$0xff]
    %v922 = vld [vmem:[#allocation8 + $0x50] sm:$0xff]
    %v923 = vld [vmem:[#allocation8 + $0x58] sm:$0xff]
    %v924 = vld [vmem:[#allocation8 + $0x60] sm:$0xff]
    %v925 = vld [vmem:[#allocation8 + $0x68] sm:$0xff]
    %v926 = vld [vmem:[#allocation8 + $0x70] sm:$0xff]
    %v927 = vld [vmem:[#allocation8 + $0x78] sm:$0xff]
    %v928 = vld [vmem:[#allocation8 + $0x80] sm:$0xff]
    %v929 = vld [vmem:[#allocation8 + $0x88] sm:$0xff]
    %v930 = vld [vmem:[#allocation8 + $0x90] sm:$0xff]
    %v931 = vld [vmem:[#allocation8 + $0x98] sm:$0xff]
    %v932 = vld [vmem:[#allocation8 + $0xa0] sm:$0xff]
    %v933 = vld [vmem:[#allocation8 + $0xa8] sm:$0xff]
    %v934 = vld [vmem:[#allocation8 + $0xb0] sm:$0xff]
    %v935 = vld [vmem:[#allocation8 + $0xb8] sm:$0xff]
    %v936 = vld [vmem:[#allocation8 + $0xc0] sm:$0xff]
    %v937 = vld [vmem:[#allocation8 + $0xc8] sm:$0xff]
    %v938 = vld [vmem:[#allocation8 + $0xd0] sm:$0xff]
    %v939 = vld [vmem:[#allocation8 + $0xd8] sm:$0xff]
    %v940 = vld [vmem:[#allocation8 + $0xe0] sm:$0xff]
    %v941 = vld [vmem:[#allocation8 + $0xe8] sm:$0xff]
    %v942 = vld [vmem:[#allocation8 + $0xf0] sm:$0xff]
    %v943 = vld [vmem:[#allocation8 + $0xf8] sm:$0xff]
    %v944 = vld [vmem:[#allocation8 + $0x100] sm:$0xff]
    %v945 = vld [vmem:[#allocation8 + $0x108] sm:$0xff]
    %v946 = vld [vmem:[#allocation8 + $0x110] sm:$0xff]
    %v947 = vld [vmem:[#allocation8 + $0x118] sm:$0xff]
    %v948 = vld [vmem:[#allocation8 + $0x120] sm:$0xff]
    %v949 = vld [vmem:[#allocation8 + $0x128] sm:$0xff]
    %v950 = vld [vmem:[#allocation8 + $0x130] sm:$0xff]
    %v951 = vld [vmem:[#allocation8 + $0x138] sm:$0xff]
    %v952 = vld [vmem:[#allocation8 + $0x140] sm:$0xff]
    %v953 = vld [vmem:[#allocation8 + $0x148] sm:$0xff]
    %v954 = vld [vmem:[#allocation8 + $0x150] sm:$0xff]
    %v955 = vld [vmem:[#allocation8 + $0x158] sm:$0xff]
    %v956 = vld [vmem:[#allocation8 + $0x160] sm:$0xff]
    %v957 = vld [vmem:[#allocation8 + $0x168] sm:$0xff]
    %v958 = vld [vmem:[#allocation8 + $0x170] sm:$0xff]
    %v959 = vld [vmem:[#allocation8 + $0x178] sm:$0xff]
    %v960 = vld [vmem:[#allocation8 + $0x180] sm:$0xff]
    %v961 = vld [vmem:[#allocation8 + $0x188] sm:$0xff]
    %v962 = vld [vmem:[#allocation8 + $0x190] sm:$0xff]
    %v963 = vld [vmem:[#allocation8 + $0x198] sm:$0xff]
    %v964 = vld [vmem:[#allocation8 + $0x1a0] sm:$0xff]
    %v965 = vld [vmem:[#allocation8 + $0x1a8] sm:$0xff]
    %v966 = vld [vmem:[#allocation8 + $0x1b0] sm:$0xff]
    %v967 = vld [vmem:[#allocation8 + $0x1b8] sm:$0xff]
    %v968 = vld [vmem:[#allocation8 + $0x1c0] sm:$0xff]
    %v969 = vld [vmem:[#allocation8 + $0x1c8] sm:$0xff]
    %v970 = vld [vmem:[#allocation8 + $0x1d0] sm:$0xff]
    %v971 = vld [vmem:[#allocation8 + $0x1d8] sm:$0xff]
    %v972 = vld [vmem:[#allocation8 + $0x1e0] sm:$0xff]
    %v973 = vld [vmem:[#allocation8 + $0x1e8] sm:$0xff]
    %v974 = vld [vmem:[#allocation8 + $0x1f0] sm:$0xff]
    %v975 = vld [vmem:[#allocation8 + $0x1f8] sm:$0xff]
    %v976 = vld [vmem:[#allocation10] sm:$0x3]
    %v978 = vlaneseq
    %v979 = vshrl.u32 %v978, 7
    %v980 = vsub.s32 0, %v979
    %v981 = vrot.slane %v976, %v980
    %v982 = vlaneseq
    %v983 = vshrl.u32 %v982, 7
    %v984 = vsub.s32 1, %v983
    %v985 = vrot.slane %v976, %v984
    %v1052 = vunpack.c.l.b16 %v912
    %v1053 = vunpack.c.h.b16 %v912
    %v1054 = vunpack.c.l.b16 %v913
    %v1055 = vunpack.c.h.b16 %v913
    %v1056 = vunpack.c.l.b16 %v914
    %v1057 = vunpack.c.h.b16 %v914
    %v1058 = vunpack.c.l.b16 %v915
    %v1059 = vunpack.c.h.b16 %v915
    %v1060 = vunpack.c.l.b16 %v916
    %v1061 = vunpack.c.h.b16 %v916
    %v1062 = vunpack.c.l.b16 %v917
    %v1063 = vunpack.c.h.b16 %v917
    %v1064 = vunpack.c.l.b16 %v918
    %v1065 = vunpack.c.h.b16 %v918
    %v1066 = vunpack.c.l.b16 %v919
    %v1067 = vunpack.c.h.b16 %v919
    %v1068 = vunpack.c.l.b16 %v920
    %v1069 = vunpack.c.h.b16 %v920
    %v1070 = vunpack.c.l.b16 %v921
    %v1071 = vunpack.c.h.b16 %v921
    %v1072 = vunpack.c.l.b16 %v922
    %v1073 = vunpack.c.h.b16 %v922
    %v1074 = vunpack.c.l.b16 %v923
    %v1075 = vunpack.c.h.b16 %v923
    %v1076 = vunpack.c.l.b16 %v924
    %v1077 = vunpack.c.h.b16 %v924
    %v1078 = vunpack.c.l.b16 %v925
    %v1079 = vunpack.c.h.b16 %v925
    %v1080 = vunpack.c.l.b16 %v926
    %v1081 = vunpack.c.h.b16 %v926
    %v1082 = vunpack.c.l.b16 %v927
    %v1083 = vunpack.c.h.b16 %v927
    %v1084 = vunpack.c.l.b16 %v928
    %v1085 = vunpack.c.h.b16 %v928
    %v1086 = vunpack.c.l.b16 %v929
    %v1087 = vunpack.c.h.b16 %v929
    %v1088 = vunpack.c.l.b16 %v930
    %v1089 = vunpack.c.h.b16 %v930
    %v1090 = vunpack.c.l.b16 %v931
    %v1091 = vunpack.c.h.b16 %v931
    %v1092 = vunpack.c.l.b16 %v932
    %v1093 = vunpack.c.h.b16 %v932
    %v1094 = vunpack.c.l.b16 %v933
    %v1095 = vunpack.c.h.b16 %v933
    %v1096 = vunpack.c.l.b16 %v934
    %v1097 = vunpack.c.h.b16 %v934
    %v1098 = vunpack.c.l.b16 %v935
    %v1099 = vunpack.c.h.b16 %v935
    %v1100 = vunpack.c.l.b16 %v936
    %v1101 = vunpack.c.h.b16 %v936
    %v1102 = vunpack.c.l.b16 %v937
    %v1103 = vunpack.c.h.b16 %v937
    %v1104 = vunpack.c.l.b16 %v938
    %v1105 = vunpack.c.h.b16 %v938
    %v1106 = vunpack.c.l.b16 %v939
    %v1107 = vunpack.c.h.b16 %v939
    %v1108 = vunpack.c.l.b16 %v940
    %v1109 = vunpack.c.h.b16 %v940
    %v1110 = vunpack.c.l.b16 %v941
    %v1111 = vunpack.c.h.b16 %v941
    %v1112 = vunpack.c.l.b16 %v942
    %v1113 = vunpack.c.h.b16 %v942
    %v1114 = vunpack.c.l.b16 %v943
    %v1115 = vunpack.c.h.b16 %v943
    %v1116 = vunpack.c.l.b16 %v944
    %v1117 = vunpack.c.h.b16 %v944
    %v1118 = vunpack.c.l.b16 %v945
    %v1119 = vunpack.c.h.b16 %v945
    %v1120 = vunpack.c.l.b16 %v946
    %v1121 = vunpack.c.h.b16 %v946
    %v1122 = vunpack.c.l.b16 %v947
    %v1123 = vunpack.c.h.b16 %v947
    %v1124 = vunpack.c.l.b16 %v948
    %v1125 = vunpack.c.h.b16 %v948
    %v1126 = vunpack.c.l.b16 %v949
    %v1127 = vunpack.c.h.b16 %v949
    %v1128 = vunpack.c.l.b16 %v950
    %v1129 = vunpack.c.h.b16 %v950
    %v1130 = vunpack.c.l.b16 %v951
    %v1131 = vunpack.c.h.b16 %v951
    %v1132 = vunpack.c.l.b16 %v952
    %v1133 = vunpack.c.h.b16 %v952
    %v1134 = vunpack.c.l.b16 %v953
    %v1135 = vunpack.c.h.b16 %v953
    %v1136 = vunpack.c.l.b16 %v954
    %v1137 = vunpack.c.h.b16 %v954
    %v1138 = vunpack.c.l.b16 %v955
    %v1139 = vunpack.c.h.b16 %v955
    %v1140 = vunpack.c.l.b16 %v956
    %v1141 = vunpack.c.h.b16 %v956
    %v1142 = vunpack.c.l.b16 %v957
    %v1143 = vunpack.c.h.b16 %v957
    %v1144 = vunpack.c.l.b16 %v958
    %v1145 = vunpack.c.h.b16 %v958
    %v1146 = vunpack.c.l.b16 %v959
    %v1147 = vunpack.c.h.b16 %v959
    %v1148 = vunpack.c.l.b16 %v960
    %v1149 = vunpack.c.h.b16 %v960
    %v1150 = vunpack.c.l.b16 %v961
    %v1151 = vunpack.c.h.b16 %v961
    %v1152 = vunpack.c.l.b16 %v962
    %v1153 = vunpack.c.h.b16 %v962
    %v1154 = vunpack.c.l.b16 %v963
    %v1155 = vunpack.c.h.b16 %v963
    %v1156 = vunpack.c.l.b16 %v964
    %v1157 = vunpack.c.h.b16 %v964
    %v1158 = vunpack.c.l.b16 %v965
    %v1159 = vunpack.c.h.b16 %v965
    %v1160 = vunpack.c.l.b16 %v966
    %v1161 = vunpack.c.h.b16 %v966
    %v1162 = vunpack.c.l.b16 %v967
    %v1163 = vunpack.c.h.b16 %v967
    %v1164 = vunpack.c.l.b16 %v968
    %v1165 = vunpack.c.h.b16 %v968
    %v1166 = vunpack.c.l.b16 %v969
    %v1167 = vunpack.c.h.b16 %v969
    %v1168 = vunpack.c.l.b16 %v970
    %v1169 = vunpack.c.h.b16 %v970
    %v1170 = vunpack.c.l.b16 %v971
    %v1171 = vunpack.c.h.b16 %v971
    %v1172 = vunpack.c.l.b16 %v972
    %v1173 = vunpack.c.h.b16 %v972
    %v1174 = vunpack.c.l.b16 %v973
    %v1175 = vunpack.c.h.b16 %v973
    %v1176 = vunpack.c.l.b16 %v974
    %v1177 = vunpack.c.h.b16 %v974
    %v1178 = vunpack.c.l.b16 %v975
    %v1179 = vunpack.c.h.b16 %v975
    %v1180 = vpack.c.b16 %v1054, %v1052
    %v1181 = vpack.c.b16 %v1055, %v1053
    %v1182 = vpack.c.b16 %v1058, %v1056
    %v1183 = vpack.c.b16 %v1059, %v1057
    %v1184 = vpack.c.b16 %v1062, %v1060
    %v1185 = vpack.c.b16 %v1063, %v1061
    %v1186 = vpack.c.b16 %v1066, %v1064
    %v1187 = vpack.c.b16 %v1067, %v1065
    %v1188 = vpack.c.b16 %v1070, %v1068
    %v1189 = vpack.c.b16 %v1071, %v1069
    %v1190 = vpack.c.b16 %v1074, %v1072
    %v1191 = vpack.c.b16 %v1075, %v1073
    %v1192 = vpack.c.b16 %v1078, %v1076
    %v1193 = vpack.c.b16 %v1079, %v1077
    %v1194 = vpack.c.b16 %v1082, %v1080
    %v1195 = vpack.c.b16 %v1083, %v1081
    %v1196 = vpack.c.b16 %v1086, %v1084
    %v1197 = vpack.c.b16 %v1087, %v1085
    %v1198 = vpack.c.b16 %v1090, %v1088
    %v1199 = vpack.c.b16 %v1091, %v1089
    %v1200 = vpack.c.b16 %v1094, %v1092
    %v1201 = vpack.c.b16 %v1095, %v1093
    %v1202 = vpack.c.b16 %v1098, %v1096
    %v1203 = vpack.c.b16 %v1099, %v1097
    %v1204 = vpack.c.b16 %v1102, %v1100
    %v1205 = vpack.c.b16 %v1103, %v1101
    %v1206 = vpack.c.b16 %v1106, %v1104
    %v1207 = vpack.c.b16 %v1107, %v1105
    %v1208 = vpack.c.b16 %v1110, %v1108
    %v1209 = vpack.c.b16 %v1111, %v1109
    %v1210 = vpack.c.b16 %v1114, %v1112
    %v1211 = vpack.c.b16 %v1115, %v1113
    %v1212 = vpack.c.b16 %v1118, %v1116
    %v1213 = vpack.c.b16 %v1119, %v1117
    %v1214 = vpack.c.b16 %v1122, %v1120
    %v1215 = vpack.c.b16 %v1123, %v1121
    %v1216 = vpack.c.b16 %v1126, %v1124
    %v1217 = vpack.c.b16 %v1127, %v1125
    %v1218 = vpack.c.b16 %v1130, %v1128
    %v1219 = vpack.c.b16 %v1131, %v1129
    %v1220 = vpack.c.b16 %v1134, %v1132
    %v1221 = vpack.c.b16 %v1135, %v1133
    %v1222 = vpack.c.b16 %v1138, %v1136
    %v1223 = vpack.c.b16 %v1139, %v1137
    %v1224 = vpack.c.b16 %v1142, %v1140
    %v1225 = vpack.c.b16 %v1143, %v1141
    %v1226 = vpack.c.b16 %v1146, %v1144
    %v1227 = vpack.c.b16 %v1147, %v1145
    %v1228 = vpack.c.b16 %v1150, %v1148
    %v1229 = vpack.c.b16 %v1151, %v1149
    %v1230 = vpack.c.b16 %v1154, %v1152
    %v1231 = vpack.c.b16 %v1155, %v1153
    %v1232 = vpack.c.b16 %v1158, %v1156
    %v1233 = vpack.c.b16 %v1159, %v1157
    %v1234 = vpack.c.b16 %v1162, %v1160
    %v1235 = vpack.c.b16 %v1163, %v1161
    %v1236 = vpack.c.b16 %v1166, %v1164
    %v1237 = vpack.c.b16 %v1167, %v1165
    %v1238 = vpack.c.b16 %v1170, %v1168
    %v1239 = vpack.c.b16 %v1171, %v1169
    %v1240 = vpack.c.b16 %v1174, %v1172
    %v1241 = vpack.c.b16 %v1175, %v1173
    %v1242 = vpack.c.b16 %v1178, %v1176
    %v1243 = vpack.c.b16 %v1179, %v1177
    %1308 = vmatprep.subr.bf16.mxu0 %v1181
    %1309 = vmatpush1.bf16.msra.mxu0 %v1180
    %1310 = vmatprep.subr.bf16.mxu0 %v1183
    %1311 = vmatpush1.bf16.msra.mxu0 %v1182
    %1312 = vmatprep.subr.bf16.mxu0 %v1185
    %1313 = vmatpush1.bf16.msra.mxu0 %v1184
    %1314 = vmatprep.subr.bf16.mxu0 %v1187
    %1315 = vmatpush1.bf16.msra.mxu0 %v1186
    %1316 = vmatprep.subr.bf16.mxu0 %v1189
    %1317 = vmatpush1.bf16.msra.mxu0 %v1188
    %1318 = vmatprep.subr.bf16.mxu0 %v1191
    %1319 = vmatpush1.bf16.msra.mxu0 %v1190
    %1320 = vmatprep.subr.bf16.mxu0 %v1193
    %1321 = vmatpush1.bf16.msra.mxu0 %v1192
    %1322 = vmatprep.subr.bf16.mxu0 %v1195
    %1323 = vmatpush1.bf16.msra.mxu0 %v1194
    %1324 = vmatprep.subr.bf16.mxu0 %v1197
    %1325 = vmatpush1.bf16.msra.mxu0 %v1196
    %1326 = vmatprep.subr.bf16.mxu0 %v1199
    %1327 = vmatpush1.bf16.msra.mxu0 %v1198
    %1328 = vmatprep.subr.bf16.mxu0 %v1201
    %1329 = vmatpush1.bf16.msra.mxu0 %v1200
    %1330 = vmatprep.subr.bf16.mxu0 %v1203
    %1331 = vmatpush1.bf16.msra.mxu0 %v1202
    %1332 = vmatprep.subr.bf16.mxu0 %v1205
    %1333 = vmatpush1.bf16.msra.mxu0 %v1204
    %1334 = vmatprep.subr.bf16.mxu0 %v1207
    %1335 = vmatpush1.bf16.msra.mxu0 %v1206
    %1336 = vmatprep.subr.bf16.mxu0 %v1209
    %1337 = vmatpush1.bf16.msra.mxu0 %v1208
    %1338 = vmatprep.subr.bf16.mxu0 %v1211
    %1339 = vmatpush1.bf16.msra.mxu0 %v1210
    %1340 = vmatprep.mubr.bf16.mxu0 %v881
    %1341 = vmatmul.mubr.bf16.gmra.mrb[0].mxu0 %v880
    %v1342 = vpop.f32.mrb[0].mxu0
    %v1343 = vadd.f32 %v981, %v1342
    %v1344 = vpop.f32.mrb[0].mxu0
    %v1345 = vadd.f32 %v985, %v1344
    %v1346 = vpop.f32.mrb[0].mxu0
    %v1347 = vadd.f32 %v981, %v1346
    %v1348 = vpop.f32.mrb[0].mxu0
    %v1349 = vadd.f32 %v985, %v1348
    %1350 = vmatprep.mubr.bf16.mxu0 %v885
    %1351 = vmatmul.mubr.bf16.gmra.mrb[0].mxu0 %v884
    %v1352 = vpop.f32.mrb[0].mxu0
    %v1353 = vadd.f32 %v981, %v1352
    %v1354 = vpop.f32.mrb[0].mxu0
    %v1355 = vadd.f32 %v985, %v1354
    %v1356 = vpop.f32.mrb[0].mxu0
    %v1357 = vadd.f32 %v981, %v1356
    %v1358 = vpop.f32.mrb[0].mxu0
    %v1359 = vadd.f32 %v985, %v1358
    %1360 = vmatprep.mubr.bf16.mxu0 %v889
    %1361 = vmatmul.mubr.bf16.gmra.mrb[0].mxu0 %v888
    %v1362 = vpop.f32.mrb[0].mxu0
    %v1363 = vadd.f32 %v981, %v1362
    %v1364 = vpop.f32.mrb[0].mxu0
    %v1365 = vadd.f32 %v985, %v1364
    %v1366 = vpop.f32.mrb[0].mxu0
    %v1367 = vadd.f32 %v981, %v1366
    %v1368 = vpop.f32.mrb[0].mxu0
    %v1369 = vadd.f32 %v985, %v1368
    %1370 = vmatprep.mubr.bf16.mxu0 %v893
    %1371 = vmatmul.mubr.bf16.gmra.mrb[0].mxu0 %v892
    %v1372 = vpop.f32.mrb[0].mxu0
    %v1373 = vadd.f32 %v981, %v1372
    %v1374 = vpop.f32.mrb[0].mxu0
    %v1375 = vadd.f32 %v985, %v1374
    %v1376 = vpop.f32.mrb[0].mxu0
    %v1377 = vadd.f32 %v981, %v1376
    %v1378 = vpop.f32.mrb[0].mxu0
    %v1379 = vadd.f32 %v985, %v1378
    %1380 = vmatprep.mubr.bf16.mxu0 %v897
    %1381 = vmatmul.mubr.bf16.gmra.mrb[0].mxu0 %v896
    %v1382 = vpop.f32.mrb[0].mxu0
    %v1383 = vadd.f32 %v981, %v1382
    %v1384 = vpop.f32.mrb[0].mxu0
    %v1385 = vadd.f32 %v985, %v1384
    %v1386 = vpop.f32.mrb[0].mxu0
    %v1387 = vadd.f32 %v981, %v1386
    %v1388 = vpop.f32.mrb[0].mxu0
    %v1389 = vadd.f32 %v985, %v1388
    %1390 = vmatprep.mubr.bf16.mxu0 %v901
    %1391 = vmatmul.mubr.bf16.gmra.mrb[0].mxu0 %v900
    %v1392 = vpop.f32.mrb[0].mxu0
    %v1393 = vadd.f32 %v981, %v1392
    %v1394 = vpop.f32.mrb[0].mxu0
    %v1395 = vadd.f32 %v985, %v1394
    %v1396 = vpop.f32.mrb[0].mxu0
    %v1397 = vadd.f32 %v981, %v1396
    %v1398 = vpop.f32.mrb[0].mxu0
    %v1399 = vadd.f32 %v985, %v1398
    %1400 = vmatprep.mubr.bf16.mxu0 %v905
    %1401 = vmatmul.mubr.bf16.gmra.mrb[0].mxu0 %v904
    %v1402 = vpop.f32.mrb[0].mxu0
    %v1403 = vadd.f32 %v981, %v1402
    %v1404 = vpop.f32.mrb[0].mxu0
    %v1405 = vadd.f32 %v985, %v1404
    %v1406 = vpop.f32.mrb[0].mxu0
    %v1407 = vadd.f32 %v981, %v1406
    %v1408 = vpop.f32.mrb[0].mxu0
    %v1409 = vadd.f32 %v985, %v1408
    %1410 = vmatprep.mubr.bf16.mxu0 %v909
    %1411 = vmatmul.mubr.bf16.gmra.mrb[0].mxu0 %v908
    %v1412 = vpop.f32.mrb[0].mxu0
    %v1413 = vadd.f32 %v981, %v1412
    %v1414 = vpop.f32.mrb[0].mxu0
    %v1415 = vadd.f32 %v985, %v1414
    %v1416 = vpop.f32.mrb[0].mxu0
    %v1417 = vadd.f32 %v981, %v1416
    %v1418 = vpop.f32.mrb[0].mxu0
    %v1419 = vadd.f32 %v985, %v1418
    %1420 = vdwg.mxu0
    %1421 = vmatprep.subr.bf16.mxu0 %v1213
    %1422 = vmatpush1.bf16.msra.mxu0 %v1212
    %1423 = vmatprep.subr.bf16.mxu0 %v1215
    %1424 = vmatpush1.bf16.msra.mxu0 %v1214
    %1425 = vmatprep.subr.bf16.mxu0 %v1217
    %1426 = vmatpush1.bf16.msra.mxu0 %v1216
    %1427 = vmatprep.subr.bf16.mxu0 %v1219
    %1428 = vmatpush1.bf16.msra.mxu0 %v1218
    %1429 = vmatprep.subr.bf16.mxu0 %v1221
    %1430 = vmatpush1.bf16.msra.mxu0 %v1220
    %1431 = vmatprep.subr.bf16.mxu0 %v1223
    %1432 = vmatpush1.bf16.msra.mxu0 %v1222
    %1433 = vmatprep.subr.bf16.mxu0 %v1225
    %1434 = vmatpush1.bf16.msra.mxu0 %v1224
    %1435 = vmatprep.subr.bf16.mxu0 %v1227
    %1436 = vmatpush1.bf16.msra.mxu0 %v1226
    %1437 = vmatprep.subr.bf16.mxu0 %v1229
    %1438 = vmatpush1.bf16.msra.mxu0 %v1228
    %1439 = vmatprep.subr.bf16.mxu0 %v1231
    %1440 = vmatpush1.bf16.msra.mxu0 %v1230
    %1441 = vmatprep.subr.bf16.mxu0 %v1233
    %1442 = vmatpush1.bf16.msra.mxu0 %v1232
    %1443 = vmatprep.subr.bf16.mxu0 %v1235
    %1444 = vmatpush1.bf16.msra.mxu0 %v1234
    %1445 = vmatprep.subr.bf16.mxu0 %v1237
    %1446 = vmatpush1.bf16.msra.mxu0 %v1236
    %1447 = vmatprep.subr.bf16.mxu0 %v1239
    %1448 = vmatpush1.bf16.msra.mxu0 %v1238
    %1449 = vmatprep.subr.bf16.mxu0 %v1241
    %1450 = vmatpush1.bf16.msra.mxu0 %v1240
    %1451 = vmatprep.subr.bf16.mxu0 %v1243
    %1452 = vmatpush1.bf16.msra.mxu0 %v1242
    %1453 = vmatprep.mubr.bf16.mxu0 %v883
    %1454 = vmatmul.mubr.bf16.gmra.mrb[0].mxu0 %v882
    %v1455 = vpop.f32.mrb[0].mxu0
    %v1456 = vadd.f32 %v1343, %v1455
    %v1457 = vpop.f32.mrb[0].mxu0
    %v1458 = vadd.f32 %v1345, %v1457
    %v1459 = vpop.f32.mrb[0].mxu0
    %v1460 = vadd.f32 %v1347, %v1459
    %v1461 = vpop.f32.mrb[0].mxu0
    %v1462 = vadd.f32 %v1349, %v1461
    %1463 = vmatprep.mubr.bf16.mxu0 %v887
    %1464 = vmatmul.mubr.bf16.gmra.mrb[0].mxu0 %v886
    %v1465 = vpop.f32.mrb[0].mxu0
    %v1466 = vadd.f32 %v1353, %v1465
    %v1467 = vpop.f32.mrb[0].mxu0
    %v1468 = vadd.f32 %v1355, %v1467
    %v1469 = vpop.f32.mrb[0].mxu0
    %v1470 = vadd.f32 %v1357, %v1469
    %v1471 = vpop.f32.mrb[0].mxu0
    %v1472 = vadd.f32 %v1359, %v1471
    %1473 = vmatprep.mubr.bf16.mxu0 %v891
    %1474 = vmatmul.mubr.bf16.gmra.mrb[0].mxu0 %v890
    %v1475 = vpop.f32.mrb[0].mxu0
    %v1476 = vadd.f32 %v1363, %v1475
    %v1477 = vpop.f32.mrb[0].mxu0
    %v1478 = vadd.f32 %v1365, %v1477
    %v1479 = vpop.f32.mrb[0].mxu0
    %v1480 = vadd.f32 %v1367, %v1479
    %v1481 = vpop.f32.mrb[0].mxu0
    %v1482 = vadd.f32 %v1369, %v1481
    %1483 = vmatprep.mubr.bf16.mxu0 %v895
    %1484 = vmatmul.mubr.bf16.gmra.mrb[0].mxu0 %v894
    %v1485 = vpop.f32.mrb[0].mxu0
    %v1486 = vadd.f32 %v1373, %v1485
    %v1487 = vpop.f32.mrb[0].mxu0
    %v1488 = vadd.f32 %v1375, %v1487
    %v1489 = vpop.f32.mrb[0].mxu0
    %v1490 = vadd.f32 %v1377, %v1489
    %v1491 = vpop.f32.mrb[0].mxu0
    %v1492 = vadd.f32 %v1379, %v1491
    %1493 = vmatprep.mubr.bf16.mxu0 %v899
    %1494 = vmatmul.mubr.bf16.gmra.mrb[0].mxu0 %v898
    %v1495 = vpop.f32.mrb[0].mxu0
    %v1496 = vadd.f32 %v1383, %v1495
    %v1497 = vpop.f32.mrb[0].mxu0
    %v1498 = vadd.f32 %v1385, %v1497
    %v1499 = vpop.f32.mrb[0].mxu0
    %v1500 = vadd.f32 %v1387, %v1499
    %v1501 = vpop.f32.mrb[0].mxu0
    %v1502 = vadd.f32 %v1389, %v1501
    %1503 = vmatprep.mubr.bf16.mxu0 %v903
    %1504 = vmatmul.mubr.bf16.gmra.mrb[0].mxu0 %v902
    %v1505 = vpop.f32.mrb[0].mxu0
    %v1506 = vadd.f32 %v1393, %v1505
    %v1507 = vpop.f32.mrb[0].mxu0
    %v1508 = vadd.f32 %v1395, %v1507
    %v1509 = vpop.f32.mrb[0].mxu0
    %v1510 = vadd.f32 %v1397, %v1509
    %v1511 = vpop.f32.mrb[0].mxu0
    %v1512 = vadd.f32 %v1399, %v1511
    %1513 = vmatprep.mubr.bf16.mxu0 %v907
    %1514 = vmatmul.mubr.bf16.gmra.mrb[0].mxu0 %v906
    %v1515 = vpop.f32.mrb[0].mxu0
    %v1516 = vadd.f32 %v1403, %v1515
    %v1517 = vpop.f32.mrb[0].mxu0
    %v1518 = vadd.f32 %v1405, %v1517
    %v1519 = vpop.f32.mrb[0].mxu0
    %v1520 = vadd.f32 %v1407, %v1519
    %v1521 = vpop.f32.mrb[0].mxu0
    %v1522 = vadd.f32 %v1409, %v1521
    %1523 = vmatprep.mubr.bf16.mxu0 %v911
    %1524 = vmatmul.mubr.bf16.gmra.mrb[0].mxu0 %v910
    %v1525 = vpop.f32.mrb[0].mxu0
    %v1526 = vadd.f32 %v1413, %v1525
    %v1527 = vpop.f32.mrb[0].mxu0
    %v1528 = vadd.f32 %v1415, %v1527
    %v1529 = vpop.f32.mrb[0].mxu0
    %v1530 = vadd.f32 %v1417, %v1529
    %v1531 = vpop.f32.mrb[0].mxu0
    %v1532 = vadd.f32 %v1419, %v1531
    %1533 = vdwg.mxu0
    %v1534 = vmax.f32 %v1456, 0.0
    %v1535 = vmax.f32 %v1458, 0.0
    %v1536 = vmax.f32 %v1460, 0.0
    %v1537 = vmax.f32 %v1462, 0.0
    %v1538 = vmax.f32 %v1466, 0.0
    %v1539 = vmax.f32 %v1468, 0.0
    %v1540 = vmax.f32 %v1470, 0.0
    %v1541 = vmax.f32 %v1472, 0.0
    %v1542 = vmax.f32 %v1476, 0.0
    %v1543 = vmax.f32 %v1478, 0.0
    %v1544 = vmax.f32 %v1480, 0.0
    %v1545 = vmax.f32 %v1482, 0.0
    %v1546 = vmax.f32 %v1486, 0.0
    %v1547 = vmax.f32 %v1488, 0.0
    %v1548 = vmax.f32 %v1490, 0.0
    %v1549 = vmax.f32 %v1492, 0.0
    %v1550 = vmax.f32 %v1496, 0.0
    %v1551 = vmax.f32 %v1498, 0.0
    %v1552 = vmax.f32 %v1500, 0.0
    %v1553 = vmax.f32 %v1502, 0.0
    %v1554 = vmax.f32 %v1506, 0.0
    %v1555 = vmax.f32 %v1508, 0.0
    %v1556 = vmax.f32 %v1510, 0.0
    %v1557 = vmax.f32 %v1512, 0.0
    %v1558 = vmax.f32 %v1516, 0.0
    %v1559 = vmax.f32 %v1518, 0.0
    %v1560 = vmax.f32 %v1520, 0.0
    %v1561 = vmax.f32 %v1522, 0.0
    %v1562 = vmax.f32 %v1526, 0.0
    %v1563 = vmax.f32 %v1528, 0.0
    %v1564 = vmax.f32 %v1530, 0.0
    %v1565 = vmax.f32 %v1532, 0.0
    %v1566 = vpack.c.bf16 %v1536, %v1534
    %v1567 = vpack.c.bf16 %v1537, %v1535
    %v1568 = vpack.c.bf16 %v1540, %v1538
    %v1569 = vpack.c.bf16 %v1541, %v1539
    %v1570 = vpack.c.bf16 %v1544, %v1542
    %v1571 = vpack.c.bf16 %v1545, %v1543
    %v1572 = vpack.c.bf16 %v1548, %v1546
    %v1573 = vpack.c.bf16 %v1549, %v1547
    %v1574 = vpack.c.bf16 %v1552, %v1550
    %v1575 = vpack.c.bf16 %v1553, %v1551
    %v1576 = vpack.c.bf16 %v1556, %v1554
    %v1577 = vpack.c.bf16 %v1557, %v1555
    %v1578 = vpack.c.bf16 %v1560, %v1558
    %v1579 = vpack.c.bf16 %v1561, %v1559
    %v1580 = vpack.c.bf16 %v1564, %v1562
    %v1581 = vpack.c.bf16 %v1565, %v1563
    %v1582 = vld [vmem:[#allocation11] sm:$0xf]
    %v1583 = vld [vmem:[#allocation11 + $0x4] sm:$0xf]
    %v1584 = vld [vmem:[#allocation11 + $0x8] sm:$0xf]
    %v1585 = vld [vmem:[#allocation11 + $0xc] sm:$0xf]
    %v1586 = vld [vmem:[#allocation11 + $0x10] sm:$0xf]
    %v1587 = vld [vmem:[#allocation11 + $0x14] sm:$0xf]
    %v1588 = vld [vmem:[#allocation11 + $0x18] sm:$0xf]
    %v1589 = vld [vmem:[#allocation11 + $0x1c] sm:$0xf]
    %v1590 = vld [vmem:[#allocation11 + $0x20] sm:$0xf]
    %v1591 = vld [vmem:[#allocation11 + $0x24] sm:$0xf]
    %v1592 = vld [vmem:[#allocation11 + $0x28] sm:$0xf]
    %v1593 = vld [vmem:[#allocation11 + $0x2c] sm:$0xf]
    %v1594 = vld [vmem:[#allocation11 + $0x30] sm:$0xf]
    %v1595 = vld [vmem:[#allocation11 + $0x34] sm:$0xf]
    %v1596 = vld [vmem:[#allocation11 + $0x38] sm:$0xf]
    %v1597 = vld [vmem:[#allocation11 + $0x3c] sm:$0xf]
    %v1598 = vld [vmem:[#allocation11 + $0x40] sm:$0xf]
    %v1599 = vld [vmem:[#allocation11 + $0x44] sm:$0xf]
    %v1600 = vld [vmem:[#allocation11 + $0x48] sm:$0xf]
    %v1601 = vld [vmem:[#allocation11 + $0x4c] sm:$0xf]
    %v1602 = vld [vmem:[#allocation11 + $0x50] sm:$0xf]
    %v1603 = vld [vmem:[#allocation11 + $0x54] sm:$0xf]
    %v1604 = vld [vmem:[#allocation11 + $0x58] sm:$0xf]
    %v1605 = vld [vmem:[#allocation11 + $0x5c] sm:$0xf]
    %v1606 = vld [vmem:[#allocation11 + $0x60] sm:$0xf]
    %v1607 = vld [vmem:[#allocation11 + $0x64] sm:$0xf]
    %v1608 = vld [vmem:[#allocation11 + $0x68] sm:$0xf]
    %v1609 = vld [vmem:[#allocation11 + $0x6c] sm:$0xf]
    %v1610 = vld [vmem:[#allocation11 + $0x70] sm:$0xf]
    %v1611 = vld [vmem:[#allocation11 + $0x74] sm:$0xf]
    %v1612 = vld [vmem:[#allocation11 + $0x78] sm:$0xf]
    %v1613 = vld [vmem:[#allocation11 + $0x7c] sm:$0xf]
    %v1614 = vld [vmem:[#allocation13] sm:$0x1]
    %v1616 = vlaneseq
    %v1617 = vshrl.u32 %v1616, 7
    %v1618 = vsub.s32 0, %v1617
    %v1619 = vrot.slane %v1614, %v1618
    %v1653 = vunpack.c.l.b16 %v1582
    %v1654 = vunpack.c.l.b16 %v1583
    %v1655 = vunpack.c.l.b16 %v1584
    %v1656 = vunpack.c.l.b16 %v1585
    %v1657 = vunpack.c.l.b16 %v1586
    %v1658 = vunpack.c.l.b16 %v1587
    %v1659 = vunpack.c.l.b16 %v1588
    %v1660 = vunpack.c.l.b16 %v1589
    %v1661 = vunpack.c.l.b16 %v1590
    %v1662 = vunpack.c.l.b16 %v1591
    %v1663 = vunpack.c.l.b16 %v1592
    %v1664 = vunpack.c.l.b16 %v1593
    %v1665 = vunpack.c.l.b16 %v1594
    %v1666 = vunpack.c.l.b16 %v1595
    %v1667 = vunpack.c.l.b16 %v1596
    %v1668 = vunpack.c.l.b16 %v1597
    %v1669 = vunpack.c.l.b16 %v1598
    %v1670 = vunpack.c.l.b16 %v1599
    %v1671 = vunpack.c.l.b16 %v1600
    %v1672 = vunpack.c.l.b16 %v1601
    %v1673 = vunpack.c.l.b16 %v1602
    %v1674 = vunpack.c.l.b16 %v1603
    %v1675 = vunpack.c.l.b16 %v1604
    %v1676 = vunpack.c.l.b16 %v1605
    %v1677 = vunpack.c.l.b16 %v1606
    %v1678 = vunpack.c.l.b16 %v1607
    %v1679 = vunpack.c.l.b16 %v1608
    %v1680 = vunpack.c.l.b16 %v1609
    %v1681 = vunpack.c.l.b16 %v1610
    %v1682 = vunpack.c.l.b16 %v1611
    %v1683 = vunpack.c.l.b16 %v1612
    %v1684 = vunpack.c.l.b16 %v1613
    %v1685 = vpack.c.b16 %v1654, %v1653
    %v1686 = vpack.c.b16 %v1656, %v1655
    %v1687 = vpack.c.b16 %v1658, %v1657
    %v1688 = vpack.c.b16 %v1660, %v1659
    %v1689 = vpack.c.b16 %v1662, %v1661
    %v1690 = vpack.c.b16 %v1664, %v1663
    %v1691 = vpack.c.b16 %v1666, %v1665
    %v1692 = vpack.c.b16 %v1668, %v1667
    %v1693 = vpack.c.b16 %v1670, %v1669
    %v1694 = vpack.c.b16 %v1672, %v1671
    %v1695 = vpack.c.b16 %v1674, %v1673
    %v1696 = vpack.c.b16 %v1676, %v1675
    %v1697 = vpack.c.b16 %v1678, %v1677
    %v1698 = vpack.c.b16 %v1680, %v1679
    %v1699 = vpack.c.b16 %v1682, %v1681
    %v1700 = vpack.c.b16 %v1684, %v1683
    %1717 = vmatprep.subr.bf16.mxu0 0
    %1718 = vmatpush1.bf16.msra.mxu0 %v1685
    %1719 = vmatprep.subr.bf16.mxu0 0
    %1720 = vmatpush1.bf16.msra.mxu0 %v1686
    %1721 = vmatprep.subr.bf16.mxu0 0
    %1722 = vmatpush1.bf16.msra.mxu0 %v1687
    %1723 = vmatprep.subr.bf16.mxu0 0
    %1724 = vmatpush1.bf16.msra.mxu0 %v1688
    %1725 = vmatprep.subr.bf16.mxu0 0
    %1726 = vmatpush1.bf16.msra.mxu0 %v1689
    %1727 = vmatprep.subr.bf16.mxu0 0
    %1728 = vmatpush1.bf16.msra.mxu0 %v1690
    %1729 = vmatprep.subr.bf16.mxu0 0
    %1730 = vmatpush1.bf16.msra.mxu0 %v1691
    %1731 = vmatprep.subr.bf16.mxu0 0
    %1732 = vmatpush1.bf16.msra.mxu0 %v1692
    %1733 = vmatprep.subr.bf16.mxu0 0
    %1734 = vmatpush1.bf16.msra.mxu0 %v1693
    %1735 = vmatprep.subr.bf16.mxu0 0
    %1736 = vmatpush1.bf16.msra.mxu0 %v1694
    %1737 = vmatprep.subr.bf16.mxu0 0
    %1738 = vmatpush1.bf16.msra.mxu0 %v1695
    %1739 = vmatprep.subr.bf16.mxu0 0
    %1740 = vmatpush1.bf16.msra.mxu0 %v1696
    %1741 = vmatprep.subr.bf16.mxu0 0
    %1742 = vmatpush1.bf16.msra.mxu0 %v1697
    %1743 = vmatprep.subr.bf16.mxu0 0
    %1744 = vmatpush1.bf16.msra.mxu0 %v1698
    %1745 = vmatprep.subr.bf16.mxu0 0
    %1746 = vmatpush1.bf16.msra.mxu0 %v1699
    %1747 = vmatprep.subr.bf16.mxu0 0
    %1748 = vmatpush1.bf16.msra.mxu0 %v1700
    %1749 = vmatprep.mubr.bf16.mxu0 %v1567
    %1750 = vmatmul.mubr.bf16.gmra.mrb[0].mxu0 %v1566
    %v1751 = vpop.f32.mrb[0].mxu0
    %v1752 = vadd.f32 %v1619, %v1751
    %v1753 = vpop.f32.mrb[0].mxu0
    %v1754 = vpop.f32.mrb[0].mxu0
    %v1755 = vadd.f32 %v1619, %v1754
    %v1756 = vpop.f32.mrb[0].mxu0
    %1757 = vmatprep.mubr.bf16.mxu0 %v1569
    %1758 = vmatmul.mubr.bf16.gmra.mrb[0].mxu0 %v1568
    %v1759 = vpop.f32.mrb[0].mxu0
    %v1760 = vadd.f32 %v1619, %v1759
    %v1761 = vpop.f32.mrb[0].mxu0
    %v1762 = vpop.f32.mrb[0].mxu0
    %v1763 = vadd.f32 %v1619, %v1762
    %v1764 = vpop.f32.mrb[0].mxu0
    %1765 = vmatprep.mubr.bf16.mxu0 %v1571
    %1766 = vmatmul.mubr.bf16.gmra.mrb[0].mxu0 %v1570
    %v1767 = vpop.f32.mrb[0].mxu0
    %v1768 = vadd.f32 %v1619, %v1767
    %v1769 = vpop.f32.mrb[0].mxu0
    %v1770 = vpop.f32.mrb[0].mxu0
    %v1771 = vadd.f32 %v1619, %v1770
    %v1772 = vpop.f32.mrb[0].mxu0
    %1773 = vmatprep.mubr.bf16.mxu0 %v1573
    %1774 = vmatmul.mubr.bf16.gmra.mrb[0].mxu0 %v1572
    %v1775 = vpop.f32.mrb[0].mxu0
    %v1776 = vadd.f32 %v1619, %v1775
    %v1777 = vpop.f32.mrb[0].mxu0
    %v1778 = vpop.f32.mrb[0].mxu0
    %v1779 = vadd.f32 %v1619, %v1778
    %v1780 = vpop.f32.mrb[0].mxu0
    %1781 = vmatprep.mubr.bf16.mxu0 %v1575
    %1782 = vmatmul.mubr.bf16.gmra.mrb[0].mxu0 %v1574
    %v1783 = vpop.f32.mrb[0].mxu0
    %v1784 = vadd.f32 %v1619, %v1783
    %v1785 = vpop.f32.mrb[0].mxu0
    %v1786 = vpop.f32.mrb[0].mxu0
    %v1787 = vadd.f32 %v1619, %v1786
    %v1788 = vpop.f32.mrb[0].mxu0
    %1789 = vmatprep.mubr.bf16.mxu0 %v1577
    %1790 = vmatmul.mubr.bf16.gmra.mrb[0].mxu0 %v1576
    %v1791 = vpop.f32.mrb[0].mxu0
    %v1792 = vadd.f32 %v1619, %v1791
    %v1793 = vpop.f32.mrb[0].mxu0
    %v1794 = vpop.f32.mrb[0].mxu0
    %v1795 = vadd.f32 %v1619, %v1794
    %v1796 = vpop.f32.mrb[0].mxu0
    %1797 = vmatprep.mubr.bf16.mxu0 %v1579
    %1798 = vmatmul.mubr.bf16.gmra.mrb[0].mxu0 %v1578
    %v1799 = vpop.f32.mrb[0].mxu0
    %v1800 = vadd.f32 %v1619, %v1799
    %v1801 = vpop.f32.mrb[0].mxu0
    %v1802 = vpop.f32.mrb[0].mxu0
    %v1803 = vadd.f32 %v1619, %v1802
    %v1804 = vpop.f32.mrb[0].mxu0
    %1805 = vmatprep.mubr.bf16.mxu0 %v1581
    %1806 = vmatmul.mubr.bf16.gmra.mrb[0].mxu0 %v1580
    %v1807 = vpop.f32.mrb[0].mxu0
    %v1808 = vadd.f32 %v1619, %v1807
    %v1809 = vpop.f32.mrb[0].mxu0
    %v1810 = vpop.f32.mrb[0].mxu0
    %v1811 = vadd.f32 %v1619, %v1810
    %v1812 = vpop.f32.mrb[0].mxu0
    %1813 = vdwg.mxu0
    %v1814 = vmax.f32 %v1752, 0.0
    %v1815 = vmax.f32 %v1755, 0.0
    %v1816 = vmax.f32 %v1760, 0.0
    %v1817 = vmax.f32 %v1763, 0.0
    %v1818 = vmax.f32 %v1768, 0.0
    %v1819 = vmax.f32 %v1771, 0.0
    %v1820 = vmax.f32 %v1776, 0.0
    %v1821 = vmax.f32 %v1779, 0.0
    %v1822 = vmax.f32 %v1784, 0.0
    %v1823 = vmax.f32 %v1787, 0.0
    %v1824 = vmax.f32 %v1792, 0.0
    %v1825 = vmax.f32 %v1795, 0.0
    %v1826 = vmax.f32 %v1800, 0.0
    %v1827 = vmax.f32 %v1803, 0.0
    %v1828 = vmax.f32 %v1808, 0.0
    %v1829 = vmax.f32 %v1811, 0.0
    %v1830 = vpack.c.bf16 %v1815, %v1814
    %v1831 = vpack.c.bf16 %v1817, %v1816
    %v1832 = vpack.c.bf16 %v1819, %v1818
    %v1833 = vpack.c.bf16 %v1821, %v1820
    %v1834 = vpack.c.bf16 %v1823, %v1822
    %v1835 = vpack.c.bf16 %v1825, %v1824
    %v1836 = vpack.c.bf16 %v1827, %v1826
    %v1837 = vpack.c.bf16 %v1829, %v1828
    %v1838 = vld [vmem:[#allocation14] sm:$0xf]
    %v1839 = vld [vmem:[#allocation14 + $0x4] sm:$0xf]
    %v1840 = vld [vmem:[#allocation14 + $0x8] sm:$0xf]
    %v1841 = vld [vmem:[#allocation14 + $0xc] sm:$0xf]
    %v1842 = vld [vmem:[#allocation14 + $0x10] sm:$0xf]
    %v1843 = vld [vmem:[#allocation14 + $0x14] sm:$0xf]
    %v1844 = vld [vmem:[#allocation14 + $0x18] sm:$0xf]
    %v1845 = vld [vmem:[#allocation14 + $0x1c] sm:$0xf]
    %v1846 = vld [vmem:[#allocation14 + $0x20] sm:$0xf]
    %v1847 = vld [vmem:[#allocation14 + $0x24] sm:$0xf]
    %v1848 = vld [vmem:[#allocation14 + $0x28] sm:$0xf]
    %v1849 = vld [vmem:[#allocation14 + $0x2c] sm:$0xf]
    %v1850 = vld [vmem:[#allocation14 + $0x30] sm:$0xf]
    %v1851 = vld [vmem:[#allocation14 + $0x34] sm:$0xf]
    %v1852 = vld [vmem:[#allocation14 + $0x38] sm:$0xf]
    %v1853 = vld [vmem:[#allocation14 + $0x3c] sm:$0xf]
    %v1854 = vld [vmem:[#allocation16] sm:$0x1]
    %v1856 = vlaneseq
    %v1857 = vshrl.u32 %v1856, 7
    %v1858 = vsub.s32 0, %v1857
    %v1859 = vrot.slane %v1854, %v1858
    %v1877 = vunpack.c.l.b16 %v1838
    %v1878 = vunpack.c.l.b16 %v1839
    %v1879 = vunpack.c.l.b16 %v1840
    %v1880 = vunpack.c.l.b16 %v1841
    %v1881 = vunpack.c.l.b16 %v1842
    %v1882 = vunpack.c.l.b16 %v1843
    %v1883 = vunpack.c.l.b16 %v1844
    %v1884 = vunpack.c.l.b16 %v1845
    %v1885 = vunpack.c.l.b16 %v1846
    %v1886 = vunpack.c.l.b16 %v1847
    %v1887 = vunpack.c.l.b16 %v1848
    %v1888 = vunpack.c.l.b16 %v1849
    %v1889 = vunpack.c.l.b16 %v1850
    %v1890 = vunpack.c.l.b16 %v1851
    %v1891 = vunpack.c.l.b16 %v1852
    %v1892 = vunpack.c.l.b16 %v1853
    %v1893 = vpack.c.b16 %v1878, %v1877
    %v1894 = vpack.c.b16 %v1880, %v1879
    %v1895 = vpack.c.b16 %v1882, %v1881
    %v1896 = vpack.c.b16 %v1884, %v1883
    %v1897 = vpack.c.b16 %v1886, %v1885
    %v1898 = vpack.c.b16 %v1888, %v1887
    %v1899 = vpack.c.b16 %v1890, %v1889
    %v1900 = vpack.c.b16 %v1892, %v1891
    %1909 = vmatprep.subr.bf16.mxu0 0
    %1910 = vmatpush1.bf16.msra.mxu0 %v1893
    %1911 = vmatprep.subr.bf16.mxu0 0
    %1912 = vmatpush1.bf16.msra.mxu0 %v1894
    %1913 = vmatprep.subr.bf16.mxu0 0
    %1914 = vmatpush1.bf16.msra.mxu0 %v1895
    %1915 = vmatprep.subr.bf16.mxu0 0
    %1916 = vmatpush1.bf16.msra.mxu0 %v1896
    %1917 = vmatprep.subr.bf16.mxu0 0
    %1918 = vmatpush1.bf16.msra.mxu0 %v1897
    %1919 = vmatprep.subr.bf16.mxu0 0
    %1920 = vmatpush1.bf16.msra.mxu0 %v1898
    %1921 = vmatprep.subr.bf16.mxu0 0
    %1922 = vmatpush1.bf16.msra.mxu0 %v1899
    %1923 = vmatprep.subr.bf16.mxu0 0
    %1924 = vmatpush1.bf16.msra.mxu0 %v1900
    %1925 = vmatprep.subr.bf16.mxu0 0
    %1926 = vmatpush1.bf16.msra.mxu0 0
    %1927 = vmatprep.subr.bf16.mxu0 0
    %1928 = vmatpush1.bf16.msra.mxu0 0
    %1929 = vmatprep.subr.bf16.mxu0 0
    %1930 = vmatpush1.bf16.msra.mxu0 0
    %1931 = vmatprep.subr.bf16.mxu0 0
    %1932 = vmatpush1.bf16.msra.mxu0 0
    %1933 = vmatprep.subr.bf16.mxu0 0
    %1934 = vmatpush1.bf16.msra.mxu0 0
    %1935 = vmatprep.subr.bf16.mxu0 0
    %1936 = vmatpush1.bf16.msra.mxu0 0
    %1937 = vmatprep.subr.bf16.mxu0 0
    %1938 = vmatpush1.bf16.msra.mxu0 0
    %1939 = vmatprep.subr.bf16.mxu0 0
    %1940 = vmatpush1.bf16.msra.mxu0 0
    %1941 = vmatprep.mubr.bf16.mxu0 0
    %1942 = vmatmul.mubr.bf16.gmra.mrb[0].mxu0 %v1830
    %v1943 = vpop.f32.mrb[0].mxu0
    %v1944 = vadd.f32 %v1859, %v1943
    %v1945 = vpop.f32.mrb[0].mxu0
    %v1946 = vpop.f32.mrb[0].mxu0
    %v1947 = vadd.f32 %v1859, %v1946
    %v1948 = vpop.f32.mrb[0].mxu0
    %1949 = vmatprep.mubr.bf16.mxu0 0
    %1950 = vmatmul.mubr.bf16.gmra.mrb[0].mxu0 %v1831
    %v1951 = vpop.f32.mrb[0].mxu0
    %v1952 = vadd.f32 %v1859, %v1951
    %v1953 = vpop.f32.mrb[0].mxu0
    %v1954 = vpop.f32.mrb[0].mxu0
    %v1955 = vadd.f32 %v1859, %v1954
    %v1956 = vpop.f32.mrb[0].mxu0
    %1957 = vmatprep.mubr.bf16.mxu0 0
    %1958 = vmatmul.mubr.bf16.gmra.mrb[0].mxu0 %v1832
    %v1959 = vpop.f32.mrb[0].mxu0
    %v1960 = vadd.f32 %v1859, %v1959
    %v1961 = vpop.f32.mrb[0].mxu0
    %v1962 = vpop.f32.mrb[0].mxu0
    %v1963 = vadd.f32 %v1859, %v1962
    %v1964 = vpop.f32.mrb[0].mxu0
    %1965 = vmatprep.mubr.bf16.mxu0 0
    %1966 = vmatmul.mubr.bf16.gmra.mrb[0].mxu0 %v1833
    %v1967 = vpop.f32.mrb[0].mxu0
    %v1968 = vadd.f32 %v1859, %v1967
    %v1969 = vpop.f32.mrb[0].mxu0
    %v1970 = vpop.f32.mrb[0].mxu0
    %v1971 = vadd.f32 %v1859, %v1970
    %v1972 = vpop.f32.mrb[0].mxu0
    %1973 = vmatprep.mubr.bf16.mxu0 0
    %1974 = vmatmul.mubr.bf16.gmra.mrb[0].mxu0 %v1834
    %v1975 = vpop.f32.mrb[0].mxu0
    %v1976 = vadd.f32 %v1859, %v1975
    %v1977 = vpop.f32.mrb[0].mxu0
    %v1978 = vpop.f32.mrb[0].mxu0
    %v1979 = vadd.f32 %v1859, %v1978
    %v1980 = vpop.f32.mrb[0].mxu0
    %1981 = vmatprep.mubr.bf16.mxu0 0
    %1982 = vmatmul.mubr.bf16.gmra.mrb[0].mxu0 %v1835
    %v1983 = vpop.f32.mrb[0].mxu0
    %v1984 = vadd.f32 %v1859, %v1983
    %v1985 = vpop.f32.mrb[0].mxu0
    %v1986 = vpop.f32.mrb[0].mxu0
    %v1987 = vadd.f32 %v1859, %v1986
    %v1988 = vpop.f32.mrb[0].mxu0
    %1989 = vmatprep.mubr.bf16.mxu0 0
    %1990 = vmatmul.mubr.bf16.gmra.mrb[0].mxu0 %v1836
    %v1991 = vpop.f32.mrb[0].mxu0
    %v1992 = vadd.f32 %v1859, %v1991
    %v1993 = vpop.f32.mrb[0].mxu0
    %v1994 = vpop.f32.mrb[0].mxu0
    %v1995 = vadd.f32 %v1859, %v1994
    %v1996 = vpop.f32.mrb[0].mxu0
    %1997 = vmatprep.mubr.bf16.mxu0 0
    %1998 = vmatmul.mubr.bf16.gmra.mrb[0].mxu0 %v1837
    %v1999 = vpop.f32.mrb[0].mxu0
    %v2000 = vadd.f32 %v1859, %v1999
    %v2001 = vpop.f32.mrb[0].mxu0
    %v2002 = vpop.f32.mrb[0].mxu0
    %v2003 = vadd.f32 %v1859, %v2002
    %v2004 = vpop.f32.mrb[0].mxu0
    %2005 = vdwg.mxu0
    %2006 = vst [vmem:[#allocation35] sm:$0xff] %v1944
    %2007 = vst [vmem:[#allocation35 + $0x8] sm:$0xff] %v1947
    %2008 = vst [vmem:[#allocation35 + $0x10] sm:$0xff] %v1952
    %2009 = vst [vmem:[#allocation35 + $0x18] sm:$0xff] %v1955
    %2010 = vst [vmem:[#allocation35 + $0x20] sm:$0xff] %v1960
    %2011 = vst [vmem:[#allocation35 + $0x28] sm:$0xff] %v1963
    %2012 = vst [vmem:[#allocation35 + $0x30] sm:$0xff] %v1968
    %2013 = vst [vmem:[#allocation35 + $0x38] sm:$0xff] %v1971
    %2014 = vst [vmem:[#allocation35 + $0x40] sm:$0xff] %v1976
    %2015 = vst [vmem:[#allocation35 + $0x48] sm:$0xff] %v1979
    %2016 = vst [vmem:[#allocation35 + $0x50] sm:$0xff] %v1984
    %2017 = vst [vmem:[#allocation35 + $0x58] sm:$0xff] %v1987
    %2018 = vst [vmem:[#allocation35 + $0x60] sm:$0xff] %v1992
    %2019 = vst [vmem:[#allocation35 + $0x68] sm:$0xff] %v1995
    %2020 = vst [vmem:[#allocation35 + $0x70] sm:$0xff] %v2000
    %2021 = vst [vmem:[#allocation35 + $0x78] sm:$0xff] %v2003
    %v2022 = vpack.c.bf16 %v1947, %v1944
    %v2023 = vpack.c.bf16 %v1955, %v1952
    %v2024 = vpack.c.bf16 %v1963, %v1960
    %v2025 = vpack.c.bf16 %v1971, %v1968
    %v2026 = vpack.c.bf16 %v1979, %v1976
    %v2027 = vpack.c.bf16 %v1987, %v1984
    %v2028 = vpack.c.bf16 %v1995, %v1992
    %v2029 = vpack.c.bf16 %v2003, %v2000
    %v2030 = vld [vmem:[#allocation17] sm:$0xf]
    %v2031 = vld [vmem:[#allocation17 + $0x4] sm:$0xf]
    %v2032 = vld [vmem:[#allocation17 + $0x8] sm:$0xf]
    %v2033 = vld [vmem:[#allocation17 + $0xc] sm:$0xf]
    %v2034 = vld [vmem:[#allocation17 + $0x10] sm:$0xf]
    %v2035 = vld [vmem:[#allocation17 + $0x14] sm:$0xf]
    %v2036 = vld [vmem:[#allocation17 + $0x18] sm:$0xf]
    %v2037 = vld [vmem:[#allocation17 + $0x1c] sm:$0xf]
    %v2038 = vld [vmem:[#allocation17 + $0x20] sm:$0xf]
    %v2039 = vld [vmem:[#allocation17 + $0x24] sm:$0xf]
    %v2040 = vld [vmem:[#allocation17 + $0x28] sm:$0xf]
    %v2041 = vld [vmem:[#allocation17 + $0x2c] sm:$0xf]
    %v2042 = vld [vmem:[#allocation17 + $0x30] sm:$0xf]
    %v2043 = vld [vmem:[#allocation17 + $0x34] sm:$0xf]
    %v2044 = vld [vmem:[#allocation17 + $0x38] sm:$0xf]
    %v2045 = vld [vmem:[#allocation17 + $0x3c] sm:$0xf]
    %v2046 = vld [vmem:[#allocation19] sm:$0x1]
    %v2048 = vlaneseq
    %v2049 = vshrl.u32 %v2048, 7
    %v2050 = vsub.s32 0, %v2049
    %v2051 = vrot.slane %v2046, %v2050
    %v2069 = vunpack.c.l.b16 %v2030
    %v2070 = vunpack.c.l.b16 %v2031
    %v2071 = vunpack.c.l.b16 %v2032
    %v2072 = vunpack.c.l.b16 %v2033
    %v2073 = vunpack.c.l.b16 %v2034
    %v2074 = vunpack.c.l.b16 %v2035
    %v2075 = vunpack.c.l.b16 %v2036
    %v2076 = vunpack.c.l.b16 %v2037
    %v2077 = vunpack.c.l.b16 %v2038
    %v2078 = vunpack.c.l.b16 %v2039
    %v2079 = vunpack.c.l.b16 %v2040
    %v2080 = vunpack.c.l.b16 %v2041
    %v2081 = vunpack.c.l.b16 %v2042
    %v2082 = vunpack.c.l.b16 %v2043
    %v2083 = vunpack.c.l.b16 %v2044
    %v2084 = vunpack.c.l.b16 %v2045
    %v2085 = vpack.c.b16 %v2070, %v2069
    %v2086 = vpack.c.b16 %v2072, %v2071
    %v2087 = vpack.c.b16 %v2074, %v2073
    %v2088 = vpack.c.b16 %v2076, %v2075
    %v2089 = vpack.c.b16 %v2078, %v2077
    %v2090 = vpack.c.b16 %v2080, %v2079
    %v2091 = vpack.c.b16 %v2082, %v2081
    %v2092 = vpack.c.b16 %v2084, %v2083
    %2101 = vmatprep.subr.bf16.mxu0 0
    %2102 = vmatpush1.bf16.msra.mxu0 %v2085
    %2103 = vmatprep.subr.bf16.mxu0 0
    %2104 = vmatpush1.bf16.msra.mxu0 %v2086
    %2105 = vmatprep.subr.bf16.mxu0 0
    %2106 = vmatpush1.bf16.msra.mxu0 %v2087
    %2107 = vmatprep.subr.bf16.mxu0 0
    %2108 = vmatpush1.bf16.msra.mxu0 %v2088
    %2109 = vmatprep.subr.bf16.mxu0 0
    %2110 = vmatpush1.bf16.msra.mxu0 %v2089
    %2111 = vmatprep.subr.bf16.mxu0 0
    %2112 = vmatpush1.bf16.msra.mxu0 %v2090
    %2113 = vmatprep.subr.bf16.mxu0 0
    %2114 = vmatpush1.bf16.msra.mxu0 %v2091
    %2115 = vmatprep.subr.bf16.mxu0 0
    %2116 = vmatpush1.bf16.msra.mxu0 %v2092
    %2117 = vmatprep.subr.bf16.mxu0 0
    %2118 = vmatpush1.bf16.msra.mxu0 0
    %2119 = vmatprep.subr.bf16.mxu0 0
    %2120 = vmatpush1.bf16.msra.mxu0 0
    %2121 = vmatprep.subr.bf16.mxu0 0
    %2122 = vmatpush1.bf16.msra.mxu0 0
    %2123 = vmatprep.subr.bf16.mxu0 0
    %2124 = vmatpush1.bf16.msra.mxu0 0
    %2125 = vmatprep.subr.bf16.mxu0 0
    %2126 = vmatpush1.bf16.msra.mxu0 0
    %2127 = vmatprep.subr.bf16.mxu0 0
    %2128 = vmatpush1.bf16.msra.mxu0 0
    %2129 = vmatprep.subr.bf16.mxu0 0
    %2130 = vmatpush1.bf16.msra.mxu0 0
    %2131 = vmatprep.subr.bf16.mxu0 0
    %2132 = vmatpush1.bf16.msra.mxu0 0
    %2133 = vmatprep.mubr.bf16.mxu0 0
    %2134 = vmatmul.mubr.bf16.gmra.mrb[0].mxu0 %v2022
    %v2135 = vpop.f32.mrb[0].mxu0
    %v2136 = vadd.f32 %v2051, %v2135
    %v2137 = vpop.f32.mrb[0].mxu0
    %v2138 = vpop.f32.mrb[0].mxu0
    %v2139 = vadd.f32 %v2051, %v2138
    %v2140 = vpop.f32.mrb[0].mxu0
    %2141 = vmatprep.mubr.bf16.mxu0 0
    %2142 = vmatmul.mubr.bf16.gmra.mrb[0].mxu0 %v2023
    %v2143 = vpop.f32.mrb[0].mxu0
    %v2144 = vadd.f32 %v2051, %v2143
    %v2145 = vpop.f32.mrb[0].mxu0
    %v2146 = vpop.f32.mrb[0].mxu0
    %v2147 = vadd.f32 %v2051, %v2146
    %v2148 = vpop.f32.mrb[0].mxu0
    %2149 = vmatprep.mubr.bf16.mxu0 0
    %2150 = vmatmul.mubr.bf16.gmra.mrb[0].mxu0 %v2024
    %v2151 = vpop.f32.mrb[0].mxu0
    %v2152 = vadd.f32 %v2051, %v2151
    %v2153 = vpop.f32.mrb[0].mxu0
    %v2154 = vpop.f32.mrb[0].mxu0
    %v2155 = vadd.f32 %v2051, %v2154
    %v2156 = vpop.f32.mrb[0].mxu0
    %2157 = vmatprep.mubr.bf16.mxu0 0
    %2158 = vmatmul.mubr.bf16.gmra.mrb[0].mxu0 %v2025
    %v2159 = vpop.f32.mrb[0].mxu0
    %v2160 = vadd.f32 %v2051, %v2159
    %v2161 = vpop.f32.mrb[0].mxu0
    %v2162 = vpop.f32.mrb[0].mxu0
    %v2163 = vadd.f32 %v2051, %v2162
    %v2164 = vpop.f32.mrb[0].mxu0
    %2165 = vmatprep.mubr.bf16.mxu0 0
    %2166 = vmatmul.mubr.bf16.gmra.mrb[0].mxu0 %v2026
    %v2167 = vpop.f32.mrb[0].mxu0
    %v2168 = vadd.f32 %v2051, %v2167
    %v2169 = vpop.f32.mrb[0].mxu0
    %v2170 = vpop.f32.mrb[0].mxu0
    %v2171 = vadd.f32 %v2051, %v2170
    %v2172 = vpop.f32.mrb[0].mxu0
    %2173 = vmatprep.mubr.bf16.mxu0 0
    %2174 = vmatmul.mubr.bf16.gmra.mrb[0].mxu0 %v2027
    %v2175 = vpop.f32.mrb[0].mxu0
    %v2176 = vadd.f32 %v2051, %v2175
    %v2177 = vpop.f32.mrb[0].mxu0
    %v2178 = vpop.f32.mrb[0].mxu0
    %v2179 = vadd.f32 %v2051, %v2178
    %v2180 = vpop.f32.mrb[0].mxu0
    %2181 = vmatprep.mubr.bf16.mxu0 0
    %2182 = vmatmul.mubr.bf16.gmra.mrb[0].mxu0 %v2028
    %v2183 = vpop.f32.mrb[0].mxu0
    %v2184 = vadd.f32 %v2051, %v2183
    %v2185 = vpop.f32.mrb[0].mxu0
    %v2186 = vpop.f32.mrb[0].mxu0
    %v2187 = vadd.f32 %v2051, %v2186
    %v2188 = vpop.f32.mrb[0].mxu0
    %2189 = vmatprep.mubr.bf16.mxu0 0
    %2190 = vmatmul.mubr.bf16.gmra.mrb[0].mxu0 %v2029
    %v2191 = vpop.f32.mrb[0].mxu0
    %v2192 = vadd.f32 %v2051, %v2191
    %v2193 = vpop.f32.mrb[0].mxu0
    %v2194 = vpop.f32.mrb[0].mxu0
    %v2195 = vadd.f32 %v2051, %v2194
    %v2196 = vpop.f32.mrb[0].mxu0
    %2197 = vdwg.mxu0
    %v2198 = vmax.f32 %v2136, 0.0
    %v2199 = vmax.f32 %v2139, 0.0
    %v2200 = vmax.f32 %v2144, 0.0
    %v2201 = vmax.f32 %v2147, 0.0
    %v2202 = vmax.f32 %v2152, 0.0
    %v2203 = vmax.f32 %v2155, 0.0
    %v2204 = vmax.f32 %v2160, 0.0
    %v2205 = vmax.f32 %v2163, 0.0
    %v2206 = vmax.f32 %v2168, 0.0
    %v2207 = vmax.f32 %v2171, 0.0
    %v2208 = vmax.f32 %v2176, 0.0
    %v2209 = vmax.f32 %v2179, 0.0
    %v2210 = vmax.f32 %v2184, 0.0
    %v2211 = vmax.f32 %v2187, 0.0
    %v2212 = vmax.f32 %v2192, 0.0
    %v2213 = vmax.f32 %v2195, 0.0
    %v2214 = vpack.c.bf16 %v2199, %v2198
    %v2215 = vpack.c.bf16 %v2201, %v2200
    %v2216 = vpack.c.bf16 %v2203, %v2202
    %v2217 = vpack.c.bf16 %v2205, %v2204
    %v2218 = vpack.c.bf16 %v2207, %v2206
    %v2219 = vpack.c.bf16 %v2209, %v2208
    %v2220 = vpack.c.bf16 %v2211, %v2210
    %v2221 = vpack.c.bf16 %v2213, %v2212
    %v2222 = vld [vmem:[#allocation20] sm:$0xff]
    %v2223 = vld [vmem:[#allocation20 + $0x8] sm:$0xff]
    %v2224 = vld [vmem:[#allocation20 + $0x10] sm:$0xff]
    %v2225 = vld [vmem:[#allocation20 + $0x18] sm:$0xff]
    %v2226 = vld [vmem:[#allocation20 + $0x20] sm:$0xff]
    %v2227 = vld [vmem:[#allocation20 + $0x28] sm:$0xff]
    %v2228 = vld [vmem:[#allocation20 + $0x30] sm:$0xff]
    %v2229 = vld [vmem:[#allocation20 + $0x38] sm:$0xff]
    %v2230 = vld [vmem:[#allocation20 + $0x40] sm:$0xff]
    %v2231 = vld [vmem:[#allocation20 + $0x48] sm:$0xff]
    %v2232 = vld [vmem:[#allocation20 + $0x50] sm:$0xff]
    %v2233 = vld [vmem:[#allocation20 + $0x58] sm:$0xff]
    %v2234 = vld [vmem:[#allocation20 + $0x60] sm:$0xff]
    %v2235 = vld [vmem:[#allocation20 + $0x68] sm:$0xff]
    %v2236 = vld [vmem:[#allocation20 + $0x70] sm:$0xff]
    %v2237 = vld [vmem:[#allocation20 + $0x78] sm:$0xff]
    %v2238 = vld [vmem:[#allocation22] sm:$0x3]
    %v2240 = vlaneseq
    %v2241 = vshrl.u32 %v2240, 7
    %v2242 = vsub.s32 0, %v2241
    %v2243 = vrot.slane %v2238, %v2242
    %v2244 = vlaneseq
    %v2245 = vshrl.u32 %v2244, 7
    %v2246 = vsub.s32 1, %v2245
    %v2247 = vrot.slane %v2238, %v2246
    %v2266 = vunpack.c.l.b16 %v2222
    %v2267 = vunpack.c.h.b16 %v2222
    %v2268 = vunpack.c.l.b16 %v2223
    %v2269 = vunpack.c.h.b16 %v2223
    %v2270 = vunpack.c.l.b16 %v2224
    %v2271 = vunpack.c.h.b16 %v2224
    %v2272 = vunpack.c.l.b16 %v2225
    %v2273 = vunpack.c.h.b16 %v2225
    %v2274 = vunpack.c.l.b16 %v2226
    %v2275 = vunpack.c.h.b16 %v2226
    %v2276 = vunpack.c.l.b16 %v2227
    %v2277 = vunpack.c.h.b16 %v2227
    %v2278 = vunpack.c.l.b16 %v2228
    %v2279 = vunpack.c.h.b16 %v2228
    %v2280 = vunpack.c.l.b16 %v2229
    %v2281 = vunpack.c.h.b16 %v2229
    %v2282 = vunpack.c.l.b16 %v2230
    %v2283 = vunpack.c.h.b16 %v2230
    %v2284 = vunpack.c.l.b16 %v2231
    %v2285 = vunpack.c.h.b16 %v2231
    %v2286 = vunpack.c.l.b16 %v2232
    %v2287 = vunpack.c.h.b16 %v2232
    %v2288 = vunpack.c.l.b16 %v2233
    %v2289 = vunpack.c.h.b16 %v2233
    %v2290 = vunpack.c.l.b16 %v2234
    %v2291 = vunpack.c.h.b16 %v2234
    %v2292 = vunpack.c.l.b16 %v2235
    %v2293 = vunpack.c.h.b16 %v2235
    %v2294 = vunpack.c.l.b16 %v2236
    %v2295 = vunpack.c.h.b16 %v2236
    %v2296 = vunpack.c.l.b16 %v2237
    %v2297 = vunpack.c.h.b16 %v2237
    %v2298 = vpack.c.b16 %v2268, %v2266
    %v2299 = vpack.c.b16 %v2269, %v2267
    %v2300 = vpack.c.b16 %v2272, %v2270
    %v2301 = vpack.c.b16 %v2273, %v2271
    %v2302 = vpack.c.b16 %v2276, %v2274
    %v2303 = vpack.c.b16 %v2277, %v2275
    %v2304 = vpack.c.b16 %v2280, %v2278
    %v2305 = vpack.c.b16 %v2281, %v2279
    %v2306 = vpack.c.b16 %v2284, %v2282
    %v2307 = vpack.c.b16 %v2285, %v2283
    %v2308 = vpack.c.b16 %v2288, %v2286
    %v2309 = vpack.c.b16 %v2289, %v2287
    %v2310 = vpack.c.b16 %v2292, %v2290
    %v2311 = vpack.c.b16 %v2293, %v2291
    %v2312 = vpack.c.b16 %v2296, %v2294
    %v2313 = vpack.c.b16 %v2297, %v2295
    %2330 = vmatprep.subr.bf16.mxu0 %v2299
    %2331 = vmatpush1.bf16.msra.mxu0 %v2298
    %2332 = vmatprep.subr.bf16.mxu0 %v2301
    %2333 = vmatpush1.bf16.msra.mxu0 %v2300
    %2334 = vmatprep.subr.bf16.mxu0 %v2303
    %2335 = vmatpush1.bf16.msra.mxu0 %v2302
    %2336 = vmatprep.subr.bf16.mxu0 %v2305
    %2337 = vmatpush1.bf16.msra.mxu0 %v2304
    %2338 = vmatprep.subr.bf16.mxu0 %v2307
    %2339 = vmatpush1.bf16.msra.mxu0 %v2306
    %2340 = vmatprep.subr.bf16.mxu0 %v2309
    %2341 = vmatpush1.bf16.msra.mxu0 %v2308
    %2342 = vmatprep.subr.bf16.mxu0 %v2311
    %2343 = vmatpush1.bf16.msra.mxu0 %v2310
    %2344 = vmatprep.subr.bf16.mxu0 %v2313
    %2345 = vmatpush1.bf16.msra.mxu0 %v2312
    %2346 = vmatprep.subr.bf16.mxu0 0
    %2347 = vmatpush1.bf16.msra.mxu0 0
    %2348 = vmatprep.subr.bf16.mxu0 0
    %2349 = vmatpush1.bf16.msra.mxu0 0
    %2350 = vmatprep.subr.bf16.mxu0 0
    %2351 = vmatpush1.bf16.msra.mxu0 0
    %2352 = vmatprep.subr.bf16.mxu0 0
    %2353 = vmatpush1.bf16.msra.mxu0 0
    %2354 = vmatprep.subr.bf16.mxu0 0
    %2355 = vmatpush1.bf16.msra.mxu0 0
    %2356 = vmatprep.subr.bf16.mxu0 0
    %2357 = vmatpush1.bf16.msra.mxu0 0
    %2358 = vmatprep.subr.bf16.mxu0 0
    %2359 = vmatpush1.bf16.msra.mxu0 0
    %2360 = vmatprep.subr.bf16.mxu0 0
    %2361 = vmatpush1.bf16.msra.mxu0 0
    %2362 = vmatprep.mubr.bf16.mxu0 0
    %2363 = vmatmul.mubr.bf16.gmra.mrb[0].mxu0 %v2214
    %v2364 = vpop.f32.mrb[0].mxu0
    %v2365 = vadd.f32 %v2243, %v2364
    %v2366 = vpop.f32.mrb[0].mxu0
    %v2367 = vadd.f32 %v2247, %v2366
    %v2368 = vpop.f32.mrb[0].mxu0
    %v2369 = vadd.f32 %v2243, %v2368
    %v2370 = vpop.f32.mrb[0].mxu0
    %v2371 = vadd.f32 %v2247, %v2370
    %2372 = vmatprep.mubr.bf16.mxu0 0
    %2373 = vmatmul.mubr.bf16.gmra.mrb[0].mxu0 %v2215
    %v2374 = vpop.f32.mrb[0].mxu0
    %v2375 = vadd.f32 %v2243, %v2374
    %v2376 = vpop.f32.mrb[0].mxu0
    %v2377 = vadd.f32 %v2247, %v2376
    %v2378 = vpop.f32.mrb[0].mxu0
    %v2379 = vadd.f32 %v2243, %v2378
    %v2380 = vpop.f32.mrb[0].mxu0
    %v2381 = vadd.f32 %v2247, %v2380
    %2382 = vmatprep.mubr.bf16.mxu0 0
    %2383 = vmatmul.mubr.bf16.gmra.mrb[0].mxu0 %v2216
    %v2384 = vpop.f32.mrb[0].mxu0
    %v2385 = vadd.f32 %v2243, %v2384
    %v2386 = vpop.f32.mrb[0].mxu0
    %v2387 = vadd.f32 %v2247, %v2386
    %v2388 = vpop.f32.mrb[0].mxu0
    %v2389 = vadd.f32 %v2243, %v2388
    %v2390 = vpop.f32.mrb[0].mxu0
    %v2391 = vadd.f32 %v2247, %v2390
    %2392 = vmatprep.mubr.bf16.mxu0 0
    %2393 = vmatmul.mubr.bf16.gmra.mrb[0].mxu0 %v2217
    %v2394 = vpop.f32.mrb[0].mxu0
    %v2395 = vadd.f32 %v2243, %v2394
    %v2396 = vpop.f32.mrb[0].mxu0
    %v2397 = vadd.f32 %v2247, %v2396
    %v2398 = vpop.f32.mrb[0].mxu0
    %v2399 = vadd.f32 %v2243, %v2398
    %v2400 = vpop.f32.mrb[0].mxu0
    %v2401 = vadd.f32 %v2247, %v2400
    %2402 = vmatprep.mubr.bf16.mxu0 0
    %2403 = vmatmul.mubr.bf16.gmra.mrb[0].mxu0 %v2218
    %v2404 = vpop.f32.mrb[0].mxu0
    %v2405 = vadd.f32 %v2243, %v2404
    %v2406 = vpop.f32.mrb[0].mxu0
    %v2407 = vadd.f32 %v2247, %v2406
    %v2408 = vpop.f32.mrb[0].mxu0
    %v2409 = vadd.f32 %v2243, %v2408
    %v2410 = vpop.f32.mrb[0].mxu0
    %v2411 = vadd.f32 %v2247, %v2410
    %2412 = vmatprep.mubr.bf16.mxu0 0
    %2413 = vmatmul.mubr.bf16.gmra.mrb[0].mxu0 %v2219
    %v2414 = vpop.f32.mrb[0].mxu0
    %v2415 = vadd.f32 %v2243, %v2414
    %v2416 = vpop.f32.mrb[0].mxu0
    %v2417 = vadd.f32 %v2247, %v2416
    %v2418 = vpop.f32.mrb[0].mxu0
    %v2419 = vadd.f32 %v2243, %v2418
    %v2420 = vpop.f32.mrb[0].mxu0
    %v2421 = vadd.f32 %v2247, %v2420
    %2422 = vmatprep.mubr.bf16.mxu0 0
    %2423 = vmatmul.mubr.bf16.gmra.mrb[0].mxu0 %v2220
    %v2424 = vpop.f32.mrb[0].mxu0
    %v2425 = vadd.f32 %v2243, %v2424
    %v2426 = vpop.f32.mrb[0].mxu0
    %v2427 = vadd.f32 %v2247, %v2426
    %v2428 = vpop.f32.mrb[0].mxu0
    %v2429 = vadd.f32 %v2243, %v2428
    %v2430 = vpop.f32.mrb[0].mxu0
    %v2431 = vadd.f32 %v2247, %v2430
    %2432 = vmatprep.mubr.bf16.mxu0 0
    %2433 = vmatmul.mubr.bf16.gmra.mrb[0].mxu0 %v2221
    %v2434 = vpop.f32.mrb[0].mxu0
    %v2435 = vadd.f32 %v2243, %v2434
    %v2436 = vpop.f32.mrb[0].mxu0
    %v2437 = vadd.f32 %v2247, %v2436
    %v2438 = vpop.f32.mrb[0].mxu0
    %v2439 = vadd.f32 %v2243, %v2438
    %v2440 = vpop.f32.mrb[0].mxu0
    %v2441 = vadd.f32 %v2247, %v2440
    %2442 = vdwg.mxu0
    %v2443 = vmax.f32 %v2365, 0.0
    %v2444 = vmax.f32 %v2367, 0.0
    %v2445 = vmax.f32 %v2369, 0.0
    %v2446 = vmax.f32 %v2371, 0.0
    %v2447 = vmax.f32 %v2375, 0.0
    %v2448 = vmax.f32 %v2377, 0.0
    %v2449 = vmax.f32 %v2379, 0.0
    %v2450 = vmax.f32 %v2381, 0.0
    %v2451 = vmax.f32 %v2385, 0.0
    %v2452 = vmax.f32 %v2387, 0.0
    %v2453 = vmax.f32 %v2389, 0.0
    %v2454 = vmax.f32 %v2391, 0.0
    %v2455 = vmax.f32 %v2395, 0.0
    %v2456 = vmax.f32 %v2397, 0.0
    %v2457 = vmax.f32 %v2399, 0.0
    %v2458 = vmax.f32 %v2401, 0.0
    %v2459 = vmax.f32 %v2405, 0.0
    %v2460 = vmax.f32 %v2407, 0.0
    %v2461 = vmax.f32 %v2409, 0.0
    %v2462 = vmax.f32 %v2411, 0.0
    %v2463 = vmax.f32 %v2415, 0.0
    %v2464 = vmax.f32 %v2417, 0.0
    %v2465 = vmax.f32 %v2419, 0.0
    %v2466 = vmax.f32 %v2421, 0.0
    %v2467 = vmax.f32 %v2425, 0.0
    %v2468 = vmax.f32 %v2427, 0.0
    %v2469 = vmax.f32 %v2429, 0.0
    %v2470 = vmax.f32 %v2431, 0.0
    %v2471 = vmax.f32 %v2435, 0.0
    %v2472 = vmax.f32 %v2437, 0.0
    %v2473 = vmax.f32 %v2439, 0.0
    %v2474 = vmax.f32 %v2441, 0.0
    %v2475 = vpack.c.bf16 %v2445, %v2443
    %v2476 = vpack.c.bf16 %v2446, %v2444
    %v2477 = vpack.c.bf16 %v2449, %v2447
    %v2478 = vpack.c.bf16 %v2450, %v2448
    %v2479 = vpack.c.bf16 %v2453, %v2451
    %v2480 = vpack.c.bf16 %v2454, %v2452
    %v2481 = vpack.c.bf16 %v2457, %v2455
    %v2482 = vpack.c.bf16 %v2458, %v2456
    %v2483 = vpack.c.bf16 %v2461, %v2459
    %v2484 = vpack.c.bf16 %v2462, %v2460
    %v2485 = vpack.c.bf16 %v2465, %v2463
    %v2486 = vpack.c.bf16 %v2466, %v2464
    %v2487 = vpack.c.bf16 %v2469, %v2467
    %v2488 = vpack.c.bf16 %v2470, %v2468
    %v2489 = vpack.c.bf16 %v2473, %v2471
    %v2490 = vpack.c.bf16 %v2474, %v2472
    %v2491 = vld [vmem:[#allocation23] sm:$0xff]
    %v2492 = vld [vmem:[#allocation23 + $0x8] sm:$0xff]
    %v2493 = vld [vmem:[#allocation23 + $0x10] sm:$0xff]
    %v2494 = vld [vmem:[#allocation23 + $0x18] sm:$0xff]
    %v2495 = vld [vmem:[#allocation23 + $0x20] sm:$0xff]
    %v2496 = vld [vmem:[#allocation23 + $0x28] sm:$0xff]
    %v2497 = vld [vmem:[#allocation23 + $0x30] sm:$0xff]
    %v2498 = vld [vmem:[#allocation23 + $0x38] sm:$0xff]
    %v2499 = vld [vmem:[#allocation23 + $0x40] sm:$0xff]
    %v2500 = vld [vmem:[#allocation23 + $0x48] sm:$0xff]
    %v2501 = vld [vmem:[#allocation23 + $0x50] sm:$0xff]
    %v2502 = vld [vmem:[#allocation23 + $0x58] sm:$0xff]
    %v2503 = vld [vmem:[#allocation23 + $0x60] sm:$0xff]
    %v2504 = vld [vmem:[#allocation23 + $0x68] sm:$0xff]
    %v2505 = vld [vmem:[#allocation23 + $0x70] sm:$0xff]
    %v2506 = vld [vmem:[#allocation23 + $0x78] sm:$0xff]
    %v2507 = vld [vmem:[#allocation23 + $0x80] sm:$0xff]
    %v2508 = vld [vmem:[#allocation23 + $0x88] sm:$0xff]
    %v2509 = vld [vmem:[#allocation23 + $0x90] sm:$0xff]
    %v2510 = vld [vmem:[#allocation23 + $0x98] sm:$0xff]
    %v2511 = vld [vmem:[#allocation23 + $0xa0] sm:$0xff]
    %v2512 = vld [vmem:[#allocation23 + $0xa8] sm:$0xff]
    %v2513 = vld [vmem:[#allocation23 + $0xb0] sm:$0xff]
    %v2514 = vld [vmem:[#allocation23 + $0xb8] sm:$0xff]
    %v2515 = vld [vmem:[#allocation23 + $0xc0] sm:$0xff]
    %v2516 = vld [vmem:[#allocation23 + $0xc8] sm:$0xff]
    %v2517 = vld [vmem:[#allocation23 + $0xd0] sm:$0xff]
    %v2518 = vld [vmem:[#allocation23 + $0xd8] sm:$0xff]
    %v2519 = vld [vmem:[#allocation23 + $0xe0] sm:$0xff]
    %v2520 = vld [vmem:[#allocation23 + $0xe8] sm:$0xff]
    %v2521 = vld [vmem:[#allocation23 + $0xf0] sm:$0xff]
    %v2522 = vld [vmem:[#allocation23 + $0xf8] sm:$0xff]
    %v2523 = vld [vmem:[#allocation23 + $0x100] sm:$0xff]
    %v2524 = vld [vmem:[#allocation23 + $0x108] sm:$0xff]
    %v2525 = vld [vmem:[#allocation23 + $0x110] sm:$0xff]
    %v2526 = vld [vmem:[#allocation23 + $0x118] sm:$0xff]
    %v2527 = vld [vmem:[#allocation23 + $0x120] sm:$0xff]
    %v2528 = vld [vmem:[#allocation23 + $0x128] sm:$0xff]
    %v2529 = vld [vmem:[#allocation23 + $0x130] sm:$0xff]
    %v2530 = vld [vmem:[#allocation23 + $0x138] sm:$0xff]
    %v2531 = vld [vmem:[#allocation23 + $0x140] sm:$0xff]
    %v2532 = vld [vmem:[#allocation23 + $0x148] sm:$0xff]
    %v2533 = vld [vmem:[#allocation23 + $0x150] sm:$0xff]
    %v2534 = vld [vmem:[#allocation23 + $0x158] sm:$0xff]
    %v2535 = vld [vmem:[#allocation23 + $0x160] sm:$0xff]
    %v2536 = vld [vmem:[#allocation23 + $0x168] sm:$0xff]
    %v2537 = vld [vmem:[#allocation23 + $0x170] sm:$0xff]
    %v2538 = vld [vmem:[#allocation23 + $0x178] sm:$0xff]
    %v2539 = vld [vmem:[#allocation23 + $0x180] sm:$0xff]
    %v2540 = vld [vmem:[#allocation23 + $0x188] sm:$0xff]
    %v2541 = vld [vmem:[#allocation23 + $0x190] sm:$0xff]
    %v2542 = vld [vmem:[#allocation23 + $0x198] sm:$0xff]
    %v2543 = vld [vmem:[#allocation23 + $0x1a0] sm:$0xff]
    %v2544 = vld [vmem:[#allocation23 + $0x1a8] sm:$0xff]
    %v2545 = vld [vmem:[#allocation23 + $0x1b0] sm:$0xff]
    %v2546 = vld [vmem:[#allocation23 + $0x1b8] sm:$0xff]
    %v2547 = vld [vmem:[#allocation23 + $0x1c0] sm:$0xff]
    %v2548 = vld [vmem:[#allocation23 + $0x1c8] sm:$0xff]
    %v2549 = vld [vmem:[#allocation23 + $0x1d0] sm:$0xff]
    %v2550 = vld [vmem:[#allocation23 + $0x1d8] sm:$0xff]
    %v2551 = vld [vmem:[#allocation23 + $0x1e0] sm:$0xff]
    %v2552 = vld [vmem:[#allocation23 + $0x1e8] sm:$0xff]
    %v2553 = vld [vmem:[#allocation23 + $0x1f0] sm:$0xff]
    %v2554 = vld [vmem:[#allocation23 + $0x1f8] sm:$0xff]
    %v2555 = vld [vmem:[#allocation25] sm:$0xf]
    %v2557 = vlaneseq
    %v2558 = vshrl.u32 %v2557, 7
    %v2559 = vsub.s32 0, %v2558
    %v2560 = vrot.slane %v2555, %v2559
    %v2561 = vlaneseq
    %v2562 = vshrl.u32 %v2561, 7
    %v2563 = vsub.s32 1, %v2562
    %v2564 = vrot.slane %v2555, %v2563
    %v2565 = vlaneseq
    %v2566 = vshrl.u32 %v2565, 7
    %v2567 = vsub.s32 2, %v2566
    %v2568 = vrot.slane %v2555, %v2567
    %v2569 = vlaneseq
    %v2570 = vshrl.u32 %v2569, 7
    %v2571 = vsub.s32 3, %v2570
    %v2572 = vrot.slane %v2555, %v2571
    %v2641 = vunpack.c.l.b16 %v2491
    %v2642 = vunpack.c.h.b16 %v2491
    %v2643 = vunpack.c.l.b16 %v2492
    %v2644 = vunpack.c.h.b16 %v2492
    %v2645 = vunpack.c.l.b16 %v2493
    %v2646 = vunpack.c.h.b16 %v2493
    %v2647 = vunpack.c.l.b16 %v2494
    %v2648 = vunpack.c.h.b16 %v2494
    %v2649 = vunpack.c.l.b16 %v2495
    %v2650 = vunpack.c.h.b16 %v2495
    %v2651 = vunpack.c.l.b16 %v2496
    %v2652 = vunpack.c.h.b16 %v2496
    %v2653 = vunpack.c.l.b16 %v2497
    %v2654 = vunpack.c.h.b16 %v2497
    %v2655 = vunpack.c.l.b16 %v2498
    %v2656 = vunpack.c.h.b16 %v2498
    %v2657 = vunpack.c.l.b16 %v2499
    %v2658 = vunpack.c.h.b16 %v2499
    %v2659 = vunpack.c.l.b16 %v2500
    %v2660 = vunpack.c.h.b16 %v2500
    %v2661 = vunpack.c.l.b16 %v2501
    %v2662 = vunpack.c.h.b16 %v2501
    %v2663 = vunpack.c.l.b16 %v2502
    %v2664 = vunpack.c.h.b16 %v2502
    %v2665 = vunpack.c.l.b16 %v2503
    %v2666 = vunpack.c.h.b16 %v2503
    %v2667 = vunpack.c.l.b16 %v2504
    %v2668 = vunpack.c.h.b16 %v2504
    %v2669 = vunpack.c.l.b16 %v2505
    %v2670 = vunpack.c.h.b16 %v2505
    %v2671 = vunpack.c.l.b16 %v2506
    %v2672 = vunpack.c.h.b16 %v2506
    %v2673 = vunpack.c.l.b16 %v2507
    %v2674 = vunpack.c.h.b16 %v2507
    %v2675 = vunpack.c.l.b16 %v2508
    %v2676 = vunpack.c.h.b16 %v2508
    %v2677 = vunpack.c.l.b16 %v2509
    %v2678 = vunpack.c.h.b16 %v2509
    %v2679 = vunpack.c.l.b16 %v2510
    %v2680 = vunpack.c.h.b16 %v2510
    %v2681 = vunpack.c.l.b16 %v2511
    %v2682 = vunpack.c.h.b16 %v2511
    %v2683 = vunpack.c.l.b16 %v2512
    %v2684 = vunpack.c.h.b16 %v2512
    %v2685 = vunpack.c.l.b16 %v2513
    %v2686 = vunpack.c.h.b16 %v2513
    %v2687 = vunpack.c.l.b16 %v2514
    %v2688 = vunpack.c.h.b16 %v2514
    %v2689 = vunpack.c.l.b16 %v2515
    %v2690 = vunpack.c.h.b16 %v2515
    %v2691 = vunpack.c.l.b16 %v2516
    %v2692 = vunpack.c.h.b16 %v2516
    %v2693 = vunpack.c.l.b16 %v2517
    %v2694 = vunpack.c.h.b16 %v2517
    %v2695 = vunpack.c.l.b16 %v2518
    %v2696 = vunpack.c.h.b16 %v2518
    %v2697 = vunpack.c.l.b16 %v2519
    %v2698 = vunpack.c.h.b16 %v2519
    %v2699 = vunpack.c.l.b16 %v2520
    %v2700 = vunpack.c.h.b16 %v2520
    %v2701 = vunpack.c.l.b16 %v2521
    %v2702 = vunpack.c.h.b16 %v2521
    %v2703 = vunpack.c.l.b16 %v2522
    %v2704 = vunpack.c.h.b16 %v2522
    %v2705 = vunpack.c.l.b16 %v2523
    %v2706 = vunpack.c.h.b16 %v2523
    %v2707 = vunpack.c.l.b16 %v2524
    %v2708 = vunpack.c.h.b16 %v2524
    %v2709 = vunpack.c.l.b16 %v2525
    %v2710 = vunpack.c.h.b16 %v2525
    %v2711 = vunpack.c.l.b16 %v2526
    %v2712 = vunpack.c.h.b16 %v2526
    %v2713 = vunpack.c.l.b16 %v2527
    %v2714 = vunpack.c.h.b16 %v2527
    %v2715 = vunpack.c.l.b16 %v2528
    %v2716 = vunpack.c.h.b16 %v2528
    %v2717 = vunpack.c.l.b16 %v2529
    %v2718 = vunpack.c.h.b16 %v2529
    %v2719 = vunpack.c.l.b16 %v2530
    %v2720 = vunpack.c.h.b16 %v2530
    %v2721 = vunpack.c.l.b16 %v2531
    %v2722 = vunpack.c.h.b16 %v2531
    %v2723 = vunpack.c.l.b16 %v2532
    %v2724 = vunpack.c.h.b16 %v2532
    %v2725 = vunpack.c.l.b16 %v2533
    %v2726 = vunpack.c.h.b16 %v2533
    %v2727 = vunpack.c.l.b16 %v2534
    %v2728 = vunpack.c.h.b16 %v2534
    %v2729 = vunpack.c.l.b16 %v2535
    %v2730 = vunpack.c.h.b16 %v2535
    %v2731 = vunpack.c.l.b16 %v2536
    %v2732 = vunpack.c.h.b16 %v2536
    %v2733 = vunpack.c.l.b16 %v2537
    %v2734 = vunpack.c.h.b16 %v2537
    %v2735 = vunpack.c.l.b16 %v2538
    %v2736 = vunpack.c.h.b16 %v2538
    %v2737 = vunpack.c.l.b16 %v2539
    %v2738 = vunpack.c.h.b16 %v2539
    %v2739 = vunpack.c.l.b16 %v2540
    %v2740 = vunpack.c.h.b16 %v2540
    %v2741 = vunpack.c.l.b16 %v2541
    %v2742 = vunpack.c.h.b16 %v2541
    %v2743 = vunpack.c.l.b16 %v2542
    %v2744 = vunpack.c.h.b16 %v2542
    %v2745 = vunpack.c.l.b16 %v2543
    %v2746 = vunpack.c.h.b16 %v2543
    %v2747 = vunpack.c.l.b16 %v2544
    %v2748 = vunpack.c.h.b16 %v2544
    %v2749 = vunpack.c.l.b16 %v2545
    %v2750 = vunpack.c.h.b16 %v2545
    %v2751 = vunpack.c.l.b16 %v2546
    %v2752 = vunpack.c.h.b16 %v2546
    %v2753 = vunpack.c.l.b16 %v2547
    %v2754 = vunpack.c.h.b16 %v2547
    %v2755 = vunpack.c.l.b16 %v2548
    %v2756 = vunpack.c.h.b16 %v2548
    %v2757 = vunpack.c.l.b16 %v2549
    %v2758 = vunpack.c.h.b16 %v2549
    %v2759 = vunpack.c.l.b16 %v2550
    %v2760 = vunpack.c.h.b16 %v2550
    %v2761 = vunpack.c.l.b16 %v2551
    %v2762 = vunpack.c.h.b16 %v2551
    %v2763 = vunpack.c.l.b16 %v2552
    %v2764 = vunpack.c.h.b16 %v2552
    %v2765 = vunpack.c.l.b16 %v2553
    %v2766 = vunpack.c.h.b16 %v2553
    %v2767 = vunpack.c.l.b16 %v2554
    %v2768 = vunpack.c.h.b16 %v2554
    %v2769 = vpack.c.b16 %v2645, %v2641
    %v2770 = vpack.c.b16 %v2646, %v2642
    %v2771 = vpack.c.b16 %v2647, %v2643
    %v2772 = vpack.c.b16 %v2648, %v2644
    %v2773 = vpack.c.b16 %v2653, %v2649
    %v2774 = vpack.c.b16 %v2654, %v2650
    %v2775 = vpack.c.b16 %v2655, %v2651
    %v2776 = vpack.c.b16 %v2656, %v2652
    %v2777 = vpack.c.b16 %v2661, %v2657
    %v2778 = vpack.c.b16 %v2662, %v2658
    %v2779 = vpack.c.b16 %v2663, %v2659
    %v2780 = vpack.c.b16 %v2664, %v2660
    %v2781 = vpack.c.b16 %v2669, %v2665
    %v2782 = vpack.c.b16 %v2670, %v2666
    %v2783 = vpack.c.b16 %v2671, %v2667
    %v2784 = vpack.c.b16 %v2672, %v2668
    %v2785 = vpack.c.b16 %v2677, %v2673
    %v2786 = vpack.c.b16 %v2678, %v2674
    %v2787 = vpack.c.b16 %v2679, %v2675
    %v2788 = vpack.c.b16 %v2680, %v2676
    %v2789 = vpack.c.b16 %v2685, %v2681
    %v2790 = vpack.c.b16 %v2686, %v2682
    %v2791 = vpack.c.b16 %v2687, %v2683
    %v2792 = vpack.c.b16 %v2688, %v2684
    %v2793 = vpack.c.b16 %v2693, %v2689
    %v2794 = vpack.c.b16 %v2694, %v2690
    %v2795 = vpack.c.b16 %v2695, %v2691
    %v2796 = vpack.c.b16 %v2696, %v2692
    %v2797 = vpack.c.b16 %v2701, %v2697
    %v2798 = vpack.c.b16 %v2702, %v2698
    %v2799 = vpack.c.b16 %v2703, %v2699
    %v2800 = vpack.c.b16 %v2704, %v2700
    %v2801 = vpack.c.b16 %v2709, %v2705
    %v2802 = vpack.c.b16 %v2710, %v2706
    %v2803 = vpack.c.b16 %v2711, %v2707
    %v2804 = vpack.c.b16 %v2712, %v2708
    %v2805 = vpack.c.b16 %v2717, %v2713
    %v2806 = vpack.c.b16 %v2718, %v2714
    %v2807 = vpack.c.b16 %v2719, %v2715
    %v2808 = vpack.c.b16 %v2720, %v2716
    %v2809 = vpack.c.b16 %v2725, %v2721
    %v2810 = vpack.c.b16 %v2726, %v2722
    %v2811 = vpack.c.b16 %v2727, %v2723
    %v2812 = vpack.c.b16 %v2728, %v2724
    %v2813 = vpack.c.b16 %v2733, %v2729
    %v2814 = vpack.c.b16 %v2734, %v2730
    %v2815 = vpack.c.b16 %v2735, %v2731
    %v2816 = vpack.c.b16 %v2736, %v2732
    %v2817 = vpack.c.b16 %v2741, %v2737
    %v2818 = vpack.c.b16 %v2742, %v2738
    %v2819 = vpack.c.b16 %v2743, %v2739
    %v2820 = vpack.c.b16 %v2744, %v2740
    %v2821 = vpack.c.b16 %v2749, %v2745
    %v2822 = vpack.c.b16 %v2750, %v2746
    %v2823 = vpack.c.b16 %v2751, %v2747
    %v2824 = vpack.c.b16 %v2752, %v2748
    %v2825 = vpack.c.b16 %v2757, %v2753
    %v2826 = vpack.c.b16 %v2758, %v2754
    %v2827 = vpack.c.b16 %v2759, %v2755
    %v2828 = vpack.c.b16 %v2760, %v2756
    %v2829 = vpack.c.b16 %v2765, %v2761
    %v2830 = vpack.c.b16 %v2766, %v2762
    %v2831 = vpack.c.b16 %v2767, %v2763
    %v2832 = vpack.c.b16 %v2768, %v2764
    %2897 = vmatprep.subr.bf16.mxu0 %v2770
    %2898 = vmatpush1.bf16.msra.mxu0 %v2769
    %2899 = vmatprep.subr.bf16.mxu0 %v2774
    %2900 = vmatpush1.bf16.msra.mxu0 %v2773
    %2901 = vmatprep.subr.bf16.mxu0 %v2778
    %2902 = vmatpush1.bf16.msra.mxu0 %v2777
    %2903 = vmatprep.subr.bf16.mxu0 %v2782
    %2904 = vmatpush1.bf16.msra.mxu0 %v2781
    %2905 = vmatprep.subr.bf16.mxu0 %v2786
    %2906 = vmatpush1.bf16.msra.mxu0 %v2785
    %2907 = vmatprep.subr.bf16.mxu0 %v2790
    %2908 = vmatpush1.bf16.msra.mxu0 %v2789
    %2909 = vmatprep.subr.bf16.mxu0 %v2794
    %2910 = vmatpush1.bf16.msra.mxu0 %v2793
    %2911 = vmatprep.subr.bf16.mxu0 %v2798
    %2912 = vmatpush1.bf16.msra.mxu0 %v2797
    %2913 = vmatprep.subr.bf16.mxu0 %v2802
    %2914 = vmatpush1.bf16.msra.mxu0 %v2801
    %2915 = vmatprep.subr.bf16.mxu0 %v2806
    %2916 = vmatpush1.bf16.msra.mxu0 %v2805
    %2917 = vmatprep.subr.bf16.mxu0 %v2810
    %2918 = vmatpush1.bf16.msra.mxu0 %v2809
    %2919 = vmatprep.subr.bf16.mxu0 %v2814
    %2920 = vmatpush1.bf16.msra.mxu0 %v2813
    %2921 = vmatprep.subr.bf16.mxu0 %v2818
    %2922 = vmatpush1.bf16.msra.mxu0 %v2817
    %2923 = vmatprep.subr.bf16.mxu0 %v2822
    %2924 = vmatpush1.bf16.msra.mxu0 %v2821
    %2925 = vmatprep.subr.bf16.mxu0 %v2826
    %2926 = vmatpush1.bf16.msra.mxu0 %v2825
    %2927 = vmatprep.subr.bf16.mxu0 %v2830
    %2928 = vmatpush1.bf16.msra.mxu0 %v2829
    %2929 = vmatprep.mubr.bf16.mxu0 %v2476
    %2930 = vmatmul.mubr.bf16.gmra.mrb[0].mxu0 %v2475
    %v2931 = vpop.f32.mrb[0].mxu0
    %v2932 = vadd.f32 %v2560, %v2931
    %v2933 = vpop.f32.mrb[0].mxu0
    %v2934 = vadd.f32 %v2564, %v2933
    %v2935 = vpop.f32.mrb[0].mxu0
    %v2936 = vadd.f32 %v2560, %v2935
    %v2937 = vpop.f32.mrb[0].mxu0
    %v2938 = vadd.f32 %v2564, %v2937
    %2939 = vmatprep.mubr.bf16.mxu0 %v2478
    %2940 = vmatmul.mubr.bf16.gmra.mrb[0].mxu0 %v2477
    %v2941 = vpop.f32.mrb[0].mxu0
    %v2942 = vadd.f32 %v2560, %v2941
    %v2943 = vpop.f32.mrb[0].mxu0
    %v2944 = vadd.f32 %v2564, %v2943
    %v2945 = vpop.f32.mrb[0].mxu0
    %v2946 = vadd.f32 %v2560, %v2945
    %v2947 = vpop.f32.mrb[0].mxu0
    %v2948 = vadd.f32 %v2564, %v2947
    %2949 = vmatprep.mubr.bf16.mxu0 %v2480
    %2950 = vmatmul.mubr.bf16.gmra.mrb[0].mxu0 %v2479
    %v2951 = vpop.f32.mrb[0].mxu0
    %v2952 = vadd.f32 %v2560, %v2951
    %v2953 = vpop.f32.mrb[0].mxu0
    %v2954 = vadd.f32 %v2564, %v2953
    %v2955 = vpop.f32.mrb[0].mxu0
    %v2956 = vadd.f32 %v2560, %v2955
    %v2957 = vpop.f32.mrb[0].mxu0
    %v2958 = vadd.f32 %v2564, %v2957
    %2959 = vmatprep.mubr.bf16.mxu0 %v2482
    %2960 = vmatmul.mubr.bf16.gmra.mrb[0].mxu0 %v2481
    %v2961 = vpop.f32.mrb[0].mxu0
    %v2962 = vadd.f32 %v2560, %v2961
    %v2963 = vpop.f32.mrb[0].mxu0
    %v2964 = vadd.f32 %v2564, %v2963
    %v2965 = vpop.f32.mrb[0].mxu0
    %v2966 = vadd.f32 %v2560, %v2965
    %v2967 = vpop.f32.mrb[0].mxu0
    %v2968 = vadd.f32 %v2564, %v2967
    %2969 = vmatprep.mubr.bf16.mxu0 %v2484
    %2970 = vmatmul.mubr.bf16.gmra.mrb[0].mxu0 %v2483
    %v2971 = vpop.f32.mrb[0].mxu0
    %v2972 = vadd.f32 %v2560, %v2971
    %v2973 = vpop.f32.mrb[0].mxu0
    %v2974 = vadd.f32 %v2564, %v2973
    %v2975 = vpop.f32.mrb[0].mxu0
    %v2976 = vadd.f32 %v2560, %v2975
    %v2977 = vpop.f32.mrb[0].mxu0
    %v2978 = vadd.f32 %v2564, %v2977
    %2979 = vmatprep.mubr.bf16.mxu0 %v2486
    %2980 = vmatmul.mubr.bf16.gmra.mrb[0].mxu0 %v2485
    %v2981 = vpop.f32.mrb[0].mxu0
    %v2982 = vadd.f32 %v2560, %v2981
    %v2983 = vpop.f32.mrb[0].mxu0
    %v2984 = vadd.f32 %v2564, %v2983
    %v2985 = vpop.f32.mrb[0].mxu0
    %v2986 = vadd.f32 %v2560, %v2985
    %v2987 = vpop.f32.mrb[0].mxu0
    %v2988 = vadd.f32 %v2564, %v2987
    %2989 = vmatprep.mubr.bf16.mxu0 %v2488
    %2990 = vmatmul.mubr.bf16.gmra.mrb[0].mxu0 %v2487
    %v2991 = vpop.f32.mrb[0].mxu0
    %v2992 = vadd.f32 %v2560, %v2991
    %v2993 = vpop.f32.mrb[0].mxu0
    %v2994 = vadd.f32 %v2564, %v2993
    %v2995 = vpop.f32.mrb[0].mxu0
    %v2996 = vadd.f32 %v2560, %v2995
    %v2997 = vpop.f32.mrb[0].mxu0
    %v2998 = vadd.f32 %v2564, %v2997
    %2999 = vmatprep.mubr.bf16.mxu0 %v2490
    %3000 = vmatmul.mubr.bf16.gmra.mrb[0].mxu0 %v2489
    %v3001 = vpop.f32.mrb[0].mxu0
    %v3002 = vadd.f32 %v2560, %v3001
    %v3003 = vpop.f32.mrb[0].mxu0
    %v3004 = vadd.f32 %v2564, %v3003
    %v3005 = vpop.f32.mrb[0].mxu0
    %v3006 = vadd.f32 %v2560, %v3005
    %v3007 = vpop.f32.mrb[0].mxu0
    %v3008 = vadd.f32 %v2564, %v3007
    %3009 = vdwg.mxu0
    %3010 = vmatprep.subr.bf16.mxu0 %v2772
    %3011 = vmatpush1.bf16.msra.mxu0 %v2771
    %3012 = vmatprep.subr.bf16.mxu0 %v2776
    %3013 = vmatpush1.bf16.msra.mxu0 %v2775
    %3014 = vmatprep.subr.bf16.mxu0 %v2780
    %3015 = vmatpush1.bf16.msra.mxu0 %v2779
    %3016 = vmatprep.subr.bf16.mxu0 %v2784
    %3017 = vmatpush1.bf16.msra.mxu0 %v2783
    %3018 = vmatprep.subr.bf16.mxu0 %v2788
    %3019 = vmatpush1.bf16.msra.mxu0 %v2787
    %3020 = vmatprep.subr.bf16.mxu0 %v2792
    %3021 = vmatpush1.bf16.msra.mxu0 %v2791
    %3022 = vmatprep.subr.bf16.mxu0 %v2796
    %3023 = vmatpush1.bf16.msra.mxu0 %v2795
    %3024 = vmatprep.subr.bf16.mxu0 %v2800
    %3025 = vmatpush1.bf16.msra.mxu0 %v2799
    %3026 = vmatprep.subr.bf16.mxu0 %v2804
    %3027 = vmatpush1.bf16.msra.mxu0 %v2803
    %3028 = vmatprep.subr.bf16.mxu0 %v2808
    %3029 = vmatpush1.bf16.msra.mxu0 %v2807
    %3030 = vmatprep.subr.bf16.mxu0 %v2812
    %3031 = vmatpush1.bf16.msra.mxu0 %v2811
    %3032 = vmatprep.subr.bf16.mxu0 %v2816
    %3033 = vmatpush1.bf16.msra.mxu0 %v2815
    %3034 = vmatprep.subr.bf16.mxu0 %v2820
    %3035 = vmatpush1.bf16.msra.mxu0 %v2819
    %3036 = vmatprep.subr.bf16.mxu0 %v2824
    %3037 = vmatpush1.bf16.msra.mxu0 %v2823
    %3038 = vmatprep.subr.bf16.mxu0 %v2828
    %3039 = vmatpush1.bf16.msra.mxu0 %v2827
    %3040 = vmatprep.subr.bf16.mxu0 %v2832
    %3041 = vmatpush1.bf16.msra.mxu0 %v2831
    %3042 = vmatprep.mubr.bf16.mxu0 %v2476
    %3043 = vmatmul.mubr.bf16.gmra.mrb[0].mxu0 %v2475
    %v3044 = vpop.f32.mrb[0].mxu0
    %v3045 = vadd.f32 %v2568, %v3044
    %v3046 = vpop.f32.mrb[0].mxu0
    %v3047 = vadd.f32 %v2572, %v3046
    %v3048 = vpop.f32.mrb[0].mxu0
    %v3049 = vadd.f32 %v2568, %v3048
    %v3050 = vpop.f32.mrb[0].mxu0
    %v3051 = vadd.f32 %v2572, %v3050
    %3052 = vmatprep.mubr.bf16.mxu0 %v2478
    %3053 = vmatmul.mubr.bf16.gmra.mrb[0].mxu0 %v2477
    %v3054 = vpop.f32.mrb[0].mxu0
    %v3055 = vadd.f32 %v2568, %v3054
    %v3056 = vpop.f32.mrb[0].mxu0
    %v3057 = vadd.f32 %v2572, %v3056
    %v3058 = vpop.f32.mrb[0].mxu0
    %v3059 = vadd.f32 %v2568, %v3058
    %v3060 = vpop.f32.mrb[0].mxu0
    %v3061 = vadd.f32 %v2572, %v3060
    %3062 = vmatprep.mubr.bf16.mxu0 %v2480
    %3063 = vmatmul.mubr.bf16.gmra.mrb[0].mxu0 %v2479
    %v3064 = vpop.f32.mrb[0].mxu0
    %v3065 = vadd.f32 %v2568, %v3064
    %v3066 = vpop.f32.mrb[0].mxu0
    %v3067 = vadd.f32 %v2572, %v3066
    %v3068 = vpop.f32.mrb[0].mxu0
    %v3069 = vadd.f32 %v2568, %v3068
    %v3070 = vpop.f32.mrb[0].mxu0
    %v3071 = vadd.f32 %v2572, %v3070
    %3072 = vmatprep.mubr.bf16.mxu0 %v2482
    %3073 = vmatmul.mubr.bf16.gmra.mrb[0].mxu0 %v2481
    %v3074 = vpop.f32.mrb[0].mxu0
    %v3075 = vadd.f32 %v2568, %v3074
    %v3076 = vpop.f32.mrb[0].mxu0
    %v3077 = vadd.f32 %v2572, %v3076
    %v3078 = vpop.f32.mrb[0].mxu0
    %v3079 = vadd.f32 %v2568, %v3078
    %v3080 = vpop.f32.mrb[0].mxu0
    %v3081 = vadd.f32 %v2572, %v3080
    %3082 = vmatprep.mubr.bf16.mxu0 %v2484
    %3083 = vmatmul.mubr.bf16.gmra.mrb[0].mxu0 %v2483
    %v3084 = vpop.f32.mrb[0].mxu0
    %v3085 = vadd.f32 %v2568, %v3084
    %v3086 = vpop.f32.mrb[0].mxu0
    %v3087 = vadd.f32 %v2572, %v3086
    %v3088 = vpop.f32.mrb[0].mxu0
    %v3089 = vadd.f32 %v2568, %v3088
    %v3090 = vpop.f32.mrb[0].mxu0
    %v3091 = vadd.f32 %v2572, %v3090
    %3092 = vmatprep.mubr.bf16.mxu0 %v2486
    %3093 = vmatmul.mubr.bf16.gmra.mrb[0].mxu0 %v2485
    %v3094 = vpop.f32.mrb[0].mxu0
    %v3095 = vadd.f32 %v2568, %v3094
    %v3096 = vpop.f32.mrb[0].mxu0
    %v3097 = vadd.f32 %v2572, %v3096
    %v3098 = vpop.f32.mrb[0].mxu0
    %v3099 = vadd.f32 %v2568, %v3098
    %v3100 = vpop.f32.mrb[0].mxu0
    %v3101 = vadd.f32 %v2572, %v3100
    %3102 = vmatprep.mubr.bf16.mxu0 %v2488
    %3103 = vmatmul.mubr.bf16.gmra.mrb[0].mxu0 %v2487
    %v3104 = vpop.f32.mrb[0].mxu0
    %v3105 = vadd.f32 %v2568, %v3104
    %v3106 = vpop.f32.mrb[0].mxu0
    %v3107 = vadd.f32 %v2572, %v3106
    %v3108 = vpop.f32.mrb[0].mxu0
    %v3109 = vadd.f32 %v2568, %v3108
    %v3110 = vpop.f32.mrb[0].mxu0
    %v3111 = vadd.f32 %v2572, %v3110
    %3112 = vmatprep.mubr.bf16.mxu0 %v2490
    %3113 = vmatmul.mubr.bf16.gmra.mrb[0].mxu0 %v2489
    %v3114 = vpop.f32.mrb[0].mxu0
    %v3115 = vadd.f32 %v2568, %v3114
    %v3116 = vpop.f32.mrb[0].mxu0
    %v3117 = vadd.f32 %v2572, %v3116
    %v3118 = vpop.f32.mrb[0].mxu0
    %v3119 = vadd.f32 %v2568, %v3118
    %v3120 = vpop.f32.mrb[0].mxu0
    %v3121 = vadd.f32 %v2572, %v3120
    %3122 = vdwg.mxu0
    %v3123 = vmax.f32 %v2932, 0.0
    %v3124 = vmax.f32 %v2934, 0.0
    %v3125 = vmax.f32 %v3045, 0.0
    %v3126 = vmax.f32 %v3047, 0.0
    %v3127 = vmax.f32 %v2936, 0.0
    %v3128 = vmax.f32 %v2938, 0.0
    %v3129 = vmax.f32 %v3049, 0.0
    %v3130 = vmax.f32 %v3051, 0.0
    %v3131 = vmax.f32 %v2942, 0.0
    %v3132 = vmax.f32 %v2944, 0.0
    %v3133 = vmax.f32 %v3055, 0.0
    %v3134 = vmax.f32 %v3057, 0.0
    %v3135 = vmax.f32 %v2946, 0.0
    %v3136 = vmax.f32 %v2948, 0.0
    %v3137 = vmax.f32 %v3059, 0.0
    %v3138 = vmax.f32 %v3061, 0.0
    %v3139 = vmax.f32 %v2952, 0.0
    %v3140 = vmax.f32 %v2954, 0.0
    %v3141 = vmax.f32 %v3065, 0.0
    %v3142 = vmax.f32 %v3067, 0.0
    %v3143 = vmax.f32 %v2956, 0.0
    %v3144 = vmax.f32 %v2958, 0.0
    %v3145 = vmax.f32 %v3069, 0.0
    %v3146 = vmax.f32 %v3071, 0.0
    %v3147 = vmax.f32 %v2962, 0.0
    %v3148 = vmax.f32 %v2964, 0.0
    %v3149 = vmax.f32 %v3075, 0.0
    %v3150 = vmax.f32 %v3077, 0.0
    %v3151 = vmax.f32 %v2966, 0.0
    %v3152 = vmax.f32 %v2968, 0.0
    %v3153 = vmax.f32 %v3079, 0.0
    %v3154 = vmax.f32 %v3081, 0.0
    %v3155 = vmax.f32 %v2972, 0.0
    %v3156 = vmax.f32 %v2974, 0.0
    %v3157 = vmax.f32 %v3085, 0.0
    %v3158 = vmax.f32 %v3087, 0.0
    %v3159 = vmax.f32 %v2976, 0.0
    %v3160 = vmax.f32 %v2978, 0.0
    %v3161 = vmax.f32 %v3089, 0.0
    %v3162 = vmax.f32 %v3091, 0.0
    %v3163 = vmax.f32 %v2982, 0.0
    %v3164 = vmax.f32 %v2984, 0.0
    %v3165 = vmax.f32 %v3095, 0.0
    %v3166 = vmax.f32 %v3097, 0.0
    %v3167 = vmax.f32 %v2986, 0.0
    %v3168 = vmax.f32 %v2988, 0.0
    %v3169 = vmax.f32 %v3099, 0.0
    %v3170 = vmax.f32 %v3101, 0.0
    %v3171 = vmax.f32 %v2992, 0.0
    %v3172 = vmax.f32 %v2994, 0.0
    %v3173 = vmax.f32 %v3105, 0.0
    %v3174 = vmax.f32 %v3107, 0.0
    %v3175 = vmax.f32 %v2996, 0.0
    %v3176 = vmax.f32 %v2998, 0.0
    %v3177 = vmax.f32 %v3109, 0.0
    %v3178 = vmax.f32 %v3111, 0.0
    %v3179 = vmax.f32 %v3002, 0.0
    %v3180 = vmax.f32 %v3004, 0.0
    %v3181 = vmax.f32 %v3115, 0.0
    %v3182 = vmax.f32 %v3117, 0.0
    %v3183 = vmax.f32 %v3006, 0.0
    %v3184 = vmax.f32 %v3008, 0.0
    %v3185 = vmax.f32 %v3119, 0.0
    %v3186 = vmax.f32 %v3121, 0.0
    %v3187 = vpack.c.bf16 %v3127, %v3123
    %v3188 = vpack.c.bf16 %v3128, %v3124
    %v3189 = vpack.c.bf16 %v3129, %v3125
    %v3190 = vpack.c.bf16 %v3130, %v3126
    %v3191 = vpack.c.bf16 %v3135, %v3131
    %v3192 = vpack.c.bf16 %v3136, %v3132
    %v3193 = vpack.c.bf16 %v3137, %v3133
    %v3194 = vpack.c.bf16 %v3138, %v3134
    %v3195 = vpack.c.bf16 %v3143, %v3139
    %v3196 = vpack.c.bf16 %v3144, %v3140
    %v3197 = vpack.c.bf16 %v3145, %v3141
    %v3198 = vpack.c.bf16 %v3146, %v3142
    %v3199 = vpack.c.bf16 %v3151, %v3147
    %v3200 = vpack.c.bf16 %v3152, %v3148
    %v3201 = vpack.c.bf16 %v3153, %v3149
    %v3202 = vpack.c.bf16 %v3154, %v3150
    %v3203 = vpack.c.bf16 %v3159, %v3155
    %v3204 = vpack.c.bf16 %v3160, %v3156
    %v3205 = vpack.c.bf16 %v3161, %v3157
    %v3206 = vpack.c.bf16 %v3162, %v3158
    %v3207 = vpack.c.bf16 %v3167, %v3163
    %v3208 = vpack.c.bf16 %v3168, %v3164
    %v3209 = vpack.c.bf16 %v3169, %v3165
    %v3210 = vpack.c.bf16 %v3170, %v3166
    %v3211 = vpack.c.bf16 %v3175, %v3171
    %v3212 = vpack.c.bf16 %v3176, %v3172
    %v3213 = vpack.c.bf16 %v3177, %v3173
    %v3214 = vpack.c.bf16 %v3178, %v3174
    %v3215 = vpack.c.bf16 %v3183, %v3179
    %v3216 = vpack.c.bf16 %v3184, %v3180
    %v3217 = vpack.c.bf16 %v3185, %v3181
    %v3218 = vpack.c.bf16 %v3186, %v3182
    %v3219 = vld [vmem:[#allocation26] sm:$0xf]
    %v3220 = vld [vmem:[#allocation26 + $0x4] sm:$0xf]
    %v3221 = vld [vmem:[#allocation26 + $0x8] sm:$0xf]
    %v3222 = vld [vmem:[#allocation26 + $0xc] sm:$0xf]
    %v3223 = vld [vmem:[#allocation26 + $0x10] sm:$0xf]
    %v3224 = vld [vmem:[#allocation26 + $0x14] sm:$0xf]
    %v3225 = vld [vmem:[#allocation26 + $0x18] sm:$0xf]
    %v3226 = vld [vmem:[#allocation26 + $0x1c] sm:$0xf]
    %v3227 = vld [vmem:[#allocation26 + $0x20] sm:$0xf]
    %v3228 = vld [vmem:[#allocation26 + $0x24] sm:$0xf]
    %v3229 = vld [vmem:[#allocation26 + $0x28] sm:$0xf]
    %v3230 = vld [vmem:[#allocation26 + $0x2c] sm:$0xf]
    %v3231 = vld [vmem:[#allocation26 + $0x30] sm:$0xf]
    %v3232 = vld [vmem:[#allocation26 + $0x34] sm:$0xf]
    %v3233 = vld [vmem:[#allocation26 + $0x38] sm:$0xf]
    %v3234 = vld [vmem:[#allocation26 + $0x3c] sm:$0xf]
    %v3235 = vld [vmem:[#allocation26 + $0x40] sm:$0xf]
    %v3236 = vld [vmem:[#allocation26 + $0x44] sm:$0xf]
    %v3237 = vld [vmem:[#allocation26 + $0x48] sm:$0xf]
    %v3238 = vld [vmem:[#allocation26 + $0x4c] sm:$0xf]
    %v3239 = vld [vmem:[#allocation26 + $0x50] sm:$0xf]
    %v3240 = vld [vmem:[#allocation26 + $0x54] sm:$0xf]
    %v3241 = vld [vmem:[#allocation26 + $0x58] sm:$0xf]
    %v3242 = vld [vmem:[#allocation26 + $0x5c] sm:$0xf]
    %v3243 = vld [vmem:[#allocation26 + $0x60] sm:$0xf]
    %v3244 = vld [vmem:[#allocation26 + $0x64] sm:$0xf]
    %v3245 = vld [vmem:[#allocation26 + $0x68] sm:$0xf]
    %v3246 = vld [vmem:[#allocation26 + $0x6c] sm:$0xf]
    %v3247 = vld [vmem:[#allocation26 + $0x70] sm:$0xf]
    %v3248 = vld [vmem:[#allocation26 + $0x74] sm:$0xf]
    %v3249 = vld [vmem:[#allocation26 + $0x78] sm:$0xf]
    %v3250 = vld [vmem:[#allocation26 + $0x7c] sm:$0xf]
    %v3251 = vld [vmem:[#allocation26 + $0x80] sm:$0xf]
    %v3252 = vld [vmem:[#allocation26 + $0x84] sm:$0xf]
    %v3253 = vld [vmem:[#allocation26 + $0x88] sm:$0xf]
    %v3254 = vld [vmem:[#allocation26 + $0x8c] sm:$0xf]
    %v3255 = vld [vmem:[#allocation26 + $0x90] sm:$0xf]
    %v3256 = vld [vmem:[#allocation26 + $0x94] sm:$0xf]
    %v3257 = vld [vmem:[#allocation26 + $0x98] sm:$0xf]
    %v3258 = vld [vmem:[#allocation26 + $0x9c] sm:$0xf]
    %v3259 = vld [vmem:[#allocation26 + $0xa0] sm:$0xf]
    %v3260 = vld [vmem:[#allocation26 + $0xa4] sm:$0xf]
    %v3261 = vld [vmem:[#allocation26 + $0xa8] sm:$0xf]
    %v3262 = vld [vmem:[#allocation26 + $0xac] sm:$0xf]
    %v3263 = vld [vmem:[#allocation26 + $0xb0] sm:$0xf]
    %v3264 = vld [vmem:[#allocation26 + $0xb4] sm:$0xf]
    %v3265 = vld [vmem:[#allocation26 + $0xb8] sm:$0xf]
    %v3266 = vld [vmem:[#allocation26 + $0xbc] sm:$0xf]
    %v3267 = vld [vmem:[#allocation26 + $0xc0] sm:$0xf]
    %v3268 = vld [vmem:[#allocation26 + $0xc4] sm:$0xf]
    %v3269 = vld [vmem:[#allocation26 + $0xc8] sm:$0xf]
    %v3270 = vld [vmem:[#allocation26 + $0xcc] sm:$0xf]
    %v3271 = vld [vmem:[#allocation26 + $0xd0] sm:$0xf]
    %v3272 = vld [vmem:[#allocation26 + $0xd4] sm:$0xf]
    %v3273 = vld [vmem:[#allocation26 + $0xd8] sm:$0xf]
    %v3274 = vld [vmem:[#allocation26 + $0xdc] sm:$0xf]
    %v3275 = vld [vmem:[#allocation26 + $0xe0] sm:$0xf]
    %v3276 = vld [vmem:[#allocation26 + $0xe4] sm:$0xf]
    %v3277 = vld [vmem:[#allocation26 + $0xe8] sm:$0xf]
    %v3278 = vld [vmem:[#allocation26 + $0xec] sm:$0xf]
    %v3279 = vld [vmem:[#allocation26 + $0xf0] sm:$0xf]
    %v3280 = vld [vmem:[#allocation26 + $0xf4] sm:$0xf]
    %v3281 = vld [vmem:[#allocation26 + $0xf8] sm:$0xf]
    %v3282 = vld [vmem:[#allocation26 + $0xfc] sm:$0xf]
    %v3283 = vld [vmem:[#allocation28] sm:$0x1]
    %v3285 = vlaneseq
    %v3286 = vshrl.u32 %v3285, 7
    %v3287 = vsub.s32 0, %v3286
    %v3288 = vrot.slane %v3283, %v3287
    %v3354 = vunpack.c.l.b16 %v3219
    %v3355 = vunpack.c.l.b16 %v3220
    %v3356 = vunpack.c.l.b16 %v3221
    %v3357 = vunpack.c.l.b16 %v3222
    %v3358 = vunpack.c.l.b16 %v3223
    %v3359 = vunpack.c.l.b16 %v3224
    %v3360 = vunpack.c.l.b16 %v3225
    %v3361 = vunpack.c.l.b16 %v3226
    %v3362 = vunpack.c.l.b16 %v3227
    %v3363 = vunpack.c.l.b16 %v3228
    %v3364 = vunpack.c.l.b16 %v3229
    %v3365 = vunpack.c.l.b16 %v3230
    %v3366 = vunpack.c.l.b16 %v3231
    %v3367 = vunpack.c.l.b16 %v3232
    %v3368 = vunpack.c.l.b16 %v3233
    %v3369 = vunpack.c.l.b16 %v3234
    %v3370 = vunpack.c.l.b16 %v3235
    %v3371 = vunpack.c.l.b16 %v3236
    %v3372 = vunpack.c.l.b16 %v3237
    %v3373 = vunpack.c.l.b16 %v3238
    %v3374 = vunpack.c.l.b16 %v3239
    %v3375 = vunpack.c.l.b16 %v3240
    %v3376 = vunpack.c.l.b16 %v3241
    %v3377 = vunpack.c.l.b16 %v3242
    %v3378 = vunpack.c.l.b16 %v3243
    %v3379 = vunpack.c.l.b16 %v3244
    %v3380 = vunpack.c.l.b16 %v3245
    %v3381 = vunpack.c.l.b16 %v3246
    %v3382 = vunpack.c.l.b16 %v3247
    %v3383 = vunpack.c.l.b16 %v3248
    %v3384 = vunpack.c.l.b16 %v3249
    %v3385 = vunpack.c.l.b16 %v3250
    %v3386 = vunpack.c.l.b16 %v3251
    %v3387 = vunpack.c.l.b16 %v3252
    %v3388 = vunpack.c.l.b16 %v3253
    %v3389 = vunpack.c.l.b16 %v3254
    %v3390 = vunpack.c.l.b16 %v3255
    %v3391 = vunpack.c.l.b16 %v3256
    %v3392 = vunpack.c.l.b16 %v3257
    %v3393 = vunpack.c.l.b16 %v3258
    %v3394 = vunpack.c.l.b16 %v3259
    %v3395 = vunpack.c.l.b16 %v3260
    %v3396 = vunpack.c.l.b16 %v3261
    %v3397 = vunpack.c.l.b16 %v3262
    %v3398 = vunpack.c.l.b16 %v3263
    %v3399 = vunpack.c.l.b16 %v3264
    %v3400 = vunpack.c.l.b16 %v3265
    %v3401 = vunpack.c.l.b16 %v3266
    %v3402 = vunpack.c.l.b16 %v3267
    %v3403 = vunpack.c.l.b16 %v3268
    %v3404 = vunpack.c.l.b16 %v3269
    %v3405 = vunpack.c.l.b16 %v3270
    %v3406 = vunpack.c.l.b16 %v3271
    %v3407 = vunpack.c.l.b16 %v3272
    %v3408 = vunpack.c.l.b16 %v3273
    %v3409 = vunpack.c.l.b16 %v3274
    %v3410 = vunpack.c.l.b16 %v3275
    %v3411 = vunpack.c.l.b16 %v3276
    %v3412 = vunpack.c.l.b16 %v3277
    %v3413 = vunpack.c.l.b16 %v3278
    %v3414 = vunpack.c.l.b16 %v3279
    %v3415 = vunpack.c.l.b16 %v3280
    %v3416 = vunpack.c.l.b16 %v3281
    %v3417 = vunpack.c.l.b16 %v3282
    %v3418 = vpack.c.b16 %v3355, %v3354
    %v3419 = vpack.c.b16 %v3357, %v3356
    %v3420 = vpack.c.b16 %v3359, %v3358
    %v3421 = vpack.c.b16 %v3361, %v3360
    %v3422 = vpack.c.b16 %v3363, %v3362
    %v3423 = vpack.c.b16 %v3365, %v3364
    %v3424 = vpack.c.b16 %v3367, %v3366
    %v3425 = vpack.c.b16 %v3369, %v3368
    %v3426 = vpack.c.b16 %v3371, %v3370
    %v3427 = vpack.c.b16 %v3373, %v3372
    %v3428 = vpack.c.b16 %v3375, %v3374
    %v3429 = vpack.c.b16 %v3377, %v3376
    %v3430 = vpack.c.b16 %v3379, %v3378
    %v3431 = vpack.c.b16 %v3381, %v3380
    %v3432 = vpack.c.b16 %v3383, %v3382
    %v3433 = vpack.c.b16 %v3385, %v3384
    %v3434 = vpack.c.b16 %v3387, %v3386
    %v3435 = vpack.c.b16 %v3389, %v3388
    %v3436 = vpack.c.b16 %v3391, %v3390
    %v3437 = vpack.c.b16 %v3393, %v3392
    %v3438 = vpack.c.b16 %v3395, %v3394
    %v3439 = vpack.c.b16 %v3397, %v3396
    %v3440 = vpack.c.b16 %v3399, %v3398
    %v3441 = vpack.c.b16 %v3401, %v3400
    %v3442 = vpack.c.b16 %v3403, %v3402
    %v3443 = vpack.c.b16 %v3405, %v3404
    %v3444 = vpack.c.b16 %v3407, %v3406
    %v3445 = vpack.c.b16 %v3409, %v3408
    %v3446 = vpack.c.b16 %v3411, %v3410
    %v3447 = vpack.c.b16 %v3413, %v3412
    %v3448 = vpack.c.b16 %v3415, %v3414
    %v3449 = vpack.c.b16 %v3417, %v3416
    %3482 = vmatprep.subr.bf16.mxu0 0
    %3483 = vmatpush1.bf16.msra.mxu0 %v3418
    %3484 = vmatprep.subr.bf16.mxu0 0
    %3485 = vmatpush1.bf16.msra.mxu0 %v3419
    %3486 = vmatprep.subr.bf16.mxu0 0
    %3487 = vmatpush1.bf16.msra.mxu0 %v3420
    %3488 = vmatprep.subr.bf16.mxu0 0
    %3489 = vmatpush1.bf16.msra.mxu0 %v3421
    %3490 = vmatprep.subr.bf16.mxu0 0
    %3491 = vmatpush1.bf16.msra.mxu0 %v3422
    %3492 = vmatprep.subr.bf16.mxu0 0
    %3493 = vmatpush1.bf16.msra.mxu0 %v3423
    %3494 = vmatprep.subr.bf16.mxu0 0
    %3495 = vmatpush1.bf16.msra.mxu0 %v3424
    %3496 = vmatprep.subr.bf16.mxu0 0
    %3497 = vmatpush1.bf16.msra.mxu0 %v3425
    %3498 = vmatprep.subr.bf16.mxu0 0
    %3499 = vmatpush1.bf16.msra.mxu0 %v3426
    %3500 = vmatprep.subr.bf16.mxu0 0
    %3501 = vmatpush1.bf16.msra.mxu0 %v3427
    %3502 = vmatprep.subr.bf16.mxu0 0
    %3503 = vmatpush1.bf16.msra.mxu0 %v3428
    %3504 = vmatprep.subr.bf16.mxu0 0
    %3505 = vmatpush1.bf16.msra.mxu0 %v3429
    %3506 = vmatprep.subr.bf16.mxu0 0
    %3507 = vmatpush1.bf16.msra.mxu0 %v3430
    %3508 = vmatprep.subr.bf16.mxu0 0
    %3509 = vmatpush1.bf16.msra.mxu0 %v3431
    %3510 = vmatprep.subr.bf16.mxu0 0
    %3511 = vmatpush1.bf16.msra.mxu0 %v3432
    %3512 = vmatprep.subr.bf16.mxu0 0
    %3513 = vmatpush1.bf16.msra.mxu0 %v3433
    %3514 = vmatprep.mubr.bf16.mxu0 %v3188
    %3515 = vmatmul.mubr.bf16.gmra.mrb[0].mxu0 %v3187
    %v3516 = vpop.f32.mrb[0].mxu0
    %v3517 = vadd.f32 %v3288, %v3516
    %v3518 = vpop.f32.mrb[0].mxu0
    %v3519 = vpop.f32.mrb[0].mxu0
    %v3520 = vadd.f32 %v3288, %v3519
    %v3521 = vpop.f32.mrb[0].mxu0
    %3522 = vmatprep.mubr.bf16.mxu0 %v3192
    %3523 = vmatmul.mubr.bf16.gmra.mrb[0].mxu0 %v3191
    %v3524 = vpop.f32.mrb[0].mxu0
    %v3525 = vadd.f32 %v3288, %v3524
    %v3526 = vpop.f32.mrb[0].mxu0
    %v3527 = vpop.f32.mrb[0].mxu0
    %v3528 = vadd.f32 %v3288, %v3527
    %v3529 = vpop.f32.mrb[0].mxu0
    %3530 = vmatprep.mubr.bf16.mxu0 %v3196
    %3531 = vmatmul.mubr.bf16.gmra.mrb[0].mxu0 %v3195
    %v3532 = vpop.f32.mrb[0].mxu0
    %v3533 = vadd.f32 %v3288, %v3532
    %v3534 = vpop.f32.mrb[0].mxu0
    %v3535 = vpop.f32.mrb[0].mxu0
    %v3536 = vadd.f32 %v3288, %v3535
    %v3537 = vpop.f32.mrb[0].mxu0
    %3538 = vmatprep.mubr.bf16.mxu0 %v3200
    %3539 = vmatmul.mubr.bf16.gmra.mrb[0].mxu0 %v3199
    %v3540 = vpop.f32.mrb[0].mxu0
    %v3541 = vadd.f32 %v3288, %v3540
    %v3542 = vpop.f32.mrb[0].mxu0
    %v3543 = vpop.f32.mrb[0].mxu0
    %v3544 = vadd.f32 %v3288, %v3543
    %v3545 = vpop.f32.mrb[0].mxu0
    %3546 = vmatprep.mubr.bf16.mxu0 %v3204
    %3547 = vmatmul.mubr.bf16.gmra.mrb[0].mxu0 %v3203
    %v3548 = vpop.f32.mrb[0].mxu0
    %v3549 = vadd.f32 %v3288, %v3548
    %v3550 = vpop.f32.mrb[0].mxu0
    %v3551 = vpop.f32.mrb[0].mxu0
    %v3552 = vadd.f32 %v3288, %v3551
    %v3553 = vpop.f32.mrb[0].mxu0
    %3554 = vmatprep.mubr.bf16.mxu0 %v3208
    %3555 = vmatmul.mubr.bf16.gmra.mrb[0].mxu0 %v3207
    %v3556 = vpop.f32.mrb[0].mxu0
    %v3557 = vadd.f32 %v3288, %v3556
    %v3558 = vpop.f32.mrb[0].mxu0
    %v3559 = vpop.f32.mrb[0].mxu0
    %v3560 = vadd.f32 %v3288, %v3559
    %v3561 = vpop.f32.mrb[0].mxu0
    %3562 = vmatprep.mubr.bf16.mxu0 %v3212
    %3563 = vmatmul.mubr.bf16.gmra.mrb[0].mxu0 %v3211
    %v3564 = vpop.f32.mrb[0].mxu0
    %v3565 = vadd.f32 %v3288, %v3564
    %v3566 = vpop.f32.mrb[0].mxu0
    %v3567 = vpop.f32.mrb[0].mxu0
    %v3568 = vadd.f32 %v3288, %v3567
    %v3569 = vpop.f32.mrb[0].mxu0
    %3570 = vmatprep.mubr.bf16.mxu0 %v3216
    %3571 = vmatmul.mubr.bf16.gmra.mrb[0].mxu0 %v3215
    %v3572 = vpop.f32.mrb[0].mxu0
    %v3573 = vadd.f32 %v3288, %v3572
    %v3574 = vpop.f32.mrb[0].mxu0
    %v3575 = vpop.f32.mrb[0].mxu0
    %v3576 = vadd.f32 %v3288, %v3575
    %v3577 = vpop.f32.mrb[0].mxu0
    %3578 = vdwg.mxu0
    %3579 = vmatprep.subr.bf16.mxu0 0
    %3580 = vmatpush1.bf16.msra.mxu0 %v3434
    %3581 = vmatprep.subr.bf16.mxu0 0
    %3582 = vmatpush1.bf16.msra.mxu0 %v3435
    %3583 = vmatprep.subr.bf16.mxu0 0
    %3584 = vmatpush1.bf16.msra.mxu0 %v3436
    %3585 = vmatprep.subr.bf16.mxu0 0
    %3586 = vmatpush1.bf16.msra.mxu0 %v3437
    %3587 = vmatprep.subr.bf16.mxu0 0
    %3588 = vmatpush1.bf16.msra.mxu0 %v3438
    %3589 = vmatprep.subr.bf16.mxu0 0
    %3590 = vmatpush1.bf16.msra.mxu0 %v3439
    %3591 = vmatprep.subr.bf16.mxu0 0
    %3592 = vmatpush1.bf16.msra.mxu0 %v3440
    %3593 = vmatprep.subr.bf16.mxu0 0
    %3594 = vmatpush1.bf16.msra.mxu0 %v3441
    %3595 = vmatprep.subr.bf16.mxu0 0
    %3596 = vmatpush1.bf16.msra.mxu0 %v3442
    %3597 = vmatprep.subr.bf16.mxu0 0
    %3598 = vmatpush1.bf16.msra.mxu0 %v3443
    %3599 = vmatprep.subr.bf16.mxu0 0
    %3600 = vmatpush1.bf16.msra.mxu0 %v3444
    %3601 = vmatprep.subr.bf16.mxu0 0
    %3602 = vmatpush1.bf16.msra.mxu0 %v3445
    %3603 = vmatprep.subr.bf16.mxu0 0
    %3604 = vmatpush1.bf16.msra.mxu0 %v3446
    %3605 = vmatprep.subr.bf16.mxu0 0
    %3606 = vmatpush1.bf16.msra.mxu0 %v3447
    %3607 = vmatprep.subr.bf16.mxu0 0
    %3608 = vmatpush1.bf16.msra.mxu0 %v3448
    %3609 = vmatprep.subr.bf16.mxu0 0
    %3610 = vmatpush1.bf16.msra.mxu0 %v3449
    %3611 = vmatprep.mubr.bf16.mxu0 %v3190
    %3612 = vmatmul.mubr.bf16.gmra.mrb[0].mxu0 %v3189
    %v3613 = vpop.f32.mrb[0].mxu0
    %v3614 = vadd.f32 %v3517, %v3613
    %v3615 = vpop.f32.mrb[0].mxu0
    %v3616 = vpop.f32.mrb[0].mxu0
    %v3617 = vadd.f32 %v3520, %v3616
    %v3618 = vpop.f32.mrb[0].mxu0
    %3619 = vmatprep.mubr.bf16.mxu0 %v3194
    %3620 = vmatmul.mubr.bf16.gmra.mrb[0].mxu0 %v3193
    %v3621 = vpop.f32.mrb[0].mxu0
    %v3622 = vadd.f32 %v3525, %v3621
    %v3623 = vpop.f32.mrb[0].mxu0
    %v3624 = vpop.f32.mrb[0].mxu0
    %v3625 = vadd.f32 %v3528, %v3624
    %v3626 = vpop.f32.mrb[0].mxu0
    %3627 = vmatprep.mubr.bf16.mxu0 %v3198
    %3628 = vmatmul.mubr.bf16.gmra.mrb[0].mxu0 %v3197
    %v3629 = vpop.f32.mrb[0].mxu0
    %v3630 = vadd.f32 %v3533, %v3629
    %v3631 = vpop.f32.mrb[0].mxu0
    %v3632 = vpop.f32.mrb[0].mxu0
    %v3633 = vadd.f32 %v3536, %v3632
    %v3634 = vpop.f32.mrb[0].mxu0
    %3635 = vmatprep.mubr.bf16.mxu0 %v3202
    %3636 = vmatmul.mubr.bf16.gmra.mrb[0].mxu0 %v3201
    %v3637 = vpop.f32.mrb[0].mxu0
    %v3638 = vadd.f32 %v3541, %v3637
    %v3639 = vpop.f32.mrb[0].mxu0
    %v3640 = vpop.f32.mrb[0].mxu0
    %v3641 = vadd.f32 %v3544, %v3640
    %v3642 = vpop.f32.mrb[0].mxu0
    %3643 = vmatprep.mubr.bf16.mxu0 %v3206
    %3644 = vmatmul.mubr.bf16.gmra.mrb[0].mxu0 %v3205
    %v3645 = vpop.f32.mrb[0].mxu0
    %v3646 = vadd.f32 %v3549, %v3645
    %v3647 = vpop.f32.mrb[0].mxu0
    %v3648 = vpop.f32.mrb[0].mxu0
    %v3649 = vadd.f32 %v3552, %v3648
    %v3650 = vpop.f32.mrb[0].mxu0
    %3651 = vmatprep.mubr.bf16.mxu0 %v3210
    %3652 = vmatmul.mubr.bf16.gmra.mrb[0].mxu0 %v3209
    %v3653 = vpop.f32.mrb[0].mxu0
    %v3654 = vadd.f32 %v3557, %v3653
    %v3655 = vpop.f32.mrb[0].mxu0
    %v3656 = vpop.f32.mrb[0].mxu0
    %v3657 = vadd.f32 %v3560, %v3656
    %v3658 = vpop.f32.mrb[0].mxu0
    %3659 = vmatprep.mubr.bf16.mxu0 %v3214
    %3660 = vmatmul.mubr.bf16.gmra.mrb[0].mxu0 %v3213
    %v3661 = vpop.f32.mrb[0].mxu0
    %v3662 = vadd.f32 %v3565, %v3661
    %v3663 = vpop.f32.mrb[0].mxu0
    %v3664 = vpop.f32.mrb[0].mxu0
    %v3665 = vadd.f32 %v3568, %v3664
    %v3666 = vpop.f32.mrb[0].mxu0
    %3667 = vmatprep.mubr.bf16.mxu0 %v3218
    %3668 = vmatmul.mubr.bf16.gmra.mrb[0].mxu0 %v3217
    %v3669 = vpop.f32.mrb[0].mxu0
    %v3670 = vadd.f32 %v3573, %v3669
    %v3671 = vpop.f32.mrb[0].mxu0
    %v3672 = vpop.f32.mrb[0].mxu0
    %v3673 = vadd.f32 %v3576, %v3672
    %v3674 = vpop.f32.mrb[0].mxu0
    %3675 = vdwg.mxu0
    %3676 = vst [vmem:[#allocation36] sm:$0xff] %v3614
    %3677 = vst [vmem:[#allocation36 + $0x8] sm:$0xff] %v3617
    %3678 = vst [vmem:[#allocation36 + $0x10] sm:$0xff] %v3622
    %3679 = vst [vmem:[#allocation36 + $0x18] sm:$0xff] %v3625
    %3680 = vst [vmem:[#allocation36 + $0x20] sm:$0xff] %v3630
    %3681 = vst [vmem:[#allocation36 + $0x28] sm:$0xff] %v3633
    %3682 = vst [vmem:[#allocation36 + $0x30] sm:$0xff] %v3638
    %3683 = vst [vmem:[#allocation36 + $0x38] sm:$0xff] %v3641
    %3684 = vst [vmem:[#allocation36 + $0x40] sm:$0xff] %v3646
    %3685 = vst [vmem:[#allocation36 + $0x48] sm:$0xff] %v3649
    %3686 = vst [vmem:[#allocation36 + $0x50] sm:$0xff] %v3654
    %3687 = vst [vmem:[#allocation36 + $0x58] sm:$0xff] %v3657
    %3688 = vst [vmem:[#allocation36 + $0x60] sm:$0xff] %v3662
    %3689 = vst [vmem:[#allocation36 + $0x68] sm:$0xff] %v3665
    %3690 = vst [vmem:[#allocation36 + $0x70] sm:$0xff] %v3670
    %3691 = vst [vmem:[#allocation36 + $0x78] sm:$0xff] %v3673
    %v3692 = vld [vmem:[%s17] sm:$0xf]
    %v3693 = vld [vmem:[%s17 + $0x4] sm:$0xf]
    %v3694 = vld [vmem:[%s17 + $0x8] sm:$0xf]
    %v3695 = vld [vmem:[%s17 + $0xc] sm:$0xf]
    %v3696 = vld [vmem:[%s17 + $0x10] sm:$0xf]
    %v3697 = vld [vmem:[%s17 + $0x14] sm:$0xf]
    %v3698 = vld [vmem:[%s17 + $0x18] sm:$0xf]
    %v3699 = vld [vmem:[%s17 + $0x1c] sm:$0xf]
    %v3700 = vld [vmem:[%s17 + $0x20] sm:$0xf]
    %v3701 = vld [vmem:[%s17 + $0x24] sm:$0xf]
    %v3702 = vld [vmem:[%s17 + $0x28] sm:$0xf]
    %v3703 = vld [vmem:[%s17 + $0x2c] sm:$0xf]
    %v3704 = vld [vmem:[%s17 + $0x30] sm:$0xf]
    %v3705 = vld [vmem:[%s17 + $0x34] sm:$0xf]
    %v3706 = vld [vmem:[%s17 + $0x38] sm:$0xf]
    %v3707 = vld [vmem:[%s17 + $0x3c] sm:$0xf]
    %v3708 = vld [vmem:[#allocation29] sm:$0x1]
    %v3710 = vlaneseq
    %v3711 = vshrl.u32 %v3710, 7
    %v3712 = vsub.s32 0, %v3711
    %v3713 = vrot.slane %v3708, %v3712
    %v3731 = vunpack.c.l.b16 %v3692
    %v3732 = vunpack.c.l.b16 %v3693
    %v3733 = vunpack.c.l.b16 %v3694
    %v3734 = vunpack.c.l.b16 %v3695
    %v3735 = vunpack.c.l.b16 %v3696
    %v3736 = vunpack.c.l.b16 %v3697
    %v3737 = vunpack.c.l.b16 %v3698
    %v3738 = vunpack.c.l.b16 %v3699
    %v3739 = vunpack.c.l.b16 %v3700
    %v3740 = vunpack.c.l.b16 %v3701
    %v3741 = vunpack.c.l.b16 %v3702
    %v3742 = vunpack.c.l.b16 %v3703
    %v3743 = vunpack.c.l.b16 %v3704
    %v3744 = vunpack.c.l.b16 %v3705
    %v3745 = vunpack.c.l.b16 %v3706
    %v3746 = vunpack.c.l.b16 %v3707
    %v3747 = vpack.c.b16 %v3732, %v3731
    %v3748 = vpack.c.b16 %v3734, %v3733
    %v3749 = vpack.c.b16 %v3736, %v3735
    %v3750 = vpack.c.b16 %v3738, %v3737
    %v3751 = vpack.c.b16 %v3740, %v3739
    %v3752 = vpack.c.b16 %v3742, %v3741
    %v3753 = vpack.c.b16 %v3744, %v3743
    %v3754 = vpack.c.b16 %v3746, %v3745
    %3763 = vmatprep.subr.bf16.mxu0 0
    %3764 = vmatpush1.bf16.msra.mxu0 %v3747
    %3765 = vmatprep.subr.bf16.mxu0 0
    %3766 = vmatpush1.bf16.msra.mxu0 %v3748
    %3767 = vmatprep.subr.bf16.mxu0 0
    %3768 = vmatpush1.bf16.msra.mxu0 %v3749
    %3769 = vmatprep.subr.bf16.mxu0 0
    %3770 = vmatpush1.bf16.msra.mxu0 %v3750
    %3771 = vmatprep.subr.bf16.mxu0 0
    %3772 = vmatpush1.bf16.msra.mxu0 %v3751
    %3773 = vmatprep.subr.bf16.mxu0 0
    %3774 = vmatpush1.bf16.msra.mxu0 %v3752
    %3775 = vmatprep.subr.bf16.mxu0 0
    %3776 = vmatpush1.bf16.msra.mxu0 %v3753
    %3777 = vmatprep.subr.bf16.mxu0 0
    %3778 = vmatpush1.bf16.msra.mxu0 %v3754
    %3779 = vmatprep.subr.bf16.mxu0 0
    %3780 = vmatpush1.bf16.msra.mxu0 0
    %3781 = vmatprep.subr.bf16.mxu0 0
    %3782 = vmatpush1.bf16.msra.mxu0 0
    %3783 = vmatprep.subr.bf16.mxu0 0
    %3784 = vmatpush1.bf16.msra.mxu0 0
    %3785 = vmatprep.subr.bf16.mxu0 0
    %3786 = vmatpush1.bf16.msra.mxu0 0
    %3787 = vmatprep.subr.bf16.mxu0 0
    %3788 = vmatpush1.bf16.msra.mxu0 0
    %3789 = vmatprep.subr.bf16.mxu0 0
    %3790 = vmatpush1.bf16.msra.mxu0 0
    %3791 = vmatprep.subr.bf16.mxu0 0
    %3792 = vmatpush1.bf16.msra.mxu0 0
    %3793 = vmatprep.subr.bf16.mxu0 0
    %3794 = vmatpush1.bf16.msra.mxu0 0
    %3795 = vmatprep.mubr.bf16.mxu0 0
    %3796 = vmatmul.mubr.bf16.gmra.mrb[0].mxu0 %v2022
    %v3797 = vpop.f32.mrb[0].mxu0
    %v3798 = vadd.f32 %v3713, %v3797
    %v3799 = vpop.f32.mrb[0].mxu0
    %v3800 = vpop.f32.mrb[0].mxu0
    %v3801 = vadd.f32 %v3713, %v3800
    %v3802 = vpop.f32.mrb[0].mxu0
    %3803 = vmatprep.mubr.bf16.mxu0 0
    %3804 = vmatmul.mubr.bf16.gmra.mrb[0].mxu0 %v2023
    %v3805 = vpop.f32.mrb[0].mxu0
    %v3806 = vadd.f32 %v3713, %v3805
    %v3807 = vpop.f32.mrb[0].mxu0
    %v3808 = vpop.f32.mrb[0].mxu0
    %v3809 = vadd.f32 %v3713, %v3808
    %v3810 = vpop.f32.mrb[0].mxu0
    %3811 = vmatprep.mubr.bf16.mxu0 0
    %3812 = vmatmul.mubr.bf16.gmra.mrb[0].mxu0 %v2024
    %v3813 = vpop.f32.mrb[0].mxu0
    %v3814 = vadd.f32 %v3713, %v3813
    %v3815 = vpop.f32.mrb[0].mxu0
    %v3816 = vpop.f32.mrb[0].mxu0
    %v3817 = vadd.f32 %v3713, %v3816
    %v3818 = vpop.f32.mrb[0].mxu0
    %3819 = vmatprep.mubr.bf16.mxu0 0
    %3820 = vmatmul.mubr.bf16.gmra.mrb[0].mxu0 %v2025
    %v3821 = vpop.f32.mrb[0].mxu0
    %v3822 = vadd.f32 %v3713, %v3821
    %v3823 = vpop.f32.mrb[0].mxu0
    %v3824 = vpop.f32.mrb[0].mxu0
    %v3825 = vadd.f32 %v3713, %v3824
    %v3826 = vpop.f32.mrb[0].mxu0
    %3827 = vmatprep.mubr.bf16.mxu0 0
    %3828 = vmatmul.mubr.bf16.gmra.mrb[0].mxu0 %v2026
    %v3829 = vpop.f32.mrb[0].mxu0
    %v3830 = vadd.f32 %v3713, %v3829
    %v3831 = vpop.f32.mrb[0].mxu0
    %v3832 = vpop.f32.mrb[0].mxu0
    %v3833 = vadd.f32 %v3713, %v3832
    %v3834 = vpop.f32.mrb[0].mxu0
    %3835 = vmatprep.mubr.bf16.mxu0 0
    %3836 = vmatmul.mubr.bf16.gmra.mrb[0].mxu0 %v2027
    %v3837 = vpop.f32.mrb[0].mxu0
    %v3838 = vadd.f32 %v3713, %v3837
    %v3839 = vpop.f32.mrb[0].mxu0
    %v3840 = vpop.f32.mrb[0].mxu0
    %v3841 = vadd.f32 %v3713, %v3840
    %v3842 = vpop.f32.mrb[0].mxu0
    %3843 = vmatprep.mubr.bf16.mxu0 0
    %3844 = vmatmul.mubr.bf16.gmra.mrb[0].mxu0 %v2028
    %v3845 = vpop.f32.mrb[0].mxu0
    %v3846 = vadd.f32 %v3713, %v3845
    %v3847 = vpop.f32.mrb[0].mxu0
    %v3848 = vpop.f32.mrb[0].mxu0
    %v3849 = vadd.f32 %v3713, %v3848
    %v3850 = vpop.f32.mrb[0].mxu0
    %3851 = vmatprep.mubr.bf16.mxu0 0
    %3852 = vmatmul.mubr.bf16.gmra.mrb[0].mxu0 %v2029
    %v3853 = vpop.f32.mrb[0].mxu0
    %v3854 = vadd.f32 %v3713, %v3853
    %v3855 = vpop.f32.mrb[0].mxu0
    %v3856 = vpop.f32.mrb[0].mxu0
    %v3857 = vadd.f32 %v3713, %v3856
    %v3858 = vpop.f32.mrb[0].mxu0
    %3859 = vdwg.mxu0
    %v3860 = vmax.f32 %v3798, 0.0
    %v3861 = vmax.f32 %v3801, 0.0
    %v3862 = vmax.f32 %v3806, 0.0
    %v3863 = vmax.f32 %v3809, 0.0
    %v3864 = vmax.f32 %v3814, 0.0
    %v3865 = vmax.f32 %v3817, 0.0
    %v3866 = vmax.f32 %v3822, 0.0
    %v3867 = vmax.f32 %v3825, 0.0
    %v3868 = vmax.f32 %v3830, 0.0
    %v3869 = vmax.f32 %v3833, 0.0
    %v3870 = vmax.f32 %v3838, 0.0
    %v3871 = vmax.f32 %v3841, 0.0
    %v3872 = vmax.f32 %v3846, 0.0
    %v3873 = vmax.f32 %v3849, 0.0
    %v3874 = vmax.f32 %v3854, 0.0
    %v3875 = vmax.f32 %v3857, 0.0
    %v3876 = vpack.c.bf16 %v3861, %v3860
    %v3877 = vpack.c.bf16 %v3863, %v3862
    %v3878 = vpack.c.bf16 %v3865, %v3864
    %v3879 = vpack.c.bf16 %v3867, %v3866
    %v3880 = vpack.c.bf16 %v3869, %v3868
    %v3881 = vpack.c.bf16 %v3871, %v3870
    %v3882 = vpack.c.bf16 %v3873, %v3872
    %v3883 = vpack.c.bf16 %v3875, %v3874
    %v3884 = vld [vmem:[#allocation31] sm:$0xff]
    %v3885 = vld [vmem:[#allocation31 + $0x8] sm:$0xff]
    %v3886 = vld [vmem:[#allocation31 + $0x10] sm:$0xff]
    %v3887 = vld [vmem:[#allocation31 + $0x18] sm:$0xff]
    %v3888 = vld [vmem:[#allocation31 + $0x20] sm:$0xff]
    %v3889 = vld [vmem:[#allocation31 + $0x28] sm:$0xff]
    %v3890 = vld [vmem:[#allocation31 + $0x30] sm:$0xff]
    %v3891 = vld [vmem:[#allocation31 + $0x38] sm:$0xff]
    %v3892 = vld [vmem:[#allocation31 + $0x40] sm:$0xff]
    %v3893 = vld [vmem:[#allocation31 + $0x48] sm:$0xff]
    %v3894 = vld [vmem:[#allocation31 + $0x50] sm:$0xff]
    %v3895 = vld [vmem:[#allocation31 + $0x58] sm:$0xff]
    %v3896 = vld [vmem:[#allocation31 + $0x60] sm:$0xff]
    %v3897 = vld [vmem:[#allocation31 + $0x68] sm:$0xff]
    %v3898 = vld [vmem:[#allocation31 + $0x70] sm:$0xff]
    %v3899 = vld [vmem:[#allocation31 + $0x78] sm:$0xff]
    %v3900 = vld [vmem:[%s20] sm:$0x3]
    %v3902 = vlaneseq
    %v3903 = vshrl.u32 %v3902, 7
    %v3904 = vsub.s32 0, %v3903
    %v3905 = vrot.slane %v3900, %v3904
    %v3906 = vlaneseq
    %v3907 = vshrl.u32 %v3906, 7
    %v3908 = vsub.s32 1, %v3907
    %v3909 = vrot.slane %v3900, %v3908
    %v3928 = vunpack.c.l.b16 %v3884
    %v3929 = vunpack.c.h.b16 %v3884
    %v3930 = vunpack.c.l.b16 %v3885
    %v3931 = vunpack.c.h.b16 %v3885
    %v3932 = vunpack.c.l.b16 %v3886
    %v3933 = vunpack.c.h.b16 %v3886
    %v3934 = vunpack.c.l.b16 %v3887
    %v3935 = vunpack.c.h.b16 %v3887
    %v3936 = vunpack.c.l.b16 %v3888
    %v3937 = vunpack.c.h.b16 %v3888
    %v3938 = vunpack.c.l.b16 %v3889
    %v3939 = vunpack.c.h.b16 %v3889
    %v3940 = vunpack.c.l.b16 %v3890
    %v3941 = vunpack.c.h.b16 %v3890
    %v3942 = vunpack.c.l.b16 %v3891
    %v3943 = vunpack.c.h.b16 %v3891
    %v3944 = vunpack.c.l.b16 %v3892
    %v3945 = vunpack.c.h.b16 %v3892
    %v3946 = vunpack.c.l.b16 %v3893
    %v3947 = vunpack.c.h.b16 %v3893
    %v3948 = vunpack.c.l.b16 %v3894
    %v3949 = vunpack.c.h.b16 %v3894
    %v3950 = vunpack.c.l.b16 %v3895
    %v3951 = vunpack.c.h.b16 %v3895
    %v3952 = vunpack.c.l.b16 %v3896
    %v3953 = vunpack.c.h.b16 %v3896
    %v3954 = vunpack.c.l.b16 %v3897
    %v3955 = vunpack.c.h.b16 %v3897
    %v3956 = vunpack.c.l.b16 %v3898
    %v3957 = vunpack.c.h.b16 %v3898
    %v3958 = vunpack.c.l.b16 %v3899
    %v3959 = vunpack.c.h.b16 %v3899
    %v3960 = vpack.c.b16 %v3930, %v3928
    %v3961 = vpack.c.b16 %v3931, %v3929
    %v3962 = vpack.c.b16 %v3934, %v3932
    %v3963 = vpack.c.b16 %v3935, %v3933
    %v3964 = vpack.c.b16 %v3938, %v3936
    %v3965 = vpack.c.b16 %v3939, %v3937
    %v3966 = vpack.c.b16 %v3942, %v3940
    %v3967 = vpack.c.b16 %v3943, %v3941
    %v3968 = vpack.c.b16 %v3946, %v3944
    %v3969 = vpack.c.b16 %v3947, %v3945
    %v3970 = vpack.c.b16 %v3950, %v3948
    %v3971 = vpack.c.b16 %v3951, %v3949
    %v3972 = vpack.c.b16 %v3954, %v3952
    %v3973 = vpack.c.b16 %v3955, %v3953
    %v3974 = vpack.c.b16 %v3958, %v3956
    %v3975 = vpack.c.b16 %v3959, %v3957
    %3992 = vmatprep.subr.bf16.mxu0 %v3961
    %3993 = vmatpush1.bf16.msra.mxu0 %v3960
    %3994 = vmatprep.subr.bf16.mxu0 %v3963
    %3995 = vmatpush1.bf16.msra.mxu0 %v3962
    %3996 = vmatprep.subr.bf16.mxu0 %v3965
    %3997 = vmatpush1.bf16.msra.mxu0 %v3964
    %3998 = vmatprep.subr.bf16.mxu0 %v3967
    %3999 = vmatpush1.bf16.msra.mxu0 %v3966
    %4000 = vmatprep.subr.bf16.mxu0 %v3969
    %4001 = vmatpush1.bf16.msra.mxu0 %v3968
    %4002 = vmatprep.subr.bf16.mxu0 %v3971
    %4003 = vmatpush1.bf16.msra.mxu0 %v3970
    %4004 = vmatprep.subr.bf16.mxu0 %v3973
    %4005 = vmatpush1.bf16.msra.mxu0 %v3972
    %4006 = vmatprep.subr.bf16.mxu0 %v3975
    %4007 = vmatpush1.bf16.msra.mxu0 %v3974
    %4008 = vmatprep.subr.bf16.mxu0 0
    %4009 = vmatpush1.bf16.msra.mxu0 0
    %4010 = vmatprep.subr.bf16.mxu0 0
    %4011 = vmatpush1.bf16.msra.mxu0 0
    %4012 = vmatprep.subr.bf16.mxu0 0
    %4013 = vmatpush1.bf16.msra.mxu0 0
    %4014 = vmatprep.subr.bf16.mxu0 0
    %4015 = vmatpush1.bf16.msra.mxu0 0
    %4016 = vmatprep.subr.bf16.mxu0 0
    %4017 = vmatpush1.bf16.msra.mxu0 0
    %4018 = vmatprep.subr.bf16.mxu0 0
    %4019 = vmatpush1.bf16.msra.mxu0 0
    %4020 = vmatprep.subr.bf16.mxu0 0
    %4021 = vmatpush1.bf16.msra.mxu0 0
    %4022 = vmatprep.subr.bf16.mxu0 0
    %4023 = vmatpush1.bf16.msra.mxu0 0
    %4024 = vmatprep.mubr.bf16.mxu0 0
    %4025 = vmatmul.mubr.bf16.gmra.mrb[0].mxu0 %v3876
    %v4026 = vpop.f32.mrb[0].mxu0
    %v4027 = vadd.f32 %v3905, %v4026
    %v4028 = vpop.f32.mrb[0].mxu0
    %v4029 = vadd.f32 %v3909, %v4028
    %v4030 = vpop.f32.mrb[0].mxu0
    %v4031 = vadd.f32 %v3905, %v4030
    %v4032 = vpop.f32.mrb[0].mxu0
    %v4033 = vadd.f32 %v3909, %v4032
    %4034 = vmatprep.mubr.bf16.mxu0 0
    %4035 = vmatmul.mubr.bf16.gmra.mrb[0].mxu0 %v3877
    %v4036 = vpop.f32.mrb[0].mxu0
    %v4037 = vadd.f32 %v3905, %v4036
    %v4038 = vpop.f32.mrb[0].mxu0
    %v4039 = vadd.f32 %v3909, %v4038
    %v4040 = vpop.f32.mrb[0].mxu0
    %v4041 = vadd.f32 %v3905, %v4040
    %v4042 = vpop.f32.mrb[0].mxu0
    %v4043 = vadd.f32 %v3909, %v4042
    %4044 = vmatprep.mubr.bf16.mxu0 0
    %4045 = vmatmul.mubr.bf16.gmra.mrb[0].mxu0 %v3878
    %v4046 = vpop.f32.mrb[0].mxu0
    %v4047 = vadd.f32 %v3905, %v4046
    %v4048 = vpop.f32.mrb[0].mxu0
    %v4049 = vadd.f32 %v3909, %v4048
    %v4050 = vpop.f32.mrb[0].mxu0
    %v4051 = vadd.f32 %v3905, %v4050
    %v4052 = vpop.f32.mrb[0].mxu0
    %v4053 = vadd.f32 %v3909, %v4052
    %4054 = vmatprep.mubr.bf16.mxu0 0
    %4055 = vmatmul.mubr.bf16.gmra.mrb[0].mxu0 %v3879
    %v4056 = vpop.f32.mrb[0].mxu0
    %v4057 = vadd.f32 %v3905, %v4056
    %v4058 = vpop.f32.mrb[0].mxu0
    %v4059 = vadd.f32 %v3909, %v4058
    %v4060 = vpop.f32.mrb[0].mxu0
    %v4061 = vadd.f32 %v3905, %v4060
    %v4062 = vpop.f32.mrb[0].mxu0
    %v4063 = vadd.f32 %v3909, %v4062
    %4064 = vmatprep.mubr.bf16.mxu0 0
    %4065 = vmatmul.mubr.bf16.gmra.mrb[0].mxu0 %v3880
    %v4066 = vpop.f32.mrb[0].mxu0
    %v4067 = vadd.f32 %v3905, %v4066
    %v4068 = vpop.f32.mrb[0].mxu0
    %v4069 = vadd.f32 %v3909, %v4068
    %v4070 = vpop.f32.mrb[0].mxu0
    %v4071 = vadd.f32 %v3905, %v4070
    %v4072 = vpop.f32.mrb[0].mxu0
    %v4073 = vadd.f32 %v3909, %v4072
    %4074 = vmatprep.mubr.bf16.mxu0 0
    %4075 = vmatmul.mubr.bf16.gmra.mrb[0].mxu0 %v3881
    %v4076 = vpop.f32.mrb[0].mxu0
    %v4077 = vadd.f32 %v3905, %v4076
    %v4078 = vpop.f32.mrb[0].mxu0
    %v4079 = vadd.f32 %v3909, %v4078
    %v4080 = vpop.f32.mrb[0].mxu0
    %v4081 = vadd.f32 %v3905, %v4080
    %v4082 = vpop.f32.mrb[0].mxu0
    %v4083 = vadd.f32 %v3909, %v4082
    %4084 = vmatprep.mubr.bf16.mxu0 0
    %4085 = vmatmul.mubr.bf16.gmra.mrb[0].mxu0 %v3882
    %v4086 = vpop.f32.mrb[0].mxu0
    %v4087 = vadd.f32 %v3905, %v4086
    %v4088 = vpop.f32.mrb[0].mxu0
    %v4089 = vadd.f32 %v3909, %v4088
    %v4090 = vpop.f32.mrb[0].mxu0
    %v4091 = vadd.f32 %v3905, %v4090
    %v4092 = vpop.f32.mrb[0].mxu0
    %v4093 = vadd.f32 %v3909, %v4092
    %4094 = vmatprep.mubr.bf16.mxu0 0
    %4095 = vmatmul.mubr.bf16.gmra.mrb[0].mxu0 %v3883
    %v4096 = vpop.f32.mrb[0].mxu0
    %v4097 = vadd.f32 %v3905, %v4096
    %v4098 = vpop.f32.mrb[0].mxu0
    %v4099 = vadd.f32 %v3909, %v4098
    %v4100 = vpop.f32.mrb[0].mxu0
    %v4101 = vadd.f32 %v3905, %v4100
    %v4102 = vpop.f32.mrb[0].mxu0
    %v4103 = vadd.f32 %v3909, %v4102
    %4104 = vdwg.mxu0
    %v4105 = vmax.f32 %v4027, 0.0
    %v4106 = vmax.f32 %v4029, 0.0
    %v4107 = vmax.f32 %v4031, 0.0
    %v4108 = vmax.f32 %v4033, 0.0
    %v4109 = vmax.f32 %v4037, 0.0
    %v4110 = vmax.f32 %v4039, 0.0
    %v4111 = vmax.f32 %v4041, 0.0
    %v4112 = vmax.f32 %v4043, 0.0
    %v4113 = vmax.f32 %v4047, 0.0
    %v4114 = vmax.f32 %v4049, 0.0
    %v4115 = vmax.f32 %v4051, 0.0
    %v4116 = vmax.f32 %v4053, 0.0
    %v4117 = vmax.f32 %v4057, 0.0
    %v4118 = vmax.f32 %v4059, 0.0
    %v4119 = vmax.f32 %v4061, 0.0
    %v4120 = vmax.f32 %v4063, 0.0
    %v4121 = vmax.f32 %v4067, 0.0
    %v4122 = vmax.f32 %v4069, 0.0
    %v4123 = vmax.f32 %v4071, 0.0
    %v4124 = vmax.f32 %v4073, 0.0
    %v4125 = vmax.f32 %v4077, 0.0
    %v4126 = vmax.f32 %v4079, 0.0
    %v4127 = vmax.f32 %v4081, 0.0
    %v4128 = vmax.f32 %v4083, 0.0
    %v4129 = vmax.f32 %v4087, 0.0
    %v4130 = vmax.f32 %v4089, 0.0
    %v4131 = vmax.f32 %v4091, 0.0
    %v4132 = vmax.f32 %v4093, 0.0
    %v4133 = vmax.f32 %v4097, 0.0
    %v4134 = vmax.f32 %v4099, 0.0
    %v4135 = vmax.f32 %v4101, 0.0
    %v4136 = vmax.f32 %v4103, 0.0
    %v4137 = vpack.c.bf16 %v4107, %v4105
    %v4138 = vpack.c.bf16 %v4108, %v4106
    %v4139 = vpack.c.bf16 %v4111, %v4109
    %v4140 = vpack.c.bf16 %v4112, %v4110
    %v4141 = vpack.c.bf16 %v4115, %v4113
    %v4142 = vpack.c.bf16 %v4116, %v4114
    %v4143 = vpack.c.bf16 %v4119, %v4117
    %v4144 = vpack.c.bf16 %v4120, %v4118
    %v4145 = vpack.c.bf16 %v4123, %v4121
    %v4146 = vpack.c.bf16 %v4124, %v4122
    %v4147 = vpack.c.bf16 %v4127, %v4125
    %v4148 = vpack.c.bf16 %v4128, %v4126
    %v4149 = vpack.c.bf16 %v4131, %v4129
    %v4150 = vpack.c.bf16 %v4132, %v4130
    %v4151 = vpack.c.bf16 %v4135, %v4133
    %v4152 = vpack.c.bf16 %v4136, %v4134
    %v4153 = vld [vmem:[#allocation32] sm:$0xff]
    %v4154 = vld [vmem:[#allocation32 + $0x8] sm:$0xff]
    %v4155 = vld [vmem:[#allocation32 + $0x10] sm:$0xff]
    %v4156 = vld [vmem:[#allocation32 + $0x18] sm:$0xff]
    %v4157 = vld [vmem:[#allocation32 + $0x20] sm:$0xff]
    %v4158 = vld [vmem:[#allocation32 + $0x28] sm:$0xff]
    %v4159 = vld [vmem:[#allocation32 + $0x30] sm:$0xff]
    %v4160 = vld [vmem:[#allocation32 + $0x38] sm:$0xff]
    %v4161 = vld [vmem:[#allocation32 + $0x40] sm:$0xff]
    %v4162 = vld [vmem:[#allocation32 + $0x48] sm:$0xff]
    %v4163 = vld [vmem:[#allocation32 + $0x50] sm:$0xff]
    %v4164 = vld [vmem:[#allocation32 + $0x58] sm:$0xff]
    %v4165 = vld [vmem:[#allocation32 + $0x60] sm:$0xff]
    %v4166 = vld [vmem:[#allocation32 + $0x68] sm:$0xff]
    %v4167 = vld [vmem:[#allocation32 + $0x70] sm:$0xff]
    %v4168 = vld [vmem:[#allocation32 + $0x78] sm:$0xff]
    %v4169 = vld [vmem:[#allocation32 + $0x80] sm:$0xff]
    %v4170 = vld [vmem:[#allocation32 + $0x88] sm:$0xff]
    %v4171 = vld [vmem:[#allocation32 + $0x90] sm:$0xff]
    %v4172 = vld [vmem:[#allocation32 + $0x98] sm:$0xff]
    %v4173 = vld [vmem:[#allocation32 + $0xa0] sm:$0xff]
    %v4174 = vld [vmem:[#allocation32 + $0xa8] sm:$0xff]
    %v4175 = vld [vmem:[#allocation32 + $0xb0] sm:$0xff]
    %v4176 = vld [vmem:[#allocation32 + $0xb8] sm:$0xff]
    %v4177 = vld [vmem:[#allocation32 + $0xc0] sm:$0xff]
    %v4178 = vld [vmem:[#allocation32 + $0xc8] sm:$0xff]
    %v4179 = vld [vmem:[#allocation32 + $0xd0] sm:$0xff]
    %v4180 = vld [vmem:[#allocation32 + $0xd8] sm:$0xff]
    %v4181 = vld [vmem:[#allocation32 + $0xe0] sm:$0xff]
    %v4182 = vld [vmem:[#allocation32 + $0xe8] sm:$0xff]
    %v4183 = vld [vmem:[#allocation32 + $0xf0] sm:$0xff]
    %v4184 = vld [vmem:[#allocation32 + $0xf8] sm:$0xff]
    %v4185 = vld [vmem:[#allocation32 + $0x100] sm:$0xff]
    %v4186 = vld [vmem:[#allocation32 + $0x108] sm:$0xff]
    %v4187 = vld [vmem:[#allocation32 + $0x110] sm:$0xff]
    %v4188 = vld [vmem:[#allocation32 + $0x118] sm:$0xff]
    %v4189 = vld [vmem:[#allocation32 + $0x120] sm:$0xff]
    %v4190 = vld [vmem:[#allocation32 + $0x128] sm:$0xff]
    %v4191 = vld [vmem:[#allocation32 + $0x130] sm:$0xff]
    %v4192 = vld [vmem:[#allocation32 + $0x138] sm:$0xff]
    %v4193 = vld [vmem:[#allocation32 + $0x140] sm:$0xff]
    %v4194 = vld [vmem:[#allocation32 + $0x148] sm:$0xff]
    %v4195 = vld [vmem:[#allocation32 + $0x150] sm:$0xff]
    %v4196 = vld [vmem:[#allocation32 + $0x158] sm:$0xff]
    %v4197 = vld [vmem:[#allocation32 + $0x160] sm:$0xff]
    %v4198 = vld [vmem:[#allocation32 + $0x168] sm:$0xff]
    %v4199 = vld [vmem:[#allocation32 + $0x170] sm:$0xff]
    %v4200 = vld [vmem:[#allocation32 + $0x178] sm:$0xff]
    %v4201 = vld [vmem:[#allocation32 + $0x180] sm:$0xff]
    %v4202 = vld [vmem:[#allocation32 + $0x188] sm:$0xff]
    %v4203 = vld [vmem:[#allocation32 + $0x190] sm:$0xff]
    %v4204 = vld [vmem:[#allocation32 + $0x198] sm:$0xff]
    %v4205 = vld [vmem:[#allocation32 + $0x1a0] sm:$0xff]
    %v4206 = vld [vmem:[#allocation32 + $0x1a8] sm:$0xff]
    %v4207 = vld [vmem:[#allocation32 + $0x1b0] sm:$0xff]
    %v4208 = vld [vmem:[#allocation32 + $0x1b8] sm:$0xff]
    %v4209 = vld [vmem:[#allocation32 + $0x1c0] sm:$0xff]
    %v4210 = vld [vmem:[#allocation32 + $0x1c8] sm:$0xff]
    %v4211 = vld [vmem:[#allocation32 + $0x1d0] sm:$0xff]
    %v4212 = vld [vmem:[#allocation32 + $0x1d8] sm:$0xff]
    %v4213 = vld [vmem:[#allocation32 + $0x1e0] sm:$0xff]
    %v4214 = vld [vmem:[#allocation32 + $0x1e8] sm:$0xff]
    %v4215 = vld [vmem:[#allocation32 + $0x1f0] sm:$0xff]
    %v4216 = vld [vmem:[#allocation32 + $0x1f8] sm:$0xff]
    %v4217 = vld [vmem:[%s22] sm:$0xf]
    %v4219 = vlaneseq
    %v4220 = vshrl.u32 %v4219, 7
    %v4221 = vsub.s32 0, %v4220
    %v4222 = vrot.slane %v4217, %v4221
    %v4223 = vlaneseq
    %v4224 = vshrl.u32 %v4223, 7
    %v4225 = vsub.s32 1, %v4224
    %v4226 = vrot.slane %v4217, %v4225
    %v4227 = vlaneseq
    %v4228 = vshrl.u32 %v4227, 7
    %v4229 = vsub.s32 2, %v4228
    %v4230 = vrot.slane %v4217, %v4229
    %v4231 = vlaneseq
    %v4232 = vshrl.u32 %v4231, 7
    %v4233 = vsub.s32 3, %v4232
    %v4234 = vrot.slane %v4217, %v4233
    %v4303 = vunpack.c.l.b16 %v4153
    %v4304 = vunpack.c.h.b16 %v4153
    %v4305 = vunpack.c.l.b16 %v4154
    %v4306 = vunpack.c.h.b16 %v4154
    %v4307 = vunpack.c.l.b16 %v4155
    %v4308 = vunpack.c.h.b16 %v4155
    %v4309 = vunpack.c.l.b16 %v4156
    %v4310 = vunpack.c.h.b16 %v4156
    %v4311 = vunpack.c.l.b16 %v4157
    %v4312 = vunpack.c.h.b16 %v4157
    %v4313 = vunpack.c.l.b16 %v4158
    %v4314 = vunpack.c.h.b16 %v4158
    %v4315 = vunpack.c.l.b16 %v4159
    %v4316 = vunpack.c.h.b16 %v4159
    %v4317 = vunpack.c.l.b16 %v4160
    %v4318 = vunpack.c.h.b16 %v4160
    %v4319 = vunpack.c.l.b16 %v4161
    %v4320 = vunpack.c.h.b16 %v4161
    %v4321 = vunpack.c.l.b16 %v4162
    %v4322 = vunpack.c.h.b16 %v4162
    %v4323 = vunpack.c.l.b16 %v4163
    %v4324 = vunpack.c.h.b16 %v4163
    %v4325 = vunpack.c.l.b16 %v4164
    %v4326 = vunpack.c.h.b16 %v4164
    %v4327 = vunpack.c.l.b16 %v4165
    %v4328 = vunpack.c.h.b16 %v4165
    %v4329 = vunpack.c.l.b16 %v4166
    %v4330 = vunpack.c.h.b16 %v4166
    %v4331 = vunpack.c.l.b16 %v4167
    %v4332 = vunpack.c.h.b16 %v4167
    %v4333 = vunpack.c.l.b16 %v4168
    %v4334 = vunpack.c.h.b16 %v4168
    %v4335 = vunpack.c.l.b16 %v4169
    %v4336 = vunpack.c.h.b16 %v4169
    %v4337 = vunpack.c.l.b16 %v4170
    %v4338 = vunpack.c.h.b16 %v4170
    %v4339 = vunpack.c.l.b16 %v4171
    %v4340 = vunpack.c.h.b16 %v4171
    %v4341 = vunpack.c.l.b16 %v4172
    %v4342 = vunpack.c.h.b16 %v4172
    %v4343 = vunpack.c.l.b16 %v4173
    %v4344 = vunpack.c.h.b16 %v4173
    %v4345 = vunpack.c.l.b16 %v4174
    %v4346 = vunpack.c.h.b16 %v4174
    %v4347 = vunpack.c.l.b16 %v4175
    %v4348 = vunpack.c.h.b16 %v4175
    %v4349 = vunpack.c.l.b16 %v4176
    %v4350 = vunpack.c.h.b16 %v4176
    %v4351 = vunpack.c.l.b16 %v4177
    %v4352 = vunpack.c.h.b16 %v4177
    %v4353 = vunpack.c.l.b16 %v4178
    %v4354 = vunpack.c.h.b16 %v4178
    %v4355 = vunpack.c.l.b16 %v4179
    %v4356 = vunpack.c.h.b16 %v4179
    %v4357 = vunpack.c.l.b16 %v4180
    %v4358 = vunpack.c.h.b16 %v4180
    %v4359 = vunpack.c.l.b16 %v4181
    %v4360 = vunpack.c.h.b16 %v4181
    %v4361 = vunpack.c.l.b16 %v4182
    %v4362 = vunpack.c.h.b16 %v4182
    %v4363 = vunpack.c.l.b16 %v4183
    %v4364 = vunpack.c.h.b16 %v4183
    %v4365 = vunpack.c.l.b16 %v4184
    %v4366 = vunpack.c.h.b16 %v4184
    %v4367 = vunpack.c.l.b16 %v4185
    %v4368 = vunpack.c.h.b16 %v4185
    %v4369 = vunpack.c.l.b16 %v4186
    %v4370 = vunpack.c.h.b16 %v4186
    %v4371 = vunpack.c.l.b16 %v4187
    %v4372 = vunpack.c.h.b16 %v4187
    %v4373 = vunpack.c.l.b16 %v4188
    %v4374 = vunpack.c.h.b16 %v4188
    %v4375 = vunpack.c.l.b16 %v4189
    %v4376 = vunpack.c.h.b16 %v4189
    %v4377 = vunpack.c.l.b16 %v4190
    %v4378 = vunpack.c.h.b16 %v4190
    %v4379 = vunpack.c.l.b16 %v4191
    %v4380 = vunpack.c.h.b16 %v4191
    %v4381 = vunpack.c.l.b16 %v4192
    %v4382 = vunpack.c.h.b16 %v4192
    %v4383 = vunpack.c.l.b16 %v4193
    %v4384 = vunpack.c.h.b16 %v4193
    %v4385 = vunpack.c.l.b16 %v4194
    %v4386 = vunpack.c.h.b16 %v4194
    %v4387 = vunpack.c.l.b16 %v4195
    %v4388 = vunpack.c.h.b16 %v4195
    %v4389 = vunpack.c.l.b16 %v4196
    %v4390 = vunpack.c.h.b16 %v4196
    %v4391 = vunpack.c.l.b16 %v4197
    %v4392 = vunpack.c.h.b16 %v4197
    %v4393 = vunpack.c.l.b16 %v4198
    %v4394 = vunpack.c.h.b16 %v4198
    %v4395 = vunpack.c.l.b16 %v4199
    %v4396 = vunpack.c.h.b16 %v4199
    %v4397 = vunpack.c.l.b16 %v4200
    %v4398 = vunpack.c.h.b16 %v4200
    %v4399 = vunpack.c.l.b16 %v4201
    %v4400 = vunpack.c.h.b16 %v4201
    %v4401 = vunpack.c.l.b16 %v4202
    %v4402 = vunpack.c.h.b16 %v4202
    %v4403 = vunpack.c.l.b16 %v4203
    %v4404 = vunpack.c.h.b16 %v4203
    %v4405 = vunpack.c.l.b16 %v4204
    %v4406 = vunpack.c.h.b16 %v4204
    %v4407 = vunpack.c.l.b16 %v4205
    %v4408 = vunpack.c.h.b16 %v4205
    %v4409 = vunpack.c.l.b16 %v4206
    %v4410 = vunpack.c.h.b16 %v4206
    %v4411 = vunpack.c.l.b16 %v4207
    %v4412 = vunpack.c.h.b16 %v4207
    %v4413 = vunpack.c.l.b16 %v4208
    %v4414 = vunpack.c.h.b16 %v4208
    %v4415 = vunpack.c.l.b16 %v4209
    %v4416 = vunpack.c.h.b16 %v4209
    %v4417 = vunpack.c.l.b16 %v4210
    %v4418 = vunpack.c.h.b16 %v4210
    %v4419 = vunpack.c.l.b16 %v4211
    %v4420 = vunpack.c.h.b16 %v4211
    %v4421 = vunpack.c.l.b16 %v4212
    %v4422 = vunpack.c.h.b16 %v4212
    %v4423 = vunpack.c.l.b16 %v4213
    %v4424 = vunpack.c.h.b16 %v4213
    %v4425 = vunpack.c.l.b16 %v4214
    %v4426 = vunpack.c.h.b16 %v4214
    %v4427 = vunpack.c.l.b16 %v4215
    %v4428 = vunpack.c.h.b16 %v4215
    %v4429 = vunpack.c.l.b16 %v4216
    %v4430 = vunpack.c.h.b16 %v4216
    %v4431 = vpack.c.b16 %v4307, %v4303
    %v4432 = vpack.c.b16 %v4308, %v4304
    %v4433 = vpack.c.b16 %v4309, %v4305
    %v4434 = vpack.c.b16 %v4310, %v4306
    %v4435 = vpack.c.b16 %v4315, %v4311
    %v4436 = vpack.c.b16 %v4316, %v4312
    %v4437 = vpack.c.b16 %v4317, %v4313
    %v4438 = vpack.c.b16 %v4318, %v4314
    %v4439 = vpack.c.b16 %v4323, %v4319
    %v4440 = vpack.c.b16 %v4324, %v4320
    %v4441 = vpack.c.b16 %v4325, %v4321
    %v4442 = vpack.c.b16 %v4326, %v4322
    %v4443 = vpack.c.b16 %v4331, %v4327
    %v4444 = vpack.c.b16 %v4332, %v4328
    %v4445 = vpack.c.b16 %v4333, %v4329
    %v4446 = vpack.c.b16 %v4334, %v4330
    %v4447 = vpack.c.b16 %v4339, %v4335
    %v4448 = vpack.c.b16 %v4340, %v4336
    %v4449 = vpack.c.b16 %v4341, %v4337
    %v4450 = vpack.c.b16 %v4342, %v4338
    %v4451 = vpack.c.b16 %v4347, %v4343
    %v4452 = vpack.c.b16 %v4348, %v4344
    %v4453 = vpack.c.b16 %v4349, %v4345
    %v4454 = vpack.c.b16 %v4350, %v4346
    %v4455 = vpack.c.b16 %v4355, %v4351
    %v4456 = vpack.c.b16 %v4356, %v4352
    %v4457 = vpack.c.b16 %v4357, %v4353
    %v4458 = vpack.c.b16 %v4358, %v4354
    %v4459 = vpack.c.b16 %v4363, %v4359
    %v4460 = vpack.c.b16 %v4364, %v4360
    %v4461 = vpack.c.b16 %v4365, %v4361
    %v4462 = vpack.c.b16 %v4366, %v4362
    %v4463 = vpack.c.b16 %v4371, %v4367
    %v4464 = vpack.c.b16 %v4372, %v4368
    %v4465 = vpack.c.b16 %v4373, %v4369
    %v4466 = vpack.c.b16 %v4374, %v4370
    %v4467 = vpack.c.b16 %v4379, %v4375
    %v4468 = vpack.c.b16 %v4380, %v4376
    %v4469 = vpack.c.b16 %v4381, %v4377
    %v4470 = vpack.c.b16 %v4382, %v4378
    %v4471 = vpack.c.b16 %v4387, %v4383
    %v4472 = vpack.c.b16 %v4388, %v4384
    %v4473 = vpack.c.b16 %v4389, %v4385
    %v4474 = vpack.c.b16 %v4390, %v4386
    %v4475 = vpack.c.b16 %v4395, %v4391
    %v4476 = vpack.c.b16 %v4396, %v4392
    %v4477 = vpack.c.b16 %v4397, %v4393
    %v4478 = vpack.c.b16 %v4398, %v4394
    %v4479 = vpack.c.b16 %v4403, %v4399
    %v4480 = vpack.c.b16 %v4404, %v4400
    %v4481 = vpack.c.b16 %v4405, %v4401
    %v4482 = vpack.c.b16 %v4406, %v4402
    %v4483 = vpack.c.b16 %v4411, %v4407
    %v4484 = vpack.c.b16 %v4412, %v4408
    %v4485 = vpack.c.b16 %v4413, %v4409
    %v4486 = vpack.c.b16 %v4414, %v4410
    %v4487 = vpack.c.b16 %v4419, %v4415
    %v4488 = vpack.c.b16 %v4420, %v4416
    %v4489 = vpack.c.b16 %v4421, %v4417
    %v4490 = vpack.c.b16 %v4422, %v4418
    %v4491 = vpack.c.b16 %v4427, %v4423
    %v4492 = vpack.c.b16 %v4428, %v4424
    %v4493 = vpack.c.b16 %v4429, %v4425
    %v4494 = vpack.c.b16 %v4430, %v4426
    %4559 = vmatprep.subr.bf16.mxu0 %v4432
    %4560 = vmatpush1.bf16.msra.mxu0 %v4431
    %4561 = vmatprep.subr.bf16.mxu0 %v4436
    %4562 = vmatpush1.bf16.msra.mxu0 %v4435
    %4563 = vmatprep.subr.bf16.mxu0 %v4440
    %4564 = vmatpush1.bf16.msra.mxu0 %v4439
    %4565 = vmatprep.subr.bf16.mxu0 %v4444
    %4566 = vmatpush1.bf16.msra.mxu0 %v4443
    %4567 = vmatprep.subr.bf16.mxu0 %v4448
    %4568 = vmatpush1.bf16.msra.mxu0 %v4447
    %4569 = vmatprep.subr.bf16.mxu0 %v4452
    %4570 = vmatpush1.bf16.msra.mxu0 %v4451
    %4571 = vmatprep.subr.bf16.mxu0 %v4456
    %4572 = vmatpush1.bf16.msra.mxu0 %v4455
    %4573 = vmatprep.subr.bf16.mxu0 %v4460
    %4574 = vmatpush1.bf16.msra.mxu0 %v4459
    %4575 = vmatprep.subr.bf16.mxu0 %v4464
    %4576 = vmatpush1.bf16.msra.mxu0 %v4463
    %4577 = vmatprep.subr.bf16.mxu0 %v4468
    %4578 = vmatpush1.bf16.msra.mxu0 %v4467
    %4579 = vmatprep.subr.bf16.mxu0 %v4472
    %4580 = vmatpush1.bf16.msra.mxu0 %v4471
    %4581 = vmatprep.subr.bf16.mxu0 %v4476
    %4582 = vmatpush1.bf16.msra.mxu0 %v4475
    %4583 = vmatprep.subr.bf16.mxu0 %v4480
    %4584 = vmatpush1.bf16.msra.mxu0 %v4479
    %4585 = vmatprep.subr.bf16.mxu0 %v4484
    %4586 = vmatpush1.bf16.msra.mxu0 %v4483
    %4587 = vmatprep.subr.bf16.mxu0 %v4488
    %4588 = vmatpush1.bf16.msra.mxu0 %v4487
    %4589 = vmatprep.subr.bf16.mxu0 %v4492
    %4590 = vmatpush1.bf16.msra.mxu0 %v4491
    %4591 = vmatprep.mubr.bf16.mxu0 %v4138
    %4592 = vmatmul.mubr.bf16.gmra.mrb[0].mxu0 %v4137
    %v4593 = vpop.f32.mrb[0].mxu0
    %v4594 = vadd.f32 %v4222, %v4593
    %v4595 = vpop.f32.mrb[0].mxu0
    %v4596 = vadd.f32 %v4226, %v4595
    %v4597 = vpop.f32.mrb[0].mxu0
    %v4598 = vadd.f32 %v4222, %v4597
    %v4599 = vpop.f32.mrb[0].mxu0
    %v4600 = vadd.f32 %v4226, %v4599
    %4601 = vmatprep.mubr.bf16.mxu0 %v4140
    %4602 = vmatmul.mubr.bf16.gmra.mrb[0].mxu0 %v4139
    %v4603 = vpop.f32.mrb[0].mxu0
    %v4604 = vadd.f32 %v4222, %v4603
    %v4605 = vpop.f32.mrb[0].mxu0
    %v4606 = vadd.f32 %v4226, %v4605
    %v4607 = vpop.f32.mrb[0].mxu0
    %v4608 = vadd.f32 %v4222, %v4607
    %v4609 = vpop.f32.mrb[0].mxu0
    %v4610 = vadd.f32 %v4226, %v4609
    %4611 = vmatprep.mubr.bf16.mxu0 %v4142
    %4612 = vmatmul.mubr.bf16.gmra.mrb[0].mxu0 %v4141
    %v4613 = vpop.f32.mrb[0].mxu0
    %v4614 = vadd.f32 %v4222, %v4613
    %v4615 = vpop.f32.mrb[0].mxu0
    %v4616 = vadd.f32 %v4226, %v4615
    %v4617 = vpop.f32.mrb[0].mxu0
    %v4618 = vadd.f32 %v4222, %v4617
    %v4619 = vpop.f32.mrb[0].mxu0
    %v4620 = vadd.f32 %v4226, %v4619
    %4621 = vmatprep.mubr.bf16.mxu0 %v4144
    %4622 = vmatmul.mubr.bf16.gmra.mrb[0].mxu0 %v4143
    %v4623 = vpop.f32.mrb[0].mxu0
    %v4624 = vadd.f32 %v4222, %v4623
    %v4625 = vpop.f32.mrb[0].mxu0
    %v4626 = vadd.f32 %v4226, %v4625
    %v4627 = vpop.f32.mrb[0].mxu0
    %v4628 = vadd.f32 %v4222, %v4627
    %v4629 = vpop.f32.mrb[0].mxu0
    %v4630 = vadd.f32 %v4226, %v4629
    %4631 = vmatprep.mubr.bf16.mxu0 %v4146
    %4632 = vmatmul.mubr.bf16.gmra.mrb[0].mxu0 %v4145
    %v4633 = vpop.f32.mrb[0].mxu0
    %v4634 = vadd.f32 %v4222, %v4633
    %v4635 = vpop.f32.mrb[0].mxu0
    %v4636 = vadd.f32 %v4226, %v4635
    %v4637 = vpop.f32.mrb[0].mxu0
    %v4638 = vadd.f32 %v4222, %v4637
    %v4639 = vpop.f32.mrb[0].mxu0
    %v4640 = vadd.f32 %v4226, %v4639
    %4641 = vmatprep.mubr.bf16.mxu0 %v4148
    %4642 = vmatmul.mubr.bf16.gmra.mrb[0].mxu0 %v4147
    %v4643 = vpop.f32.mrb[0].mxu0
    %v4644 = vadd.f32 %v4222, %v4643
    %v4645 = vpop.f32.mrb[0].mxu0
    %v4646 = vadd.f32 %v4226, %v4645
    %v4647 = vpop.f32.mrb[0].mxu0
    %v4648 = vadd.f32 %v4222, %v4647
    %v4649 = vpop.f32.mrb[0].mxu0
    %v4650 = vadd.f32 %v4226, %v4649
    %4651 = vmatprep.mubr.bf16.mxu0 %v4150
    %4652 = vmatmul.mubr.bf16.gmra.mrb[0].mxu0 %v4149
    %v4653 = vpop.f32.mrb[0].mxu0
    %v4654 = vadd.f32 %v4222, %v4653
    %v4655 = vpop.f32.mrb[0].mxu0
    %v4656 = vadd.f32 %v4226, %v4655
    %v4657 = vpop.f32.mrb[0].mxu0
    %v4658 = vadd.f32 %v4222, %v4657
    %v4659 = vpop.f32.mrb[0].mxu0
    %v4660 = vadd.f32 %v4226, %v4659
    %4661 = vmatprep.mubr.bf16.mxu0 %v4152
    %4662 = vmatmul.mubr.bf16.gmra.mrb[0].mxu0 %v4151
    %v4663 = vpop.f32.mrb[0].mxu0
    %v4664 = vadd.f32 %v4222, %v4663
    %v4665 = vpop.f32.mrb[0].mxu0
    %v4666 = vadd.f32 %v4226, %v4665
    %v4667 = vpop.f32.mrb[0].mxu0
    %v4668 = vadd.f32 %v4222, %v4667
    %v4669 = vpop.f32.mrb[0].mxu0
    %v4670 = vadd.f32 %v4226, %v4669
    %4671 = vdwg.mxu0
    %4672 = vmatprep.subr.bf16.mxu0 %v4434
    %4673 = vmatpush1.bf16.msra.mxu0 %v4433
    %4674 = vmatprep.subr.bf16.mxu0 %v4438
    %4675 = vmatpush1.bf16.msra.mxu0 %v4437
    %4676 = vmatprep.subr.bf16.mxu0 %v4442
    %4677 = vmatpush1.bf16.msra.mxu0 %v4441
    %4678 = vmatprep.subr.bf16.mxu0 %v4446
    %4679 = vmatpush1.bf16.msra.mxu0 %v4445
    %4680 = vmatprep.subr.bf16.mxu0 %v4450
    %4681 = vmatpush1.bf16.msra.mxu0 %v4449
    %4682 = vmatprep.subr.bf16.mxu0 %v4454
    %4683 = vmatpush1.bf16.msra.mxu0 %v4453
    %4684 = vmatprep.subr.bf16.mxu0 %v4458
    %4685 = vmatpush1.bf16.msra.mxu0 %v4457
    %4686 = vmatprep.subr.bf16.mxu0 %v4462
    %4687 = vmatpush1.bf16.msra.mxu0 %v4461
    %4688 = vmatprep.subr.bf16.mxu0 %v4466
    %4689 = vmatpush1.bf16.msra.mxu0 %v4465
    %4690 = vmatprep.subr.bf16.mxu0 %v4470
    %4691 = vmatpush1.bf16.msra.mxu0 %v4469
    %4692 = vmatprep.subr.bf16.mxu0 %v4474
    %4693 = vmatpush1.bf16.msra.mxu0 %v4473
    %4694 = vmatprep.subr.bf16.mxu0 %v4478
    %4695 = vmatpush1.bf16.msra.mxu0 %v4477
    %4696 = vmatprep.subr.bf16.mxu0 %v4482
    %4697 = vmatpush1.bf16.msra.mxu0 %v4481
    %4698 = vmatprep.subr.bf16.mxu0 %v4486
    %4699 = vmatpush1.bf16.msra.mxu0 %v4485
    %4700 = vmatprep.subr.bf16.mxu0 %v4490
    %4701 = vmatpush1.bf16.msra.mxu0 %v4489
    %4702 = vmatprep.subr.bf16.mxu0 %v4494
    %4703 = vmatpush1.bf16.msra.mxu0 %v4493
    %4704 = vmatprep.mubr.bf16.mxu0 %v4138
    %4705 = vmatmul.mubr.bf16.gmra.mrb[0].mxu0 %v4137
    %v4706 = vpop.f32.mrb[0].mxu0
    %v4707 = vadd.f32 %v4230, %v4706
    %v4708 = vpop.f32.mrb[0].mxu0
    %v4709 = vadd.f32 %v4234, %v4708
    %v4710 = vpop.f32.mrb[0].mxu0
    %v4711 = vadd.f32 %v4230, %v4710
    %v4712 = vpop.f32.mrb[0].mxu0
    %v4713 = vadd.f32 %v4234, %v4712
    %4714 = vmatprep.mubr.bf16.mxu0 %v4140
    %4715 = vmatmul.mubr.bf16.gmra.mrb[0].mxu0 %v4139
    %v4716 = vpop.f32.mrb[0].mxu0
    %v4717 = vadd.f32 %v4230, %v4716
    %v4718 = vpop.f32.mrb[0].mxu0
    %v4719 = vadd.f32 %v4234, %v4718
    %v4720 = vpop.f32.mrb[0].mxu0
    %v4721 = vadd.f32 %v4230, %v4720
    %v4722 = vpop.f32.mrb[0].mxu0
    %v4723 = vadd.f32 %v4234, %v4722
    %4724 = vmatprep.mubr.bf16.mxu0 %v4142
    %4725 = vmatmul.mubr.bf16.gmra.mrb[0].mxu0 %v4141
    %v4726 = vpop.f32.mrb[0].mxu0
    %v4727 = vadd.f32 %v4230, %v4726
    %v4728 = vpop.f32.mrb[0].mxu0
    %v4729 = vadd.f32 %v4234, %v4728
    %v4730 = vpop.f32.mrb[0].mxu0
    %v4731 = vadd.f32 %v4230, %v4730
    %v4732 = vpop.f32.mrb[0].mxu0
    %v4733 = vadd.f32 %v4234, %v4732
    %4734 = vmatprep.mubr.bf16.mxu0 %v4144
    %4735 = vmatmul.mubr.bf16.gmra.mrb[0].mxu0 %v4143
    %v4736 = vpop.f32.mrb[0].mxu0
    %v4737 = vadd.f32 %v4230, %v4736
    %v4738 = vpop.f32.mrb[0].mxu0
    %v4739 = vadd.f32 %v4234, %v4738
    %v4740 = vpop.f32.mrb[0].mxu0
    %v4741 = vadd.f32 %v4230, %v4740
    %v4742 = vpop.f32.mrb[0].mxu0
    %v4743 = vadd.f32 %v4234, %v4742
    %4744 = vmatprep.mubr.bf16.mxu0 %v4146
    %4745 = vmatmul.mubr.bf16.gmra.mrb[0].mxu0 %v4145
    %v4746 = vpop.f32.mrb[0].mxu0
    %v4747 = vadd.f32 %v4230, %v4746
    %v4748 = vpop.f32.mrb[0].mxu0
    %v4749 = vadd.f32 %v4234, %v4748
    %v4750 = vpop.f32.mrb[0].mxu0
    %v4751 = vadd.f32 %v4230, %v4750
    %v4752 = vpop.f32.mrb[0].mxu0
    %v4753 = vadd.f32 %v4234, %v4752
    %4754 = vmatprep.mubr.bf16.mxu0 %v4148
    %4755 = vmatmul.mubr.bf16.gmra.mrb[0].mxu0 %v4147
    %v4756 = vpop.f32.mrb[0].mxu0
    %v4757 = vadd.f32 %v4230, %v4756
    %v4758 = vpop.f32.mrb[0].mxu0
    %v4759 = vadd.f32 %v4234, %v4758
    %v4760 = vpop.f32.mrb[0].mxu0
    %v4761 = vadd.f32 %v4230, %v4760
    %v4762 = vpop.f32.mrb[0].mxu0
    %v4763 = vadd.f32 %v4234, %v4762
    %4764 = vmatprep.mubr.bf16.mxu0 %v4150
    %4765 = vmatmul.mubr.bf16.gmra.mrb[0].mxu0 %v4149
    %v4766 = vpop.f32.mrb[0].mxu0
    %v4767 = vadd.f32 %v4230, %v4766
    %v4768 = vpop.f32.mrb[0].mxu0
    %v4769 = vadd.f32 %v4234, %v4768
    %v4770 = vpop.f32.mrb[0].mxu0
    %v4771 = vadd.f32 %v4230, %v4770
    %v4772 = vpop.f32.mrb[0].mxu0
    %v4773 = vadd.f32 %v4234, %v4772
    %4774 = vmatprep.mubr.bf16.mxu0 %v4152
    %4775 = vmatmul.mubr.bf16.gmra.mrb[0].mxu0 %v4151
    %v4776 = vpop.f32.mrb[0].mxu0
    %v4777 = vadd.f32 %v4230, %v4776
    %v4778 = vpop.f32.mrb[0].mxu0
    %v4779 = vadd.f32 %v4234, %v4778
    %v4780 = vpop.f32.mrb[0].mxu0
    %v4781 = vadd.f32 %v4230, %v4780
    %v4782 = vpop.f32.mrb[0].mxu0
    %v4783 = vadd.f32 %v4234, %v4782
    %4784 = vdwg.mxu0
    %v4785 = vmax.f32 %v4594, 0.0
    %v4786 = vmax.f32 %v4596, 0.0
    %v4787 = vmax.f32 %v4707, 0.0
    %v4788 = vmax.f32 %v4709, 0.0
    %v4789 = vmax.f32 %v4598, 0.0
    %v4790 = vmax.f32 %v4600, 0.0
    %v4791 = vmax.f32 %v4711, 0.0
    %v4792 = vmax.f32 %v4713, 0.0
    %v4793 = vmax.f32 %v4604, 0.0
    %v4794 = vmax.f32 %v4606, 0.0
    %v4795 = vmax.f32 %v4717, 0.0
    %v4796 = vmax.f32 %v4719, 0.0
    %v4797 = vmax.f32 %v4608, 0.0
    %v4798 = vmax.f32 %v4610, 0.0
    %v4799 = vmax.f32 %v4721, 0.0
    %v4800 = vmax.f32 %v4723, 0.0
    %v4801 = vmax.f32 %v4614, 0.0
    %v4802 = vmax.f32 %v4616, 0.0
    %v4803 = vmax.f32 %v4727, 0.0
    %v4804 = vmax.f32 %v4729, 0.0
    %v4805 = vmax.f32 %v4618, 0.0
    %v4806 = vmax.f32 %v4620, 0.0
    %v4807 = vmax.f32 %v4731, 0.0
    %v4808 = vmax.f32 %v4733, 0.0
    %v4809 = vmax.f32 %v4624, 0.0
    %v4810 = vmax.f32 %v4626, 0.0
    %v4811 = vmax.f32 %v4737, 0.0
    %v4812 = vmax.f32 %v4739, 0.0
    %v4813 = vmax.f32 %v4628, 0.0
    %v4814 = vmax.f32 %v4630, 0.0
    %v4815 = vmax.f32 %v4741, 0.0
    %v4816 = vmax.f32 %v4743, 0.0
    %v4817 = vmax.f32 %v4634, 0.0
    %v4818 = vmax.f32 %v4636, 0.0
    %v4819 = vmax.f32 %v4747, 0.0
    %v4820 = vmax.f32 %v4749, 0.0
    %v4821 = vmax.f32 %v4638, 0.0
    %v4822 = vmax.f32 %v4640, 0.0
    %v4823 = vmax.f32 %v4751, 0.0
    %v4824 = vmax.f32 %v4753, 0.0
    %v4825 = vmax.f32 %v4644, 0.0
    %v4826 = vmax.f32 %v4646, 0.0
    %v4827 = vmax.f32 %v4757, 0.0
    %v4828 = vmax.f32 %v4759, 0.0
    %v4829 = vmax.f32 %v4648, 0.0
    %v4830 = vmax.f32 %v4650, 0.0
    %v4831 = vmax.f32 %v4761, 0.0
    %v4832 = vmax.f32 %v4763, 0.0
    %v4833 = vmax.f32 %v4654, 0.0
    %v4834 = vmax.f32 %v4656, 0.0
    %v4835 = vmax.f32 %v4767, 0.0
    %v4836 = vmax.f32 %v4769, 0.0
    %v4837 = vmax.f32 %v4658, 0.0
    %v4838 = vmax.f32 %v4660, 0.0
    %v4839 = vmax.f32 %v4771, 0.0
    %v4840 = vmax.f32 %v4773, 0.0
    %v4841 = vmax.f32 %v4664, 0.0
    %v4842 = vmax.f32 %v4666, 0.0
    %v4843 = vmax.f32 %v4777, 0.0
    %v4844 = vmax.f32 %v4779, 0.0
    %v4845 = vmax.f32 %v4668, 0.0
    %v4846 = vmax.f32 %v4670, 0.0
    %v4847 = vmax.f32 %v4781, 0.0
    %v4848 = vmax.f32 %v4783, 0.0
    %v4849 = vpack.c.bf16 %v4789, %v4785
    %v4850 = vpack.c.bf16 %v4790, %v4786
    %v4851 = vpack.c.bf16 %v4791, %v4787
    %v4852 = vpack.c.bf16 %v4792, %v4788
    %v4853 = vpack.c.bf16 %v4797, %v4793
    %v4854 = vpack.c.bf16 %v4798, %v4794
    %v4855 = vpack.c.bf16 %v4799, %v4795
    %v4856 = vpack.c.bf16 %v4800, %v4796
    %v4857 = vpack.c.bf16 %v4805, %v4801
    %v4858 = vpack.c.bf16 %v4806, %v4802
    %v4859 = vpack.c.bf16 %v4807, %v4803
    %v4860 = vpack.c.bf16 %v4808, %v4804
    %v4861 = vpack.c.bf16 %v4813, %v4809
    %v4862 = vpack.c.bf16 %v4814, %v4810
    %v4863 = vpack.c.bf16 %v4815, %v4811
    %v4864 = vpack.c.bf16 %v4816, %v4812
    %v4865 = vpack.c.bf16 %v4821, %v4817
    %v4866 = vpack.c.bf16 %v4822, %v4818
    %v4867 = vpack.c.bf16 %v4823, %v4819
    %v4868 = vpack.c.bf16 %v4824, %v4820
    %v4869 = vpack.c.bf16 %v4829, %v4825
    %v4870 = vpack.c.bf16 %v4830, %v4826
    %v4871 = vpack.c.bf16 %v4831, %v4827
    %v4872 = vpack.c.bf16 %v4832, %v4828
    %v4873 = vpack.c.bf16 %v4837, %v4833
    %v4874 = vpack.c.bf16 %v4838, %v4834
    %v4875 = vpack.c.bf16 %v4839, %v4835
    %v4876 = vpack.c.bf16 %v4840, %v4836
    %v4877 = vpack.c.bf16 %v4845, %v4841
    %v4878 = vpack.c.bf16 %v4846, %v4842
    %v4879 = vpack.c.bf16 %v4847, %v4843
    %v4880 = vpack.c.bf16 %v4848, %v4844
    %v4881 = vld [vmem:[#allocation34] sm:$0xf]
    %v4882 = vld [vmem:[#allocation34 + $0x4] sm:$0xf]
    %v4883 = vld [vmem:[#allocation34 + $0x8] sm:$0xf]
    %v4884 = vld [vmem:[#allocation34 + $0xc] sm:$0xf]
    %v4885 = vld [vmem:[#allocation34 + $0x10] sm:$0xf]
    %v4886 = vld [vmem:[#allocation34 + $0x14] sm:$0xf]
    %v4887 = vld [vmem:[#allocation34 + $0x18] sm:$0xf]
    %v4888 = vld [vmem:[#allocation34 + $0x1c] sm:$0xf]
    %v4889 = vld [vmem:[#allocation34 + $0x20] sm:$0xf]
    %v4890 = vld [vmem:[#allocation34 + $0x24] sm:$0xf]
    %v4891 = vld [vmem:[#allocation34 + $0x28] sm:$0xf]
    %v4892 = vld [vmem:[#allocation34 + $0x2c] sm:$0xf]
    %v4893 = vld [vmem:[#allocation34 + $0x30] sm:$0xf]
    %v4894 = vld [vmem:[#allocation34 + $0x34] sm:$0xf]
    %v4895 = vld [vmem:[#allocation34 + $0x38] sm:$0xf]
    %v4896 = vld [vmem:[#allocation34 + $0x3c] sm:$0xf]
    %v4897 = vld [vmem:[#allocation34 + $0x40] sm:$0xf]
    %v4898 = vld [vmem:[#allocation34 + $0x44] sm:$0xf]
    %v4899 = vld [vmem:[#allocation34 + $0x48] sm:$0xf]
    %v4900 = vld [vmem:[#allocation34 + $0x4c] sm:$0xf]
    %v4901 = vld [vmem:[#allocation34 + $0x50] sm:$0xf]
    %v4902 = vld [vmem:[#allocation34 + $0x54] sm:$0xf]
    %v4903 = vld [vmem:[#allocation34 + $0x58] sm:$0xf]
    %v4904 = vld [vmem:[#allocation34 + $0x5c] sm:$0xf]
    %v4905 = vld [vmem:[#allocation34 + $0x60] sm:$0xf]
    %v4906 = vld [vmem:[#allocation34 + $0x64] sm:$0xf]
    %v4907 = vld [vmem:[#allocation34 + $0x68] sm:$0xf]
    %v4908 = vld [vmem:[#allocation34 + $0x6c] sm:$0xf]
    %v4909 = vld [vmem:[#allocation34 + $0x70] sm:$0xf]
    %v4910 = vld [vmem:[#allocation34 + $0x74] sm:$0xf]
    %v4911 = vld [vmem:[#allocation34 + $0x78] sm:$0xf]
    %v4912 = vld [vmem:[#allocation34 + $0x7c] sm:$0xf]
    %v4913 = vld [vmem:[#allocation34 + $0x80] sm:$0xf]
    %v4914 = vld [vmem:[#allocation34 + $0x84] sm:$0xf]
    %v4915 = vld [vmem:[#allocation34 + $0x88] sm:$0xf]
    %v4916 = vld [vmem:[#allocation34 + $0x8c] sm:$0xf]
    %v4917 = vld [vmem:[#allocation34 + $0x90] sm:$0xf]
    %v4918 = vld [vmem:[#allocation34 + $0x94] sm:$0xf]
    %v4919 = vld [vmem:[#allocation34 + $0x98] sm:$0xf]
    %v4920 = vld [vmem:[#allocation34 + $0x9c] sm:$0xf]
    %v4921 = vld [vmem:[#allocation34 + $0xa0] sm:$0xf]
    %v4922 = vld [vmem:[#allocation34 + $0xa4] sm:$0xf]
    %v4923 = vld [vmem:[#allocation34 + $0xa8] sm:$0xf]
    %v4924 = vld [vmem:[#allocation34 + $0xac] sm:$0xf]
    %v4925 = vld [vmem:[#allocation34 + $0xb0] sm:$0xf]
    %v4926 = vld [vmem:[#allocation34 + $0xb4] sm:$0xf]
    %v4927 = vld [vmem:[#allocation34 + $0xb8] sm:$0xf]
    %v4928 = vld [vmem:[#allocation34 + $0xbc] sm:$0xf]
    %v4929 = vld [vmem:[#allocation34 + $0xc0] sm:$0xf]
    %v4930 = vld [vmem:[#allocation34 + $0xc4] sm:$0xf]
    %v4931 = vld [vmem:[#allocation34 + $0xc8] sm:$0xf]
    %v4932 = vld [vmem:[#allocation34 + $0xcc] sm:$0xf]
    %v4933 = vld [vmem:[#allocation34 + $0xd0] sm:$0xf]
    %v4934 = vld [vmem:[#allocation34 + $0xd4] sm:$0xf]
    %v4935 = vld [vmem:[#allocation34 + $0xd8] sm:$0xf]
    %v4936 = vld [vmem:[#allocation34 + $0xdc] sm:$0xf]
    %v4937 = vld [vmem:[#allocation34 + $0xe0] sm:$0xf]
    %v4938 = vld [vmem:[#allocation34 + $0xe4] sm:$0xf]
    %v4939 = vld [vmem:[#allocation34 + $0xe8] sm:$0xf]
    %v4940 = vld [vmem:[#allocation34 + $0xec] sm:$0xf]
    %v4941 = vld [vmem:[#allocation34 + $0xf0] sm:$0xf]
    %v4942 = vld [vmem:[#allocation34 + $0xf4] sm:$0xf]
    %v4943 = vld [vmem:[#allocation34 + $0xf8] sm:$0xf]
    %v4944 = vld [vmem:[#allocation34 + $0xfc] sm:$0xf]
    %v4945 = vld [vmem:[%s24] sm:$0x1]
    %v4947 = vlaneseq
    %v4948 = vshrl.u32 %v4947, 7
    %v4949 = vsub.s32 0, %v4948
    %v4950 = vrot.slane %v4945, %v4949
    %v5016 = vunpack.c.l.b16 %v4881
    %v5017 = vunpack.c.l.b16 %v4882
    %v5018 = vunpack.c.l.b16 %v4883
    %v5019 = vunpack.c.l.b16 %v4884
    %v5020 = vunpack.c.l.b16 %v4885
    %v5021 = vunpack.c.l.b16 %v4886
    %v5022 = vunpack.c.l.b16 %v4887
    %v5023 = vunpack.c.l.b16 %v4888
    %v5024 = vunpack.c.l.b16 %v4889
    %v5025 = vunpack.c.l.b16 %v4890
    %v5026 = vunpack.c.l.b16 %v4891
    %v5027 = vunpack.c.l.b16 %v4892
    %v5028 = vunpack.c.l.b16 %v4893
    %v5029 = vunpack.c.l.b16 %v4894
    %v5030 = vunpack.c.l.b16 %v4895
    %v5031 = vunpack.c.l.b16 %v4896
    %v5032 = vunpack.c.l.b16 %v4897
    %v5033 = vunpack.c.l.b16 %v4898
    %v5034 = vunpack.c.l.b16 %v4899
    %v5035 = vunpack.c.l.b16 %v4900
    %v5036 = vunpack.c.l.b16 %v4901
    %v5037 = vunpack.c.l.b16 %v4902
    %v5038 = vunpack.c.l.b16 %v4903
    %v5039 = vunpack.c.l.b16 %v4904
    %v5040 = vunpack.c.l.b16 %v4905
    %v5041 = vunpack.c.l.b16 %v4906
    %v5042 = vunpack.c.l.b16 %v4907
    %v5043 = vunpack.c.l.b16 %v4908
    %v5044 = vunpack.c.l.b16 %v4909
    %v5045 = vunpack.c.l.b16 %v4910
    %v5046 = vunpack.c.l.b16 %v4911
    %v5047 = vunpack.c.l.b16 %v4912
    %v5048 = vunpack.c.l.b16 %v4913
    %v5049 = vunpack.c.l.b16 %v4914
    %v5050 = vunpack.c.l.b16 %v4915
    %v5051 = vunpack.c.l.b16 %v4916
    %v5052 = vunpack.c.l.b16 %v4917
    %v5053 = vunpack.c.l.b16 %v4918
    %v5054 = vunpack.c.l.b16 %v4919
    %v5055 = vunpack.c.l.b16 %v4920
    %v5056 = vunpack.c.l.b16 %v4921
    %v5057 = vunpack.c.l.b16 %v4922
    %v5058 = vunpack.c.l.b16 %v4923
    %v5059 = vunpack.c.l.b16 %v4924
    %v5060 = vunpack.c.l.b16 %v4925
    %v5061 = vunpack.c.l.b16 %v4926
    %v5062 = vunpack.c.l.b16 %v4927
    %v5063 = vunpack.c.l.b16 %v4928
    %v5064 = vunpack.c.l.b16 %v4929
    %v5065 = vunpack.c.l.b16 %v4930
    %v5066 = vunpack.c.l.b16 %v4931
    %v5067 = vunpack.c.l.b16 %v4932
    %v5068 = vunpack.c.l.b16 %v4933
    %v5069 = vunpack.c.l.b16 %v4934
    %v5070 = vunpack.c.l.b16 %v4935
    %v5071 = vunpack.c.l.b16 %v4936
    %v5072 = vunpack.c.l.b16 %v4937
    %v5073 = vunpack.c.l.b16 %v4938
    %v5074 = vunpack.c.l.b16 %v4939
    %v5075 = vunpack.c.l.b16 %v4940
    %v5076 = vunpack.c.l.b16 %v4941
    %v5077 = vunpack.c.l.b16 %v4942
    %v5078 = vunpack.c.l.b16 %v4943
    %v5079 = vunpack.c.l.b16 %v4944
    %v5080 = vpack.c.b16 %v5017, %v5016
    %v5081 = vpack.c.b16 %v5019, %v5018
    %v5082 = vpack.c.b16 %v5021, %v5020
    %v5083 = vpack.c.b16 %v5023, %v5022
    %v5084 = vpack.c.b16 %v5025, %v5024
    %v5085 = vpack.c.b16 %v5027, %v5026
    %v5086 = vpack.c.b16 %v5029, %v5028
    %v5087 = vpack.c.b16 %v5031, %v5030
    %v5088 = vpack.c.b16 %v5033, %v5032
    %v5089 = vpack.c.b16 %v5035, %v5034
    %v5090 = vpack.c.b16 %v5037, %v5036
    %v5091 = vpack.c.b16 %v5039, %v5038
    %v5092 = vpack.c.b16 %v5041, %v5040
    %v5093 = vpack.c.b16 %v5043, %v5042
    %v5094 = vpack.c.b16 %v5045, %v5044
    %v5095 = vpack.c.b16 %v5047, %v5046
    %v5096 = vpack.c.b16 %v5049, %v5048
    %v5097 = vpack.c.b16 %v5051, %v5050
    %v5098 = vpack.c.b16 %v5053, %v5052
    %v5099 = vpack.c.b16 %v5055, %v5054
    %v5100 = vpack.c.b16 %v5057, %v5056
    %v5101 = vpack.c.b16 %v5059, %v5058
    %v5102 = vpack.c.b16 %v5061, %v5060
    %v5103 = vpack.c.b16 %v5063, %v5062
    %v5104 = vpack.c.b16 %v5065, %v5064
    %v5105 = vpack.c.b16 %v5067, %v5066
    %v5106 = vpack.c.b16 %v5069, %v5068
    %v5107 = vpack.c.b16 %v5071, %v5070
    %v5108 = vpack.c.b16 %v5073, %v5072
    %v5109 = vpack.c.b16 %v5075, %v5074
    %v5110 = vpack.c.b16 %v5077, %v5076
    %v5111 = vpack.c.b16 %v5079, %v5078
    %5144 = vmatprep.subr.bf16.mxu0 0
    %5145 = vmatpush1.bf16.msra.mxu0 %v5080
    %5146 = vmatprep.subr.bf16.mxu0 0
    %5147 = vmatpush1.bf16.msra.mxu0 %v5081
    %5148 = vmatprep.subr.bf16.mxu0 0
    %5149 = vmatpush1.bf16.msra.mxu0 %v5082
    %5150 = vmatprep.subr.bf16.mxu0 0
    %5151 = vmatpush1.bf16.msra.mxu0 %v5083
    %5152 = vmatprep.subr.bf16.mxu0 0
    %5153 = vmatpush1.bf16.msra.mxu0 %v5084
    %5154 = vmatprep.subr.bf16.mxu0 0
    %5155 = vmatpush1.bf16.msra.mxu0 %v5085
    %5156 = vmatprep.subr.bf16.mxu0 0
    %5157 = vmatpush1.bf16.msra.mxu0 %v5086
    %5158 = vmatprep.subr.bf16.mxu0 0
    %5159 = vmatpush1.bf16.msra.mxu0 %v5087
    %5160 = vmatprep.subr.bf16.mxu0 0
    %5161 = vmatpush1.bf16.msra.mxu0 %v5088
    %5162 = vmatprep.subr.bf16.mxu0 0
    %5163 = vmatpush1.bf16.msra.mxu0 %v5089
    %5164 = vmatprep.subr.bf16.mxu0 0
    %5165 = vmatpush1.bf16.msra.mxu0 %v5090
    %5166 = vmatprep.subr.bf16.mxu0 0
    %5167 = vmatpush1.bf16.msra.mxu0 %v5091
    %5168 = vmatprep.subr.bf16.mxu0 0
    %5169 = vmatpush1.bf16.msra.mxu0 %v5092
    %5170 = vmatprep.subr.bf16.mxu0 0
    %5171 = vmatpush1.bf16.msra.mxu0 %v5093
    %5172 = vmatprep.subr.bf16.mxu0 0
    %5173 = vmatpush1.bf16.msra.mxu0 %v5094
    %5174 = vmatprep.subr.bf16.mxu0 0
    %5175 = vmatpush1.bf16.msra.mxu0 %v5095
    %5176 = vmatprep.mubr.bf16.mxu0 %v4850
    %5177 = vmatmul.mubr.bf16.gmra.mrb[0].mxu0 %v4849
    %v5178 = vpop.f32.mrb[0].mxu0
    %v5179 = vadd.f32 %v4950, %v5178
    %v5180 = vpop.f32.mrb[0].mxu0
    %v5181 = vpop.f32.mrb[0].mxu0
    %v5182 = vadd.f32 %v4950, %v5181
    %v5183 = vpop.f32.mrb[0].mxu0
    %5184 = vmatprep.mubr.bf16.mxu0 %v4854
    %5185 = vmatmul.mubr.bf16.gmra.mrb[0].mxu0 %v4853
    %v5186 = vpop.f32.mrb[0].mxu0
    %v5187 = vadd.f32 %v4950, %v5186
    %v5188 = vpop.f32.mrb[0].mxu0
    %v5189 = vpop.f32.mrb[0].mxu0
    %v5190 = vadd.f32 %v4950, %v5189
    %v5191 = vpop.f32.mrb[0].mxu0
    %5192 = vmatprep.mubr.bf16.mxu0 %v4858
    %5193 = vmatmul.mubr.bf16.gmra.mrb[0].mxu0 %v4857
    %v5194 = vpop.f32.mrb[0].mxu0
    %v5195 = vadd.f32 %v4950, %v5194
    %v5196 = vpop.f32.mrb[0].mxu0
    %v5197 = vpop.f32.mrb[0].mxu0
    %v5198 = vadd.f32 %v4950, %v5197
    %v5199 = vpop.f32.mrb[0].mxu0
    %5200 = vmatprep.mubr.bf16.mxu0 %v4862
    %5201 = vmatmul.mubr.bf16.gmra.mrb[0].mxu0 %v4861
    %v5202 = vpop.f32.mrb[0].mxu0
    %v5203 = vadd.f32 %v4950, %v5202
    %v5204 = vpop.f32.mrb[0].mxu0
    %v5205 = vpop.f32.mrb[0].mxu0
    %v5206 = vadd.f32 %v4950, %v5205
    %v5207 = vpop.f32.mrb[0].mxu0
    %5208 = vmatprep.mubr.bf16.mxu0 %v4866
    %5209 = vmatmul.mubr.bf16.gmra.mrb[0].mxu0 %v4865
    %v5210 = vpop.f32.mrb[0].mxu0
    %v5211 = vadd.f32 %v4950, %v5210
    %v5212 = vpop.f32.mrb[0].mxu0
    %v5213 = vpop.f32.mrb[0].mxu0
    %v5214 = vadd.f32 %v4950, %v5213
    %v5215 = vpop.f32.mrb[0].mxu0
    %5216 = vmatprep.mubr.bf16.mxu0 %v4870
    %5217 = vmatmul.mubr.bf16.gmra.mrb[0].mxu0 %v4869
    %v5218 = vpop.f32.mrb[0].mxu0
    %v5219 = vadd.f32 %v4950, %v5218
    %v5220 = vpop.f32.mrb[0].mxu0
    %v5221 = vpop.f32.mrb[0].mxu0
    %v5222 = vadd.f32 %v4950, %v5221
    %v5223 = vpop.f32.mrb[0].mxu0
    %5224 = vmatprep.mubr.bf16.mxu0 %v4874
    %5225 = vmatmul.mubr.bf16.gmra.mrb[0].mxu0 %v4873
    %v5226 = vpop.f32.mrb[0].mxu0
    %v5227 = vadd.f32 %v4950, %v5226
    %v5228 = vpop.f32.mrb[0].mxu0
    %v5229 = vpop.f32.mrb[0].mxu0
    %v5230 = vadd.f32 %v4950, %v5229
    %v5231 = vpop.f32.mrb[0].mxu0
    %5232 = vmatprep.mubr.bf16.mxu0 %v4878
    %5233 = vmatmul.mubr.bf16.gmra.mrb[0].mxu0 %v4877
    %v5234 = vpop.f32.mrb[0].mxu0
    %v5235 = vadd.f32 %v4950, %v5234
    %v5236 = vpop.f32.mrb[0].mxu0
    %v5237 = vpop.f32.mrb[0].mxu0
    %v5238 = vadd.f32 %v4950, %v5237
    %v5239 = vpop.f32.mrb[0].mxu0
    %5240 = vdwg.mxu0
    %5241 = vmatprep.subr.bf16.mxu0 0
    %5242 = vmatpush1.bf16.msra.mxu0 %v5096
    %5243 = vmatprep.subr.bf16.mxu0 0
    %5244 = vmatpush1.bf16.msra.mxu0 %v5097
    %5245 = vmatprep.subr.bf16.mxu0 0
    %5246 = vmatpush1.bf16.msra.mxu0 %v5098
    %5247 = vmatprep.subr.bf16.mxu0 0
    %5248 = vmatpush1.bf16.msra.mxu0 %v5099
    %5249 = vmatprep.subr.bf16.mxu0 0
    %5250 = vmatpush1.bf16.msra.mxu0 %v5100
    %5251 = vmatprep.subr.bf16.mxu0 0
    %5252 = vmatpush1.bf16.msra.mxu0 %v5101
    %5253 = vmatprep.subr.bf16.mxu0 0
    %5254 = vmatpush1.bf16.msra.mxu0 %v5102
    %5255 = vmatprep.subr.bf16.mxu0 0
    %5256 = vmatpush1.bf16.msra.mxu0 %v5103
    %5257 = vmatprep.subr.bf16.mxu0 0
    %5258 = vmatpush1.bf16.msra.mxu0 %v5104
    %5259 = vmatprep.subr.bf16.mxu0 0
    %5260 = vmatpush1.bf16.msra.mxu0 %v5105
    %5261 = vmatprep.subr.bf16.mxu0 0
    %5262 = vmatpush1.bf16.msra.mxu0 %v5106
    %5263 = vmatprep.subr.bf16.mxu0 0
    %5264 = vmatpush1.bf16.msra.mxu0 %v5107
    %5265 = vmatprep.subr.bf16.mxu0 0
    %5266 = vmatpush1.bf16.msra.mxu0 %v5108
    %5267 = vmatprep.subr.bf16.mxu0 0
    %5268 = vmatpush1.bf16.msra.mxu0 %v5109
    %5269 = vmatprep.subr.bf16.mxu0 0
    %5270 = vmatpush1.bf16.msra.mxu0 %v5110
    %5271 = vmatprep.subr.bf16.mxu0 0
    %5272 = vmatpush1.bf16.msra.mxu0 %v5111
    %5273 = vmatprep.mubr.bf16.mxu0 %v4852
    %5274 = vmatmul.mubr.bf16.gmra.mrb[0].mxu0 %v4851
    %v5275 = vpop.f32.mrb[0].mxu0
    %v5276 = vadd.f32 %v5179, %v5275
    %v5277 = vpop.f32.mrb[0].mxu0
    %v5278 = vpop.f32.mrb[0].mxu0
    %v5279 = vadd.f32 %v5182, %v5278
    %v5280 = vpop.f32.mrb[0].mxu0
    %5281 = vmatprep.mubr.bf16.mxu0 %v4856
    %5282 = vmatmul.mubr.bf16.gmra.mrb[0].mxu0 %v4855
    %v5283 = vpop.f32.mrb[0].mxu0
    %v5284 = vadd.f32 %v5187, %v5283
    %v5285 = vpop.f32.mrb[0].mxu0
    %v5286 = vpop.f32.mrb[0].mxu0
    %v5287 = vadd.f32 %v5190, %v5286
    %v5288 = vpop.f32.mrb[0].mxu0
    %5289 = vmatprep.mubr.bf16.mxu0 %v4860
    %5290 = vmatmul.mubr.bf16.gmra.mrb[0].mxu0 %v4859
    %v5291 = vpop.f32.mrb[0].mxu0
    %v5292 = vadd.f32 %v5195, %v5291
    %v5293 = vpop.f32.mrb[0].mxu0
    %v5294 = vpop.f32.mrb[0].mxu0
    %v5295 = vadd.f32 %v5198, %v5294
    %v5296 = vpop.f32.mrb[0].mxu0
    %5297 = vmatprep.mubr.bf16.mxu0 %v4864
    %5298 = vmatmul.mubr.bf16.gmra.mrb[0].mxu0 %v4863
    %v5299 = vpop.f32.mrb[0].mxu0
    %v5300 = vadd.f32 %v5203, %v5299
    %v5301 = vpop.f32.mrb[0].mxu0
    %v5302 = vpop.f32.mrb[0].mxu0
    %v5303 = vadd.f32 %v5206, %v5302
    %v5304 = vpop.f32.mrb[0].mxu0
    %5305 = vmatprep.mubr.bf16.mxu0 %v4868
    %5306 = vmatmul.mubr.bf16.gmra.mrb[0].mxu0 %v4867
    %v5307 = vpop.f32.mrb[0].mxu0
    %v5308 = vadd.f32 %v5211, %v5307
    %v5309 = vpop.f32.mrb[0].mxu0
    %v5310 = vpop.f32.mrb[0].mxu0
    %v5311 = vadd.f32 %v5214, %v5310
    %v5312 = vpop.f32.mrb[0].mxu0
    %5313 = vmatprep.mubr.bf16.mxu0 %v4872
    %5314 = vmatmul.mubr.bf16.gmra.mrb[0].mxu0 %v4871
    %v5315 = vpop.f32.mrb[0].mxu0
    %v5316 = vadd.f32 %v5219, %v5315
    %v5317 = vpop.f32.mrb[0].mxu0
    %v5318 = vpop.f32.mrb[0].mxu0
    %v5319 = vadd.f32 %v5222, %v5318
    %v5320 = vpop.f32.mrb[0].mxu0
    %5321 = vmatprep.mubr.bf16.mxu0 %v4876
    %5322 = vmatmul.mubr.bf16.gmra.mrb[0].mxu0 %v4875
    %v5323 = vpop.f32.mrb[0].mxu0
    %v5324 = vadd.f32 %v5227, %v5323
    %v5325 = vpop.f32.mrb[0].mxu0
    %v5326 = vpop.f32.mrb[0].mxu0
    %v5327 = vadd.f32 %v5230, %v5326
    %v5328 = vpop.f32.mrb[0].mxu0
    %5329 = vmatprep.mubr.bf16.mxu0 %v4880
    %5330 = vmatmul.mubr.bf16.gmra.mrb[0].mxu0 %v4879
    %v5331 = vpop.f32.mrb[0].mxu0
    %v5332 = vadd.f32 %v5235, %v5331
    %v5333 = vpop.f32.mrb[0].mxu0
    %v5334 = vpop.f32.mrb[0].mxu0
    %v5335 = vadd.f32 %v5238, %v5334
    %v5336 = vpop.f32.mrb[0].mxu0
    %5337 = vdwg.mxu0
    %5338 = vst [vmem:[#allocation38] sm:$0xff] %v5276
    %5339 = vst [vmem:[#allocation38 + $0x8] sm:$0xff] %v5279
    %5340 = vst [vmem:[#allocation38 + $0x10] sm:$0xff] %v5284
    %5341 = vst [vmem:[#allocation38 + $0x18] sm:$0xff] %v5287
    %5342 = vst [vmem:[#allocation38 + $0x20] sm:$0xff] %v5292
    %5343 = vst [vmem:[#allocation38 + $0x28] sm:$0xff] %v5295
    %5344 = vst [vmem:[#allocation38 + $0x30] sm:$0xff] %v5300
    %5345 = vst [vmem:[#allocation38 + $0x38] sm:$0xff] %v5303
    %5346 = vst [vmem:[#allocation38 + $0x40] sm:$0xff] %v5308
    %5347 = vst [vmem:[#allocation38 + $0x48] sm:$0xff] %v5311
    %5348 = vst [vmem:[#allocation38 + $0x50] sm:$0xff] %v5316
    %5349 = vst [vmem:[#allocation38 + $0x58] sm:$0xff] %v5319
    %5350 = vst [vmem:[#allocation38 + $0x60] sm:$0xff] %v5324
    %5351 = vst [vmem:[#allocation38 + $0x68] sm:$0xff] %v5327
    %5352 = vst [vmem:[#allocation38 + $0x70] sm:$0xff] %v5332
    %5353 = vst [vmem:[#allocation38 + $0x78] sm:$0xff] %v5335
    // Predicated region
    $region186: #{tpu_custom_call.1} parent=1 // pred_check
      _
    $region187: #{tpu_custom_call.1} parent=1 // pred_check_branch
      %5355 = sbr.rel (0) target = $region189
    $region188: #{tpu_custom_call.1} parent=1 // pred_region
      %s5357 = ssub.s32 2048, 2048
      %5358 = vsyncadd [#allocation4], %s5357
      %s5359 = sshll.u32 [#allocation35], 4
      %s5360 = int_to_ptr.vmem [resolvable:$true] %s5359
      %5365 = dma.vmem_to_hbm [thread:$0]  %s5360, 2048, %s25, [#allocation4], 128, 128, 8
    $region189: #{tpu_custom_call.1} parent=1 // pred_fallthru
      _
    // Predicated region
    $region190: #{tpu_custom_call.1} parent=1 // pred_check
      _
    $region191: #{tpu_custom_call.1} parent=1 // pred_check_branch
      %5367 = sbr.rel (0) target = $region193
    $region192: #{tpu_custom_call.1} parent=1 // pred_region
      %s5369 = ssub.s32 2048, 2048
      %5370 = vsyncadd [#allocation37], %s5369
      %s5371 = sshll.u32 [#allocation36], 4
      %s5372 = int_to_ptr.vmem [resolvable:$true] %s5371
      %5377 = dma.vmem_to_hbm [thread:$0]  %s5372, 2048, %s26, [#allocation37], 128, 128, 8
    $region193: #{tpu_custom_call.1} parent=1 // pred_fallthru
      _
    // Predicated region
    $region194: #{tpu_custom_call.1} parent=1 // pred_check
      _
    $region195: #{tpu_custom_call.1} parent=1 // pred_check_branch
      %5379 = sbr.rel (0) target = $region197
    $region196: #{tpu_custom_call.1} parent=1 // pred_region
      %s5381 = ssub.s32 2048, 2048
      %5382 = vsyncadd [#allocation37], %s5381
      %s5383 = sshll.u32 [#allocation38], 4
      %s5384 = int_to_ptr.vmem [resolvable:$true] %s5383
      %5389 = dma.vmem_to_hbm [thread:$0]  %s5384, 2048, %s27, [#allocation37], 128, 128, 8
    $region197: #{tpu_custom_call.1} parent=1 // pred_fallthru
      _
    // Predicated region
    $region198: #{tpu_custom_call.1} parent=1 // pred_check
      _
    $region199: #{tpu_custom_call.1} parent=1 // pred_check_branch
      %5391 = sbr.rel (0) target = $region201
    $region200: #{tpu_custom_call.1} parent=1 // pred_region
      %5392 = dma.done [#allocation4], 2048
    $region201: #{tpu_custom_call.1} parent=1 // pred_fallthru
      _
    // Predicated region
    $region202: #{tpu_custom_call.1} parent=1 // pred_check
      _
    $region203: #{tpu_custom_call.1} parent=1 // pred_check_branch
      %5394 = sbr.rel (0) target = $region205
    $region204: #{tpu_custom_call.1} parent=1 // pred_region
      %5395 = dma.done [#allocation37], 2048
    $region205: #{tpu_custom_call.1} parent=1 // pred_fallthru
      _
    // Predicated region
    $region206: #{tpu_custom_call.1} parent=1 // pred_check
      _
    $region207: #{tpu_custom_call.1} parent=1 // pred_check_branch
      %5397 = sbr.rel (0) target = $region209
    $region208: #{tpu_custom_call.1} parent=1 // pred_region
      %5398 = dma.done [#allocation37], 2048
    $region209: #{tpu_custom_call.1} parent=1 // pred_fallthru
      _
    %5399 = vsyncpa [#allocation3], 1
    %5400 = vsyncpa [#allocation6], 1
    %5401 = vsyncpa [#allocation9], 1
    %5402 = vsyncpa [#allocation12], 1
    %5403 = vsyncpa [#allocation15], 1
    %5404 = vsyncpa [#allocation18], 1
    %5405 = vsyncpa [#allocation21], 1
    %5406 = vsyncpa [#allocation24], 1
    %5407 = vsyncpa [#allocation27], 1
    %5408 = vsyncpa [#allocation30], 1
    %5409 = vsyncpa [#allocation33], 1
    %5410 = vsyncpa [#allocation4], 1
    %5411 = vsyncpa [#allocation37], 1

</llo_original>
